<compile_context>
chip_gen: v7x
topology: tpu7x:2x2x1
jax: 0.10.0
libtpu: 0.0.40
codegen_flags: <defaults>
</compile_context>

<pallas_src>
import functools

import jax
import jax.numpy as jnp
from jax.experimental import pallas as pl
from jax.experimental.pallas import tpu as pltpu


def _round_up(v, m):
    return ((v + m - 1) // m) * m


def _chip_vmem_bytes():
    """Per-core VMEM capacity; conservative fallback (v7x per-TC) if unknown."""
    try:
        cap = getattr(pltpu.get_tpu_info(), "vmem_capacity_bytes", None)
        if cap:
            return int(cap)
    except Exception:
        pass
    return 64 * 1024 * 1024


def _pick_tile_n(dim):
    """Hidden-dim tile for the streamed layer-2/3 weights (divides dim)."""
    for t in (512, 256, 128):
        if dim % t == 0:
            return t
    return dim


def _prepare_params(params, lane=128):
    """Zero-pad the hidden dim to a lane-aligned multiple (exact: padded units
    have zero weights/biases) and cast the two big dim x dim weights to bf16
    (the kernel accumulates in f32)."""
    w1, b1, w2, b2, w3, b3, w4, b4 = params
    dim = w1.shape[1]
    p = _round_up(dim, lane) - dim
    if p:
        w1 = jnp.pad(w1, ((0, 0), (0, p)))
        b1 = jnp.pad(b1, ((0, 0), (0, p)))
        w2 = jnp.pad(w2, ((0, p), (0, p)))
        b2 = jnp.pad(b2, ((0, 0), (0, p)))
        w3 = jnp.pad(w3, ((0, p), (0, p)))
        b3 = jnp.pad(b3, ((0, 0), (0, p)))
        w4 = jnp.pad(w4, ((0, 0), (0, p)))
    w2 = w2.astype(jnp.bfloat16)
    w3 = w3.astype(jnp.bfloat16)
    return (w1, b1, w2, b2, w3, b3, w4, b4)


def dis_kernel(x_ref, w1_ref, b1_ref, w2_ref, b2_ref, w3_ref, b3_ref,
               w4_ref, b4_ref, o_ref, h1_ref, acc_ref):
    k = pl.program_id(1)

    @pl.when(k == 0)
    def _():
        # Layer 1 (K=2): two broadcast FMAs on the VPU (f32), ReLU, cached in
        # bf16 for every streamed hidden-dim tile of this batch block.
        x = x_ref[...]                                   # (block_m, 2)
        w1 = w1_ref[...]                                 # (2, dim)
        h1 = x[:, 0:1] * w1[0:1, :] + x[:, 1:2] * w1[1:2, :] + b1_ref[...]
        h1_ref[...] = jnp.maximum(h1, 0.0).astype(jnp.bfloat16)
        acc_ref[...] = jnp.zeros_like(acc_ref)

    # Layer 2: (block_m, dim) @ (dim, tile_n) bf16 MXU matmul, f32 accumulation.
    h2 = jnp.dot(h1_ref[...], w2_ref[...],
                 preferred_element_type=jnp.float32) + b2_ref[...]
    h2 = jnp.maximum(h2, 0.0).astype(jnp.bfloat16)

    # Layer 3 partial sum over this hidden-dim tile: (block_m, tile_n)@(tile_n, dim).
    acc_ref[...] += jnp.dot(h2, w3_ref[...], preferred_element_type=jnp.float32)

    @pl.when(k == pl.num_programs(1) - 1)
    def _():
        h3 = jnp.maximum(acc_ref[...] + b3_ref[...], 0.0)
        # Layer 4 (out_features=1): contract the (1, dim) weight row with the
        # (block_m, dim) activations on their last dims -> result lands as a
        # lane-dense (1, block_m) row (unmasked vst).
        row = jax.lax.dot_general(
            w4_ref[...], h3,
            dimension_numbers=(((1,), (1,)), ((), ())),
            preferred_element_type=jnp.float32)          # (1, block_m)
        o_ref[...] = (row + b4_ref[0, 0]).astype(o_ref.dtype)


@functools.partial(jax.jit, static_argnames=("block_m",))
def dis_forward(x, params, *, block_m=None):
    """Forward pass of Dis. x: (N, 2) float32. Returns (N,) float32."""
    n, in_dim = x.shape
    assert in_dim == 2, "Dis expects 2-D input points"

    w1, b1, w2, b2, w3, b3, w4, b4 = _prepare_params(params)
    dim = w1.shape[1]                       # lane-aligned hidden dim
    tile_n = _pick_tile_n(dim)

    # Batch tile: fill the MXU M dimension; batch padding is sliced off below.
    if block_m is None:
        block_m = min(1024, max(128, _round_up(n, 128)))
    block_m = _round_up(block_m, 128)

    n_pad = _round_up(n, block_m)
    if n_pad != n:
        x = jnp.pad(x, ((0, n_pad - n), (0, 0)))

    grid_m = n_pad // block_m
    grid_k = dim // tile_n
    grid = (grid_m, grid_k)

    const = pl.Buffered(1)                  # grid-invariant operands: single-buffer

    in_specs = [
        pl.BlockSpec((block_m, in_dim), lambda i, k: (i, 0)),                   # x
        pl.BlockSpec((in_dim, dim), lambda i, k: (0, 0), pipeline_mode=const),  # w1
        pl.BlockSpec((1, dim),      lambda i, k: (0, 0), pipeline_mode=const),  # b1
        pl.BlockSpec((dim, tile_n), lambda i, k: (0, k)),                       # w2 tile (bf16)
        pl.BlockSpec((1, tile_n),   lambda i, k: (0, k)),                       # b2 tile
        pl.BlockSpec((tile_n, dim), lambda i, k: (k, 0)),                       # w3 tile (bf16)
        pl.BlockSpec((1, dim),      lambda i, k: (0, 0), pipeline_mode=const),  # b3
        pl.BlockSpec((1, dim),      lambda i, k: (0, 0), pipeline_mode=const),  # w4
        pl.BlockSpec(memory_space=pltpu.MemorySpace.SMEM),                      # b4 scalar
    ]
    # Lane-dense output: one (1, block_m) row slab per batch tile.
    out_spec = pl.BlockSpec((1, block_m), lambda i, k: (0, i))

    scratch_shapes = [
        pltpu.VMEM((block_m, dim), jnp.bfloat16),   # cached relu(layer1) in bf16
        pltpu.VMEM((block_m, dim), jnp.float32),    # layer-3 f32 accumulator
    ]

    # Batch-aware megacore split: only shard the batch axis when there is more
    # than one batch tile (avoids duplicating weight DMA when weight-BW-bound).
    m_sem = "parallel" if grid_m > 1 else "arbitrary"

    # Advisory roofline hints for XLA's scheduler.
    flops = 2 * n_pad * (2 * dim + 2 * dim * dim + dim)
    bytes_accessed = (4 * n_pad * (in_dim + 1)
                      + 4 * (in_dim * dim + 4 * dim + 1)
                      + 2 * grid_m * 2 * dim * dim)       # bf16 w2/w3 per batch tile
    cost = pl.CostEstimate(flops=flops, transcendentals=0,
                           bytes_accessed=bytes_accessed)

    # VMEM budget derived from the chip (never exceeds physical capacity).
    vmem_cap = _chip_vmem_bytes()
    need = (
        4 * (in_dim * dim + 3 * dim)                       # w1, b1, b3, w4 (single-buffered f32)
        + 2 * (2 * dim * tile_n * 2 + 4 * tile_n)          # streamed bf16 w2/w3 + b2, double-buffered
        + 2 * (block_m * 128 * 4 + 8 * block_m * 4)        # x tile (lane-padded) + output row
        + block_m * dim * (2 + 4)                          # scratch: bf16 h1 + f32 acc
        + 3 * block_m * tile_n * 4 + 2 * block_m * dim * 4 # in-flight intermediates headroom
    )
    vmem_limit = int(min(max(int(need * 1.25), 32 * 1024 * 1024),
                         int(0.9 * vmem_cap)))

    out = pl.pallas_call(
        dis_kernel,
        out_shape=jax.ShapeDtypeStruct((1, n_pad), jnp.float32),
        grid_spec=pltpu.PrefetchScalarGridSpec(
            num_scalar_prefetch=0,
            grid=grid,
            in_specs=in_specs,
            out_specs=out_spec,
            scratch_shapes=scratch_shapes,
        ),
        compiler_params=pltpu.CompilerParams(
            dimension_semantics=(m_sem, "arbitrary"),
            vmem_limit_bytes=vmem_limit),
        cost_estimate=cost,
    )(x, w1, b1, w2, b2, w3, b3, w4, b4)

    return out.reshape(-1)[:n]              # .view(-1) in the torch module


def init_params(key, dim):
    """Deterministic init matching nn.Linear defaults (U[-1/sqrt(fan_in), +]).
    w1..w3 stored as (in, out) so the kernel computes x @ W; w4 stored as the
    torch-native (1, dim) row."""
    ks = jax.random.split(key, 8)

    def linear(kw, kb, fan_in, fan_out, w_shape):
        bound = 1.0 / jnp.sqrt(float(fan_in))
        w = jax.random.uniform(kw, w_shape, jnp.float32, -bound, bound)
        b = jax.random.uniform(kb, (1, fan_out), jnp.float32, -bound, bound)
        return w, b

    w1, b1 = linear(ks[0], ks[1], 2,   dim, (2, dim))
    w2, b2 = linear(ks[2], ks[3], dim, dim, (dim, dim))
    w3, b3 = linear(ks[4], ks[5], dim, dim, (dim, dim))
    w4, b4 = linear(ks[6], ks[7], dim, 1,   (1, dim))
    return (w1, b1, w2, b2, w3, b3, w4, b4)


def dis_reference_f32(x, params):
    w1, b1, w2, b2, w3, b3, w4, b4 = params
    h = jnp.maximum(x @ w1 + b1, 0.0)
    h = jnp.maximum(h @ w2 + b2, 0.0)
    h = jnp.maximum(h @ w3 + b3, 0.0)
    return (h @ w4.T + b4).reshape(-1)


def dis_reference_mixed(x, params):
    """Same precision policy as the kernel (bf16 w2/w3 + activations, f32 acc)."""
    w1, b1, w2, b2, w3, b3, w4, b4 = _prepare_params(params)
    h = jnp.maximum(x @ w1 + b1, 0.0).astype(jnp.bfloat16)
    h = jnp.maximum(jnp.dot(h, w2, preferred_element_type=jnp.float32) + b2,
                    0.0).astype(jnp.bfloat16)
    h = jnp.maximum(jnp.dot(h, w3, preferred_element_type=jnp.float32) + b3, 0.0)
    return (h @ w4.T + b4).reshape(-1)


if __name__ == "__main__":
    key = jax.random.PRNGKey(0)
    k_param, k_x = jax.random.split(key)

    # Deliberately non-aligned small shapes (mirrors the non-aligned module
    # default dim=2000): wrapper pads batch 500 -> 512 and hidden 200 -> 256,
    # both exactly.
    N, DIM = 500, 200
    params = init_params(k_param, DIM)
    x = jax.random.normal(k_x, (N, 2), jnp.float32)

    out = jax.block_until_ready(dis_forward(x, params))
    ref_mixed = dis_reference_mixed(x, params)
    ref_f32 = dis_reference_f32(x, params)

    assert out.shape == (N,)
    assert jnp.allclose(out, ref_mixed, atol=2e-3, rtol=2e-3), \
        "mismatch vs mixed-precision reference"
    assert jnp.allclose(out, ref_f32, atol=5e-2, rtol=5e-2), \
        "mismatch vs f32 reference"

    print("KERNEL_OK")
</pallas_src>

<mosaic_0001>
module attributes {stable_mosaic.version = 11 : i64} {
  func.func @dis_kernel(%arg0: i32, %arg1: i32, %arg2: memref<512x2xf32, #tpu.memory_space<vmem>>, %arg3: memref<2x256xf32, #tpu.memory_space<vmem>>, %arg4: memref<1x256xf32, #tpu.memory_space<vmem>>, %arg5: memref<256x256xbf16, #tpu.memory_space<vmem>>, %arg6: memref<1x256xf32, #tpu.memory_space<vmem>>, %arg7: memref<256x256xbf16, #tpu.memory_space<vmem>>, %arg8: memref<1x256xf32, #tpu.memory_space<vmem>>, %arg9: memref<1x256xf32, #tpu.memory_space<vmem>>, %arg10: memref<1x1xf32, #tpu.memory_space<smem>>, %arg11: memref<1x512xf32, #tpu.memory_space<vmem>>, %arg12: memref<512x256xbf16, #tpu.memory_space<vmem>>, %arg13: memref<512x256xf32, #tpu.memory_space<vmem>>) attributes {dimension_semantics = [#tpu.dimension_semantics<arbitrary>, #tpu.dimension_semantics<arbitrary>], iteration_bounds = array<i64: 1, 1>, scalar_prefetch = 0 : i64, scratch_operands = 2 : i64, tpu.core_type = #tpu.core_type<tc>, window_params = [{transform_indices = @transform_0, window_bounds = array<i64: 512, 2>}, {pipeline_mode = #tpu.pipeline_mode<synchronous>, transform_indices = @transform_1, window_bounds = array<i64: 2, 256>}, {pipeline_mode = #tpu.pipeline_mode<synchronous>, transform_indices = @transform_2, window_bounds = array<i64: 1, 256>}, {transform_indices = @transform_3, window_bounds = array<i64: 256, 256>}, {transform_indices = @transform_4, window_bounds = array<i64: 1, 256>}, {transform_indices = @transform_5, window_bounds = array<i64: 256, 256>}, {pipeline_mode = #tpu.pipeline_mode<synchronous>, transform_indices = @transform_6, window_bounds = array<i64: 1, 256>}, {pipeline_mode = #tpu.pipeline_mode<synchronous>, transform_indices = @transform_7, window_bounds = array<i64: 1, 256>}, {transform_indices = @transform_8, window_bounds = array<i64: 1, 1>}, {transform_indices = @transform_9, window_bounds = array<i64: 1, 512>}]} {
    %c0_i32 = arith.constant 0 : i32
    %0 = arith.cmpi eq, %arg1, %c0_i32 : i32
    %1 = arith.extui %0 : i1 to i32
    %c0_i32_0 = arith.constant 0 : i32
    %2 = arith.cmpi ne, %1, %c0_i32_0 : i32
    scf.if %2 {
      %c0_16 = arith.constant 0 : index
      %c0_17 = arith.constant 0 : index
      %20 = vector.load %arg2[%c0_16, %c0_17] : memref<512x2xf32, #tpu.memory_space<vmem>>, vector<512x2xf32>
      %c0_18 = arith.constant 0 : index
      %c0_19 = arith.constant 0 : index
      %21 = vector.load %arg3[%c0_18, %c0_19] : memref<2x256xf32, #tpu.memory_space<vmem>>, vector<2x256xf32>
      %22 = vector.extract_strided_slice %20 {offsets = [0, 0], sizes = [512, 1], strides = [1, 1]} : vector<512x2xf32> to vector<512x1xf32>
      %23 = vector.extract_strided_slice %21 {offsets = [0, 0], sizes = [1, 256], strides = [1, 1]} : vector<2x256xf32> to vector<1x256xf32>
      %24 = vector.broadcast %22 : vector<512x1xf32> to vector<512x256xf32>
      %25 = vector.broadcast %23 : vector<1x256xf32> to vector<512x256xf32>
      %26 = arith.mulf %24, %25 : vector<512x256xf32>
      %27 = vector.extract_strided_slice %20 {offsets = [0, 1], sizes = [512, 1], strides = [1, 1]} : vector<512x2xf32> to vector<512x1xf32>
      %28 = vector.extract_strided_slice %21 {offsets = [1, 0], sizes = [1, 256], strides = [1, 1]} : vector<2x256xf32> to vector<1x256xf32>
      %29 = vector.broadcast %27 : vector<512x1xf32> to vector<512x256xf32>
      %30 = vector.broadcast %28 : vector<1x256xf32> to vector<512x256xf32>
      %31 = arith.mulf %29, %30 : vector<512x256xf32>
      %32 = arith.addf %26, %31 : vector<512x256xf32>
      %c0_20 = arith.constant 0 : index
      %c0_21 = arith.constant 0 : index
      %33 = vector.load %arg4[%c0_20, %c0_21] : memref<1x256xf32, #tpu.memory_space<vmem>>, vector<1x256xf32>
      %34 = vector.broadcast %33 : vector<1x256xf32> to vector<512x256xf32>
      %35 = arith.addf %32, %34 : vector<512x256xf32>
      %cst_22 = arith.constant 0.000000e+00 : f32
      %36 = vector.broadcast %cst_22 : f32 to vector<512x256xf32>
      %37 = arith.maximumf %35, %36 : vector<512x256xf32>
      %38 = arith.truncf %37 : vector<512x256xf32> to vector<512x256xbf16>
      %c0_23 = arith.constant 0 : index
      %c0_24 = arith.constant 0 : index
      %39 = vector.load %arg12[%c0_23, %c0_24] : memref<512x256xbf16, #tpu.memory_space<vmem>>, vector<512x256xbf16>
      tpu.vector_store %arg12[%c0_23, %c0_24], %38 {strides = array<i32>} : memref<512x256xbf16, #tpu.memory_space<vmem>>, vector<512x256xbf16>,
      %cst_25 = arith.constant 0.000000e+00 : f32
      %40 = vector.broadcast %cst_25 : f32 to vector<512x256xf32>
      %c0_26 = arith.constant 0 : index
      %c0_27 = arith.constant 0 : index
      %41 = vector.load %arg13[%c0_26, %c0_27] : memref<512x256xf32, #tpu.memory_space<vmem>>, vector<512x256xf32>
      tpu.vector_store %arg13[%c0_26, %c0_27], %40 {strides = array<i32>} : memref<512x256xf32, #tpu.memory_space<vmem>>, vector<512x256xf32>,
    } else {
    }
    %c0 = arith.constant 0 : index
    %c0_1 = arith.constant 0 : index
    %3 = vector.load %arg12[%c0, %c0_1] : memref<512x256xbf16, #tpu.memory_space<vmem>>, vector<512x256xbf16>
    %c0_2 = arith.constant 0 : index
    %c0_3 = arith.constant 0 : index
    %4 = vector.load %arg5[%c0_2, %c0_3] : memref<256x256xbf16, #tpu.memory_space<vmem>>, vector<256x256xbf16>
    %cst = arith.constant dense<0.000000e+00> : vector<512x256xf32>
    %5 = tpu.matmul %3, %4, %cst {dimension_numbers = #tpu.dot_dimension_numbers<[1], [0], [0], [1], [0, 0, 1, 1], [], []>} : vector<512x256xbf16>, vector<256x256xbf16>, vector<512x256xf32> -> vector<512x256xf32>
    %c0_4 = arith.constant 0 : index
    %c0_5 = arith.constant 0 : index
    %6 = vector.load %arg6[%c0_4, %c0_5] : memref<1x256xf32, #tpu.memory_space<vmem>>, vector<1x256xf32>
    %7 = vector.broadcast %6 : vector<1x256xf32> to vector<512x256xf32>
    %8 = arith.addf %5, %7 : vector<512x256xf32>
    %cst_6 = arith.constant 0.000000e+00 : f32
    %9 = vector.broadcast %cst_6 : f32 to vector<512x256xf32>
    %10 = arith.maximumf %8, %9 : vector<512x256xf32>
    %11 = arith.truncf %10 : vector<512x256xf32> to vector<512x256xbf16>
    %c0_7 = arith.constant 0 : index
    %c0_8 = arith.constant 0 : index
    %12 = vector.load %arg13[%c0_7, %c0_8] : memref<512x256xf32, #tpu.memory_space<vmem>>, vector<512x256xf32>
    %c0_9 = arith.constant 0 : index
    %c0_10 = arith.constant 0 : index
    %13 = vector.load %arg7[%c0_9, %c0_10] : memref<256x256xbf16, #tpu.memory_space<vmem>>, vector<256x256xbf16>
    %cst_11 = arith.constant dense<0.000000e+00> : vector<512x256xf32>
    %14 = tpu.matmul %11, %13, %cst_11 {dimension_numbers = #tpu.dot_dimension_numbers<[1], [0], [0], [1], [0, 0, 1, 1], [], []>} : vector<512x256xbf16>, vector<256x256xbf16>, vector<512x256xf32> -> vector<512x256xf32>
    %15 = arith.addf %12, %14 : vector<512x256xf32>
    %c0_12 = arith.constant 0 : index
    %c0_13 = arith.constant 0 : index
    %16 = vector.load %arg13[%c0_12, %c0_13] : memref<512x256xf32, #tpu.memory_space<vmem>>, vector<512x256xf32>
    tpu.vector_store %arg13[%c0_12, %c0_13], %15 {strides = array<i32>} : memref<512x256xf32, #tpu.memory_space<vmem>>, vector<512x256xf32>,
    %c0_i32_14 = arith.constant 0 : i32
    %17 = arith.cmpi eq, %arg1, %c0_i32_14 : i32
    %18 = arith.extui %17 : i1 to i32
    %c0_i32_15 = arith.constant 0 : i32
    %19 = arith.cmpi ne, %18, %c0_i32_15 : i32
    scf.if %19 {
      %c0_16 = arith.constant 0 : index
      %c0_17 = arith.constant 0 : index
      %20 = vector.load %arg13[%c0_16, %c0_17] : memref<512x256xf32, #tpu.memory_space<vmem>>, vector<512x256xf32>
      %c0_18 = arith.constant 0 : index
      %c0_19 = arith.constant 0 : index
      %21 = vector.load %arg8[%c0_18, %c0_19] : memref<1x256xf32, #tpu.memory_space<vmem>>, vector<1x256xf32>
      %22 = vector.broadcast %21 : vector<1x256xf32> to vector<512x256xf32>
      %23 = arith.addf %20, %22 : vector<512x256xf32>
      %cst_20 = arith.constant 0.000000e+00 : f32
      %24 = vector.broadcast %cst_20 : f32 to vector<512x256xf32>
      %25 = arith.maximumf %23, %24 : vector<512x256xf32>
      %c0_21 = arith.constant 0 : index
      %c0_22 = arith.constant 0 : index
      %26 = vector.load %arg9[%c0_21, %c0_22] : memref<1x256xf32, #tpu.memory_space<vmem>>, vector<1x256xf32>
      %cst_23 = arith.constant dense<0.000000e+00> : vector<1x512xf32>
      %27 = tpu.matmul %26, %25, %cst_23 {dimension_numbers = #tpu.dot_dimension_numbers<[1], [1], [0], [0], [0, 0, 1, 0], [], []>} : vector<1x256xf32>, vector<512x256xf32>, vector<1x512xf32> -> vector<1x512xf32>
      %c0_24 = arith.constant 0 : index
      %c0_25 = arith.constant 0 : index
      %28 = memref.load %arg10[%c0_24, %c0_25] : memref<1x1xf32, #tpu.memory_space<smem>>
      %29 = vector.broadcast %28 : f32 to vector<1x512xf32>
      %30 = arith.addf %27, %29 : vector<1x512xf32>
      %c0_26 = arith.constant 0 : index
      %c0_27 = arith.constant 0 : index
      %31 = vector.load %arg11[%c0_26, %c0_27] : memref<1x512xf32, #tpu.memory_space<vmem>>, vector<1x512xf32>
      tpu.vector_store %arg11[%c0_26, %c0_27], %30 {strides = array<i32>} : memref<1x512xf32, #tpu.memory_space<vmem>>, vector<1x512xf32>,
    } else {
    }
    return
  }
  func.func @transform_0(%arg0: i32, %arg1: i32) -> (i32, i32) {
    %c0_i32 = arith.constant 0 : i32
    %c0_i32_0 = arith.constant 0 : i32
    return %arg0, %c0_i32 : i32, i32
  }
  func.func @transform_1(%arg0: i32, %arg1: i32) -> (i32, i32) {
    %c0_i32 = arith.constant 0 : i32
    %c0_i32_0 = arith.constant 0 : i32
    %c0_i32_1 = arith.constant 0 : i32
    return %c0_i32, %c0_i32_0 : i32, i32
  }
  func.func @transform_2(%arg0: i32, %arg1: i32) -> (i32, i32) {
    %c0_i32 = arith.constant 0 : i32
    %c0_i32_0 = arith.constant 0 : i32
    %c0_i32_1 = arith.constant 0 : i32
    return %c0_i32, %c0_i32_0 : i32, i32
  }
  func.func @transform_3(%arg0: i32, %arg1: i32) -> (i32, i32) {
    %c0_i32 = arith.constant 0 : i32
    %c0_i32_0 = arith.constant 0 : i32
    return %c0_i32, %arg1 : i32, i32
  }
  func.func @transform_4(%arg0: i32, %arg1: i32) -> (i32, i32) {
    %c0_i32 = arith.constant 0 : i32
    %c0_i32_0 = arith.constant 0 : i32
    return %c0_i32, %arg1 : i32, i32
  }
  func.func @transform_5(%arg0: i32, %arg1: i32) -> (i32, i32) {
    %c0_i32 = arith.constant 0 : i32
    %c0_i32_0 = arith.constant 0 : i32
    return %arg1, %c0_i32 : i32, i32
  }
  func.func @transform_6(%arg0: i32, %arg1: i32) -> (i32, i32) {
    %c0_i32 = arith.constant 0 : i32
    %c0_i32_0 = arith.constant 0 : i32
    %c0_i32_1 = arith.constant 0 : i32
    return %c0_i32, %c0_i32_0 : i32, i32
  }
  func.func @transform_7(%arg0: i32, %arg1: i32) -> (i32, i32) {
    %c0_i32 = arith.constant 0 : i32
    %c0_i32_0 = arith.constant 0 : i32
    %c0_i32_1 = arith.constant 0 : i32
    return %c0_i32, %c0_i32_0 : i32, i32
  }
  func.func @transform_8(%arg0: i32, %arg1: i32) -> (i32, i32) {
    %c0_i32 = arith.constant 0 : i32
    %c0_i32_0 = arith.constant 0 : i32
    %c0_i32_1 = arith.constant 0 : i32
    return %c0_i32, %c0_i32_0 : i32, i32
  }
  func.func @transform_9(%arg0: i32, %arg1: i32) -> (i32, i32) {
    %c0_i32 = arith.constant 0 : i32
    %c0_i32_0 = arith.constant 0 : i32
    return %c0_i32, %arg0 : i32, i32
  }
}

</mosaic_0001>

<llo_original>
// kernel: dis_forward.1
$region0: #{dis_forward.1}
  #allocation0 [shape = 'u32[]', space=smem, size = 0x4, offset = 0x4, fixed_abs, tag = 'smem constant byte address 0x4 - core index']
  #allocation1 [shape = 'u32[144,128]{1,0:T(1,128)}', space=vmem, size = 0x12000, scoped, tag = 'internal scratch']
  #allocation2 [shape = 'bf16[512,256]{1,0:T(16,128)(2,1)}', space=vmem, size = 0x40000, scoped, tag = 'scratch operand']
  #allocation3 [shape = 'f32[512,256]{1,0:T(8,128)}', space=vmem, size = 0x80000, scoped, tag = 'scratch operand']
  #allocation4 [shape = 'f32[1,1]{1,0:T(1,128)S(6)}', space=smem, size = 0x200, scoped, tag = 'scoped memory for dis_forward.1']
  %s0 = inlined_call_operand.vmem [shape: f32[512,2], index: 0, kind: input, shape index: {}]
  %s1 = inlined_call_operand.vmem [shape: f32[2,256], index: 1, kind: input, shape index: {}]
  %s2 = inlined_call_operand.vmem [shape: f32[1,256], index: 2, kind: input, shape index: {}]
  %s3 = inlined_call_operand.vmem [shape: bf16[256,256], index: 3, kind: input, shape index: {}]
  %s4 = inlined_call_operand.vmem [shape: f32[1,256], index: 4, kind: input, shape index: {}]
  %s5 = inlined_call_operand.vmem [shape: bf16[256,256], index: 5, kind: input, shape index: {}]
  %s6 = inlined_call_operand.vmem [shape: f32[1,256], index: 6, kind: input, shape index: {}]
  %s7 = inlined_call_operand.vmem [shape: f32[1,256], index: 7, kind: input, shape index: {}]
  %s8 = inlined_call_operand.<no memory space> [shape: f32[1,1], index: 8, kind: input, shape index: {}]
  %s9 = inlined_call_operand.hbm [shape: f32[1,512], index: 9, kind: output, shape index: {}]
  %s10 = sld [smem:[#allocation0]]
  $region54: #{dis_forward.1} parent=0
    _
  %s12 = ssub.s32 1, %s10
  %s13 = scalar_select 0, %s12, %s10
  %14 = sst [smem:[#allocation4]] %s8
  $region1: #{dis_forward.1} parent=0
    #allocation5 [shape = 'u8[2048]{0}', space=vmem, size = 0x800, scoped, tag = 'output window, operand 0, single buffered']
    #allocation6 [shape = 's32[1]{0}', space=sflag, size = 0x4, scoped, tag = 'scoped memory for dis_forward.1']
    %15 = vsyncpa [#allocation6], 0
    // Predicated region
    $region2: #{dis_forward.1} parent=1 // pred_check
      _
    $region3: #{dis_forward.1} parent=1 // pred_check_branch
      %17 = sbr.rel (0) target = $region5
    $region4: #{dis_forward.1} parent=1 // pred_region
      _
    $region5: #{dis_forward.1} parent=1 // pred_fallthru
      _
    // Predicated region
    $region6: #{dis_forward.1} parent=1 // pred_check
      _
    $region7: #{dis_forward.1} parent=1 // pred_check_branch
      %19 = sbr.rel (0) target = $region9
    $region8: #{dis_forward.1} parent=1 // pred_region
      _
    $region9: #{dis_forward.1} parent=1 // pred_fallthru
      _
    // Predicated region
    $region10: #{dis_forward.1} parent=1 // pred_check
      _
    $region11: #{dis_forward.1} parent=1 // pred_check_branch
      %21 = sbr.rel (0) target = $region13
    $region12: #{dis_forward.1} parent=1 // pred_region
      _
    $region13: #{dis_forward.1} parent=1 // pred_fallthru
      _
    // Predicated region
    $region14: #{dis_forward.1} parent=1 // pred_check
      _
    $region15: #{dis_forward.1} parent=1 // pred_check_branch
      %23 = sbr.rel (0) target = $region17
    $region16: #{dis_forward.1} parent=1 // pred_region
      _
    $region17: #{dis_forward.1} parent=1 // pred_fallthru
      _
    // Predicated region
    $region18: #{dis_forward.1} parent=1 // pred_check
      _
    $region19: #{dis_forward.1} parent=1 // pred_check_branch
      %25 = sbr.rel (0) target = $region21
    $region20: #{dis_forward.1} parent=1 // pred_region
      _
    $region21: #{dis_forward.1} parent=1 // pred_fallthru
      _
    // Predicated region
    $region22: #{dis_forward.1} parent=1 // pred_check
      _
    $region23: #{dis_forward.1} parent=1 // pred_check_branch
      %27 = sbr.rel (0) target = $region25
    $region24: #{dis_forward.1} parent=1 // pred_region
      _
    $region25: #{dis_forward.1} parent=1 // pred_fallthru
      _
    // Predicated region
    $region26: #{dis_forward.1} parent=1 // pred_check
      _
    $region27: #{dis_forward.1} parent=1 // pred_check_branch
      %29 = sbr.rel (0) target = $region29
    $region28: #{dis_forward.1} parent=1 // pred_region
      _
    $region29: #{dis_forward.1} parent=1 // pred_fallthru
      _
    // Predicated region
    $region30: #{dis_forward.1} parent=1 // pred_check
      _
    $region31: #{dis_forward.1} parent=1 // pred_check_branch
      %31 = sbr.rel (0) target = $region33
    $region32: #{dis_forward.1} parent=1 // pred_region
      _
    $region33: #{dis_forward.1} parent=1 // pred_fallthru
      _
    // Predicated region
    $region34: #{dis_forward.1} parent=1 // pred_check
      _
    $region35: #{dis_forward.1} parent=1 // pred_check_branch
      %33 = sbr.rel (0) target = $region37
    $region36: #{dis_forward.1} parent=1 // pred_region
      _
    $region37: #{dis_forward.1} parent=1 // pred_fallthru
      _
    %p34 = scmp.eq.s32.totalorder 0, 0
    // Predicated region
    $region38: #{dis_forward.1} parent=1 // pred_check
      %p35 = pneg %p34
    $region39: #{dis_forward.1} parent=1 // pred_check_branch
      %37 = sbr.rel (%p35) target = $region41
    $region40: #{dis_forward.1} parent=1 // pred_region
      %v38 = vld [vmem:[%s0] sm:$0xff]
      %v39 = vld [vmem:[%s0 + $0x8] sm:$0xff]
      %v40 = vld [vmem:[%s0 + $0x10] sm:$0xff]
      %v41 = vld [vmem:[%s0 + $0x18] sm:$0xff]
      %v42 = vld [vmem:[%s0 + $0x20] sm:$0xff]
      %v43 = vld [vmem:[%s0 + $0x28] sm:$0xff]
      %v44 = vld [vmem:[%s0 + $0x30] sm:$0xff]
      %v45 = vld [vmem:[%s0 + $0x38] sm:$0xff]
      %v46 = vld [vmem:[%s0 + $0x40] sm:$0xff]
      %v47 = vld [vmem:[%s0 + $0x48] sm:$0xff]
      %v48 = vld [vmem:[%s0 + $0x50] sm:$0xff]
      %v49 = vld [vmem:[%s0 + $0x58] sm:$0xff]
      %v50 = vld [vmem:[%s0 + $0x60] sm:$0xff]
      %v51 = vld [vmem:[%s0 + $0x68] sm:$0xff]
      %v52 = vld [vmem:[%s0 + $0x70] sm:$0xff]
      %v53 = vld [vmem:[%s0 + $0x78] sm:$0xff]
      %v54 = vld [vmem:[%s0 + $0x80] sm:$0xff]
      %v55 = vld [vmem:[%s0 + $0x88] sm:$0xff]
      %v56 = vld [vmem:[%s0 + $0x90] sm:$0xff]
      %v57 = vld [vmem:[%s0 + $0x98] sm:$0xff]
      %v58 = vld [vmem:[%s0 + $0xa0] sm:$0xff]
      %v59 = vld [vmem:[%s0 + $0xa8] sm:$0xff]
      %v60 = vld [vmem:[%s0 + $0xb0] sm:$0xff]
      %v61 = vld [vmem:[%s0 + $0xb8] sm:$0xff]
      %v62 = vld [vmem:[%s0 + $0xc0] sm:$0xff]
      %v63 = vld [vmem:[%s0 + $0xc8] sm:$0xff]
      %v64 = vld [vmem:[%s0 + $0xd0] sm:$0xff]
      %v65 = vld [vmem:[%s0 + $0xd8] sm:$0xff]
      %v66 = vld [vmem:[%s0 + $0xe0] sm:$0xff]
      %v67 = vld [vmem:[%s0 + $0xe8] sm:$0xff]
      %v68 = vld [vmem:[%s0 + $0xf0] sm:$0xff]
      %v69 = vld [vmem:[%s0 + $0xf8] sm:$0xff]
      %v70 = vld [vmem:[%s0 + $0x100] sm:$0xff]
      %v71 = vld [vmem:[%s0 + $0x108] sm:$0xff]
      %v72 = vld [vmem:[%s0 + $0x110] sm:$0xff]
      %v73 = vld [vmem:[%s0 + $0x118] sm:$0xff]
      %v74 = vld [vmem:[%s0 + $0x120] sm:$0xff]
      %v75 = vld [vmem:[%s0 + $0x128] sm:$0xff]
      %v76 = vld [vmem:[%s0 + $0x130] sm:$0xff]
      %v77 = vld [vmem:[%s0 + $0x138] sm:$0xff]
      %v78 = vld [vmem:[%s0 + $0x140] sm:$0xff]
      %v79 = vld [vmem:[%s0 + $0x148] sm:$0xff]
      %v80 = vld [vmem:[%s0 + $0x150] sm:$0xff]
      %v81 = vld [vmem:[%s0 + $0x158] sm:$0xff]
      %v82 = vld [vmem:[%s0 + $0x160] sm:$0xff]
      %v83 = vld [vmem:[%s0 + $0x168] sm:$0xff]
      %v84 = vld [vmem:[%s0 + $0x170] sm:$0xff]
      %v85 = vld [vmem:[%s0 + $0x178] sm:$0xff]
      %v86 = vld [vmem:[%s0 + $0x180] sm:$0xff]
      %v87 = vld [vmem:[%s0 + $0x188] sm:$0xff]
      %v88 = vld [vmem:[%s0 + $0x190] sm:$0xff]
      %v89 = vld [vmem:[%s0 + $0x198] sm:$0xff]
      %v90 = vld [vmem:[%s0 + $0x1a0] sm:$0xff]
      %v91 = vld [vmem:[%s0 + $0x1a8] sm:$0xff]
      %v92 = vld [vmem:[%s0 + $0x1b0] sm:$0xff]
      %v93 = vld [vmem:[%s0 + $0x1b8] sm:$0xff]
      %v94 = vld [vmem:[%s0 + $0x1c0] sm:$0xff]
      %v95 = vld [vmem:[%s0 + $0x1c8] sm:$0xff]
      %v96 = vld [vmem:[%s0 + $0x1d0] sm:$0xff]
      %v97 = vld [vmem:[%s0 + $0x1d8] sm:$0xff]
      %v98 = vld [vmem:[%s0 + $0x1e0] sm:$0xff]
      %v99 = vld [vmem:[%s0 + $0x1e8] sm:$0xff]
      %v100 = vld [vmem:[%s0 + $0x1f0] sm:$0xff]
      %v101 = vld [vmem:[%s0 + $0x1f8] sm:$0xff]
      %v102 = vld [vmem:[%s1] sm:$0xf]
      %104 = vset.pattern.permute.xlu0 0
      %105 = vperm.xlu0 %104, %v38
      %v106 = vpop.permute.xlu0 %105
      %109 = vset.pattern.permute.xlu0 0
      %110 = vperm.xlu0 %109, %v39
      %v111 = vpop.permute.xlu0 %110
      %114 = vset.pattern.permute.xlu0 0
      %115 = vperm.xlu0 %114, %v40
      %v116 = vpop.permute.xlu0 %115
      %119 = vset.pattern.permute.xlu0 0
      %120 = vperm.xlu0 %119, %v41
      %v121 = vpop.permute.xlu0 %120
      %124 = vset.pattern.permute.xlu0 0
      %125 = vperm.xlu0 %124, %v42
      %v126 = vpop.permute.xlu0 %125
      %129 = vset.pattern.permute.xlu0 0
      %130 = vperm.xlu0 %129, %v43
      %v131 = vpop.permute.xlu0 %130
      %134 = vset.pattern.permute.xlu0 0
      %135 = vperm.xlu0 %134, %v44
      %v136 = vpop.permute.xlu0 %135
      %139 = vset.pattern.permute.xlu0 0
      %140 = vperm.xlu0 %139, %v45
      %v141 = vpop.permute.xlu0 %140
      %144 = vset.pattern.permute.xlu0 0
      %145 = vperm.xlu0 %144, %v46
      %v146 = vpop.permute.xlu0 %145
      %149 = vset.pattern.permute.xlu0 0
      %150 = vperm.xlu0 %149, %v47
      %v151 = vpop.permute.xlu0 %150
      %154 = vset.pattern.permute.xlu0 0
      %155 = vperm.xlu0 %154, %v48
      %v156 = vpop.permute.xlu0 %155
      %159 = vset.pattern.permute.xlu0 0
      %160 = vperm.xlu0 %159, %v49
      %v161 = vpop.permute.xlu0 %160
      %164 = vset.pattern.permute.xlu0 0
      %165 = vperm.xlu0 %164, %v50
      %v166 = vpop.permute.xlu0 %165
      %169 = vset.pattern.permute.xlu0 0
      %170 = vperm.xlu0 %169, %v51
      %v171 = vpop.permute.xlu0 %170
      %174 = vset.pattern.permute.xlu0 0
      %175 = vperm.xlu0 %174, %v52
      %v176 = vpop.permute.xlu0 %175
      %179 = vset.pattern.permute.xlu0 0
      %180 = vperm.xlu0 %179, %v53
      %v181 = vpop.permute.xlu0 %180
      %184 = vset.pattern.permute.xlu0 0
      %185 = vperm.xlu0 %184, %v54
      %v186 = vpop.permute.xlu0 %185
      %189 = vset.pattern.permute.xlu0 0
      %190 = vperm.xlu0 %189, %v55
      %v191 = vpop.permute.xlu0 %190
      %194 = vset.pattern.permute.xlu0 0
      %195 = vperm.xlu0 %194, %v56
      %v196 = vpop.permute.xlu0 %195
      %199 = vset.pattern.permute.xlu0 0
      %200 = vperm.xlu0 %199, %v57
      %v201 = vpop.permute.xlu0 %200
      %204 = vset.pattern.permute.xlu0 0
      %205 = vperm.xlu0 %204, %v58
      %v206 = vpop.permute.xlu0 %205
      %209 = vset.pattern.permute.xlu0 0
      %210 = vperm.xlu0 %209, %v59
      %v211 = vpop.permute.xlu0 %210
      %214 = vset.pattern.permute.xlu0 0
      %215 = vperm.xlu0 %214, %v60
      %v216 = vpop.permute.xlu0 %215
      %219 = vset.pattern.permute.xlu0 0
      %220 = vperm.xlu0 %219, %v61
      %v221 = vpop.permute.xlu0 %220
      %224 = vset.pattern.permute.xlu0 0
      %225 = vperm.xlu0 %224, %v62
      %v226 = vpop.permute.xlu0 %225
      %229 = vset.pattern.permute.xlu0 0
      %230 = vperm.xlu0 %229, %v63
      %v231 = vpop.permute.xlu0 %230
      %234 = vset.pattern.permute.xlu0 0
      %235 = vperm.xlu0 %234, %v64
      %v236 = vpop.permute.xlu0 %235
      %239 = vset.pattern.permute.xlu0 0
      %240 = vperm.xlu0 %239, %v65
      %v241 = vpop.permute.xlu0 %240
      %244 = vset.pattern.permute.xlu0 0
      %245 = vperm.xlu0 %244, %v66
      %v246 = vpop.permute.xlu0 %245
      %249 = vset.pattern.permute.xlu0 0
      %250 = vperm.xlu0 %249, %v67
      %v251 = vpop.permute.xlu0 %250
      %254 = vset.pattern.permute.xlu0 0
      %255 = vperm.xlu0 %254, %v68
      %v256 = vpop.permute.xlu0 %255
      %259 = vset.pattern.permute.xlu0 0
      %260 = vperm.xlu0 %259, %v69
      %v261 = vpop.permute.xlu0 %260
      %264 = vset.pattern.permute.xlu0 0
      %265 = vperm.xlu0 %264, %v70
      %v266 = vpop.permute.xlu0 %265
      %269 = vset.pattern.permute.xlu0 0
      %270 = vperm.xlu0 %269, %v71
      %v271 = vpop.permute.xlu0 %270
      %274 = vset.pattern.permute.xlu0 0
      %275 = vperm.xlu0 %274, %v72
      %v276 = vpop.permute.xlu0 %275
      %279 = vset.pattern.permute.xlu0 0
      %280 = vperm.xlu0 %279, %v73
      %v281 = vpop.permute.xlu0 %280
      %284 = vset.pattern.permute.xlu0 0
      %285 = vperm.xlu0 %284, %v74
      %v286 = vpop.permute.xlu0 %285
      %289 = vset.pattern.permute.xlu0 0
      %290 = vperm.xlu0 %289, %v75
      %v291 = vpop.permute.xlu0 %290
      %294 = vset.pattern.permute.xlu0 0
      %295 = vperm.xlu0 %294, %v76
      %v296 = vpop.permute.xlu0 %295
      %299 = vset.pattern.permute.xlu0 0
      %300 = vperm.xlu0 %299, %v77
      %v301 = vpop.permute.xlu0 %300
      %304 = vset.pattern.permute.xlu0 0
      %305 = vperm.xlu0 %304, %v78
      %v306 = vpop.permute.xlu0 %305
      %309 = vset.pattern.permute.xlu0 0
      %310 = vperm.xlu0 %309, %v79
      %v311 = vpop.permute.xlu0 %310
      %314 = vset.pattern.permute.xlu0 0
      %315 = vperm.xlu0 %314, %v80
      %v316 = vpop.permute.xlu0 %315
      %319 = vset.pattern.permute.xlu0 0
      %320 = vperm.xlu0 %319, %v81
      %v321 = vpop.permute.xlu0 %320
      %324 = vset.pattern.permute.xlu0 0
      %325 = vperm.xlu0 %324, %v82
      %v326 = vpop.permute.xlu0 %325
      %329 = vset.pattern.permute.xlu0 0
      %330 = vperm.xlu0 %329, %v83
      %v331 = vpop.permute.xlu0 %330
      %334 = vset.pattern.permute.xlu0 0
      %335 = vperm.xlu0 %334, %v84
      %v336 = vpop.permute.xlu0 %335
      %339 = vset.pattern.permute.xlu0 0
      %340 = vperm.xlu0 %339, %v85
      %v341 = vpop.permute.xlu0 %340
      %344 = vset.pattern.permute.xlu0 0
      %345 = vperm.xlu0 %344, %v86
      %v346 = vpop.permute.xlu0 %345
      %349 = vset.pattern.permute.xlu0 0
      %350 = vperm.xlu0 %349, %v87
      %v351 = vpop.permute.xlu0 %350
      %354 = vset.pattern.permute.xlu0 0
      %355 = vperm.xlu0 %354, %v88
      %v356 = vpop.permute.xlu0 %355
      %359 = vset.pattern.permute.xlu0 0
      %360 = vperm.xlu0 %359, %v89
      %v361 = vpop.permute.xlu0 %360
      %364 = vset.pattern.permute.xlu0 0
      %365 = vperm.xlu0 %364, %v90
      %v366 = vpop.permute.xlu0 %365
      %369 = vset.pattern.permute.xlu0 0
      %370 = vperm.xlu0 %369, %v91
      %v371 = vpop.permute.xlu0 %370
      %374 = vset.pattern.permute.xlu0 0
      %375 = vperm.xlu0 %374, %v92
      %v376 = vpop.permute.xlu0 %375
      %379 = vset.pattern.permute.xlu0 0
      %380 = vperm.xlu0 %379, %v93
      %v381 = vpop.permute.xlu0 %380
      %384 = vset.pattern.permute.xlu0 0
      %385 = vperm.xlu0 %384, %v94
      %v386 = vpop.permute.xlu0 %385
      %389 = vset.pattern.permute.xlu0 0
      %390 = vperm.xlu0 %389, %v95
      %v391 = vpop.permute.xlu0 %390
      %394 = vset.pattern.permute.xlu0 0
      %395 = vperm.xlu0 %394, %v96
      %v396 = vpop.permute.xlu0 %395
      %399 = vset.pattern.permute.xlu0 0
      %400 = vperm.xlu0 %399, %v97
      %v401 = vpop.permute.xlu0 %400
      %404 = vset.pattern.permute.xlu0 0
      %405 = vperm.xlu0 %404, %v98
      %v406 = vpop.permute.xlu0 %405
      %409 = vset.pattern.permute.xlu0 0
      %410 = vperm.xlu0 %409, %v99
      %v411 = vpop.permute.xlu0 %410
      %414 = vset.pattern.permute.xlu0 0
      %415 = vperm.xlu0 %414, %v100
      %v416 = vpop.permute.xlu0 %415
      %419 = vset.pattern.permute.xlu0 0
      %420 = vperm.xlu0 %419, %v101
      %v421 = vpop.permute.xlu0 %420
      %v424 = vlaneseq
      %v425 = vshrl.u32 %v424, 7
      %v426 = vsub.s32 0, %v425
      %v427 = vrot.slane %v102, %v426
      %v428 = vlaneseq
      %v429 = vshrl.u32 %v428, 7
      %v430 = vsub.s32 2, %v429
      %v431 = vrot.slane %v102, %v430
      %v434 = vlaneseq
      %v435 = vshrl.u32 %v434, 7
      %v436 = vsub.s32 0, %v435
      %v437 = vrot.slane %v427, %v436
      %v438 = vlaneseq
      %v439 = vshrl.u32 %v438, 7
      %v440 = vsub.s32 0, %v439
      %v441 = vrot.slane %v431, %v440
      %v442 = vmul.f32 %v106, %v437
      %v443 = vmul.f32 %v106, %v441
      %v444 = vmul.f32 %v111, %v437
      %v445 = vmul.f32 %v111, %v441
      %v446 = vmul.f32 %v116, %v437
      %v447 = vmul.f32 %v116, %v441
      %v448 = vmul.f32 %v121, %v437
      %v449 = vmul.f32 %v121, %v441
      %v450 = vmul.f32 %v126, %v437
      %v451 = vmul.f32 %v126, %v441
      %v452 = vmul.f32 %v131, %v437
      %v453 = vmul.f32 %v131, %v441
      %v454 = vmul.f32 %v136, %v437
      %v455 = vmul.f32 %v136, %v441
      %v456 = vmul.f32 %v141, %v437
      %v457 = vmul.f32 %v141, %v441
      %v458 = vmul.f32 %v146, %v437
      %v459 = vmul.f32 %v146, %v441
      %v460 = vmul.f32 %v151, %v437
      %v461 = vmul.f32 %v151, %v441
      %v462 = vmul.f32 %v156, %v437
      %v463 = vmul.f32 %v156, %v441
      %v464 = vmul.f32 %v161, %v437
      %v465 = vmul.f32 %v161, %v441
      %v466 = vmul.f32 %v166, %v437
      %v467 = vmul.f32 %v166, %v441
      %v468 = vmul.f32 %v171, %v437
      %v469 = vmul.f32 %v171, %v441
      %v470 = vmul.f32 %v176, %v437
      %v471 = vmul.f32 %v176, %v441
      %v472 = vmul.f32 %v181, %v437
      %v473 = vmul.f32 %v181, %v441
      %v474 = vmul.f32 %v186, %v437
      %v475 = vmul.f32 %v186, %v441
      %v476 = vmul.f32 %v191, %v437
      %v477 = vmul.f32 %v191, %v441
      %v478 = vmul.f32 %v196, %v437
      %v479 = vmul.f32 %v196, %v441
      %v480 = vmul.f32 %v201, %v437
      %v481 = vmul.f32 %v201, %v441
      %v482 = vmul.f32 %v206, %v437
      %v483 = vmul.f32 %v206, %v441
      %v484 = vmul.f32 %v211, %v437
      %v485 = vmul.f32 %v211, %v441
      %v486 = vmul.f32 %v216, %v437
      %v487 = vmul.f32 %v216, %v441
      %v488 = vmul.f32 %v221, %v437
      %v489 = vmul.f32 %v221, %v441
      %v490 = vmul.f32 %v226, %v437
      %v491 = vmul.f32 %v226, %v441
      %v492 = vmul.f32 %v231, %v437
      %v493 = vmul.f32 %v231, %v441
      %v494 = vmul.f32 %v236, %v437
      %v495 = vmul.f32 %v236, %v441
      %v496 = vmul.f32 %v241, %v437
      %v497 = vmul.f32 %v241, %v441
      %v498 = vmul.f32 %v246, %v437
      %v499 = vmul.f32 %v246, %v441
      %v500 = vmul.f32 %v251, %v437
      %v501 = vmul.f32 %v251, %v441
      %v502 = vmul.f32 %v256, %v437
      %v503 = vmul.f32 %v256, %v441
      %v504 = vmul.f32 %v261, %v437
      %v505 = vmul.f32 %v261, %v441
      %v506 = vmul.f32 %v266, %v437
      %v507 = vmul.f32 %v266, %v441
      %v508 = vmul.f32 %v271, %v437
      %v509 = vmul.f32 %v271, %v441
      %v510 = vmul.f32 %v276, %v437
      %v511 = vmul.f32 %v276, %v441
      %v512 = vmul.f32 %v281, %v437
      %v513 = vmul.f32 %v281, %v441
      %v514 = vmul.f32 %v286, %v437
      %v515 = vmul.f32 %v286, %v441
      %v516 = vmul.f32 %v291, %v437
      %v517 = vmul.f32 %v291, %v441
      %v518 = vmul.f32 %v296, %v437
      %v519 = vmul.f32 %v296, %v441
      %v520 = vmul.f32 %v301, %v437
      %v521 = vmul.f32 %v301, %v441
      %v522 = vmul.f32 %v306, %v437
      %v523 = vmul.f32 %v306, %v441
      %v524 = vmul.f32 %v311, %v437
      %v525 = vmul.f32 %v311, %v441
      %v526 = vmul.f32 %v316, %v437
      %v527 = vmul.f32 %v316, %v441
      %v528 = vmul.f32 %v321, %v437
      %v529 = vmul.f32 %v321, %v441
      %v530 = vmul.f32 %v326, %v437
      %v531 = vmul.f32 %v326, %v441
      %v532 = vmul.f32 %v331, %v437
      %v533 = vmul.f32 %v331, %v441
      %v534 = vmul.f32 %v336, %v437
      %v535 = vmul.f32 %v336, %v441
      %v536 = vmul.f32 %v341, %v437
      %v537 = vmul.f32 %v341, %v441
      %v538 = vmul.f32 %v346, %v437
      %v539 = vmul.f32 %v346, %v441
      %v540 = vmul.f32 %v351, %v437
      %v541 = vmul.f32 %v351, %v441
      %v542 = vmul.f32 %v356, %v437
      %v543 = vmul.f32 %v356, %v441
      %v544 = vmul.f32 %v361, %v437
      %v545 = vmul.f32 %v361, %v441
      %v546 = vmul.f32 %v366, %v437
      %v547 = vmul.f32 %v366, %v441
      %v548 = vmul.f32 %v371, %v437
      %v549 = vmul.f32 %v371, %v441
      %v550 = vmul.f32 %v376, %v437
      %v551 = vmul.f32 %v376, %v441
      %v552 = vmul.f32 %v381, %v437
      %v553 = vmul.f32 %v381, %v441
      %v554 = vmul.f32 %v386, %v437
      %v555 = vmul.f32 %v386, %v441
      %v556 = vmul.f32 %v391, %v437
      %v557 = vmul.f32 %v391, %v441
      %v558 = vmul.f32 %v396, %v437
      %v559 = vmul.f32 %v396, %v441
      %v560 = vmul.f32 %v401, %v437
      %v561 = vmul.f32 %v401, %v441
      %v562 = vmul.f32 %v406, %v437
      %v563 = vmul.f32 %v406, %v441
      %v564 = vmul.f32 %v411, %v437
      %v565 = vmul.f32 %v411, %v441
      %v566 = vmul.f32 %v416, %v437
      %v567 = vmul.f32 %v416, %v441
      %v568 = vmul.f32 %v421, %v437
      %v569 = vmul.f32 %v421, %v441
      %570 = vset.pattern.permute.xlu0 1
      %571 = vperm.xlu0 %570, %v38
      %v572 = vpop.permute.xlu0 %571
      %574 = vset.pattern.permute.xlu0 1
      %575 = vperm.xlu0 %574, %v39
      %v576 = vpop.permute.xlu0 %575
      %578 = vset.pattern.permute.xlu0 1
      %579 = vperm.xlu0 %578, %v40
      %v580 = vpop.permute.xlu0 %579
      %582 = vset.pattern.permute.xlu0 1
      %583 = vperm.xlu0 %582, %v41
      %v584 = vpop.permute.xlu0 %583
      %586 = vset.pattern.permute.xlu0 1
      %587 = vperm.xlu0 %586, %v42
      %v588 = vpop.permute.xlu0 %587
      %590 = vset.pattern.permute.xlu0 1
      %591 = vperm.xlu0 %590, %v43
      %v592 = vpop.permute.xlu0 %591
      %594 = vset.pattern.permute.xlu0 1
      %595 = vperm.xlu0 %594, %v44
      %v596 = vpop.permute.xlu0 %595
      %598 = vset.pattern.permute.xlu0 1
      %599 = vperm.xlu0 %598, %v45
      %v600 = vpop.permute.xlu0 %599
      %602 = vset.pattern.permute.xlu0 1
      %603 = vperm.xlu0 %602, %v46
      %v604 = vpop.permute.xlu0 %603
      %606 = vset.pattern.permute.xlu0 1
      %607 = vperm.xlu0 %606, %v47
      %v608 = vpop.permute.xlu0 %607
      %610 = vset.pattern.permute.xlu0 1
      %611 = vperm.xlu0 %610, %v48
      %v612 = vpop.permute.xlu0 %611
      %614 = vset.pattern.permute.xlu0 1
      %615 = vperm.xlu0 %614, %v49
      %v616 = vpop.permute.xlu0 %615
      %618 = vset.pattern.permute.xlu0 1
      %619 = vperm.xlu0 %618, %v50
      %v620 = vpop.permute.xlu0 %619
      %622 = vset.pattern.permute.xlu0 1
      %623 = vperm.xlu0 %622, %v51
      %v624 = vpop.permute.xlu0 %623
      %626 = vset.pattern.permute.xlu0 1
      %627 = vperm.xlu0 %626, %v52
      %v628 = vpop.permute.xlu0 %627
      %630 = vset.pattern.permute.xlu0 1
      %631 = vperm.xlu0 %630, %v53
      %v632 = vpop.permute.xlu0 %631
      %634 = vset.pattern.permute.xlu0 1
      %635 = vperm.xlu0 %634, %v54
      %v636 = vpop.permute.xlu0 %635
      %638 = vset.pattern.permute.xlu0 1
      %639 = vperm.xlu0 %638, %v55
      %v640 = vpop.permute.xlu0 %639
      %642 = vset.pattern.permute.xlu0 1
      %643 = vperm.xlu0 %642, %v56
      %v644 = vpop.permute.xlu0 %643
      %646 = vset.pattern.permute.xlu0 1
      %647 = vperm.xlu0 %646, %v57
      %v648 = vpop.permute.xlu0 %647
      %650 = vset.pattern.permute.xlu0 1
      %651 = vperm.xlu0 %650, %v58
      %v652 = vpop.permute.xlu0 %651
      %654 = vset.pattern.permute.xlu0 1
      %655 = vperm.xlu0 %654, %v59
      %v656 = vpop.permute.xlu0 %655
      %658 = vset.pattern.permute.xlu0 1
      %659 = vperm.xlu0 %658, %v60
      %v660 = vpop.permute.xlu0 %659
      %662 = vset.pattern.permute.xlu0 1
      %663 = vperm.xlu0 %662, %v61
      %v664 = vpop.permute.xlu0 %663
      %666 = vset.pattern.permute.xlu0 1
      %667 = vperm.xlu0 %666, %v62
      %v668 = vpop.permute.xlu0 %667
      %670 = vset.pattern.permute.xlu0 1
      %671 = vperm.xlu0 %670, %v63
      %v672 = vpop.permute.xlu0 %671
      %674 = vset.pattern.permute.xlu0 1
      %675 = vperm.xlu0 %674, %v64
      %v676 = vpop.permute.xlu0 %675
      %678 = vset.pattern.permute.xlu0 1
      %679 = vperm.xlu0 %678, %v65
      %v680 = vpop.permute.xlu0 %679
      %682 = vset.pattern.permute.xlu0 1
      %683 = vperm.xlu0 %682, %v66
      %v684 = vpop.permute.xlu0 %683
      %686 = vset.pattern.permute.xlu0 1
      %687 = vperm.xlu0 %686, %v67
      %v688 = vpop.permute.xlu0 %687
      %690 = vset.pattern.permute.xlu0 1
      %691 = vperm.xlu0 %690, %v68
      %v692 = vpop.permute.xlu0 %691
      %694 = vset.pattern.permute.xlu0 1
      %695 = vperm.xlu0 %694, %v69
      %v696 = vpop.permute.xlu0 %695
      %698 = vset.pattern.permute.xlu0 1
      %699 = vperm.xlu0 %698, %v70
      %v700 = vpop.permute.xlu0 %699
      %702 = vset.pattern.permute.xlu0 1
      %703 = vperm.xlu0 %702, %v71
      %v704 = vpop.permute.xlu0 %703
      %706 = vset.pattern.permute.xlu0 1
      %707 = vperm.xlu0 %706, %v72
      %v708 = vpop.permute.xlu0 %707
      %710 = vset.pattern.permute.xlu0 1
      %711 = vperm.xlu0 %710, %v73
      %v712 = vpop.permute.xlu0 %711
      %714 = vset.pattern.permute.xlu0 1
      %715 = vperm.xlu0 %714, %v74
      %v716 = vpop.permute.xlu0 %715
      %718 = vset.pattern.permute.xlu0 1
      %719 = vperm.xlu0 %718, %v75
      %v720 = vpop.permute.xlu0 %719
      %722 = vset.pattern.permute.xlu0 1
      %723 = vperm.xlu0 %722, %v76
      %v724 = vpop.permute.xlu0 %723
      %726 = vset.pattern.permute.xlu0 1
      %727 = vperm.xlu0 %726, %v77
      %v728 = vpop.permute.xlu0 %727
      %730 = vset.pattern.permute.xlu0 1
      %731 = vperm.xlu0 %730, %v78
      %v732 = vpop.permute.xlu0 %731
      %734 = vset.pattern.permute.xlu0 1
      %735 = vperm.xlu0 %734, %v79
      %v736 = vpop.permute.xlu0 %735
      %738 = vset.pattern.permute.xlu0 1
      %739 = vperm.xlu0 %738, %v80
      %v740 = vpop.permute.xlu0 %739
      %742 = vset.pattern.permute.xlu0 1
      %743 = vperm.xlu0 %742, %v81
      %v744 = vpop.permute.xlu0 %743
      %746 = vset.pattern.permute.xlu0 1
      %747 = vperm.xlu0 %746, %v82
      %v748 = vpop.permute.xlu0 %747
      %750 = vset.pattern.permute.xlu0 1
      %751 = vperm.xlu0 %750, %v83
      %v752 = vpop.permute.xlu0 %751
      %754 = vset.pattern.permute.xlu0 1
      %755 = vperm.xlu0 %754, %v84
      %v756 = vpop.permute.xlu0 %755
      %758 = vset.pattern.permute.xlu0 1
      %759 = vperm.xlu0 %758, %v85
      %v760 = vpop.permute.xlu0 %759
      %762 = vset.pattern.permute.xlu0 1
      %763 = vperm.xlu0 %762, %v86
      %v764 = vpop.permute.xlu0 %763
      %766 = vset.pattern.permute.xlu0 1
      %767 = vperm.xlu0 %766, %v87
      %v768 = vpop.permute.xlu0 %767
      %770 = vset.pattern.permute.xlu0 1
      %771 = vperm.xlu0 %770, %v88
      %v772 = vpop.permute.xlu0 %771
      %774 = vset.pattern.permute.xlu0 1
      %775 = vperm.xlu0 %774, %v89
      %v776 = vpop.permute.xlu0 %775
      %778 = vset.pattern.permute.xlu0 1
      %779 = vperm.xlu0 %778, %v90
      %v780 = vpop.permute.xlu0 %779
      %782 = vset.pattern.permute.xlu0 1
      %783 = vperm.xlu0 %782, %v91
      %v784 = vpop.permute.xlu0 %783
      %786 = vset.pattern.permute.xlu0 1
      %787 = vperm.xlu0 %786, %v92
      %v788 = vpop.permute.xlu0 %787
      %790 = vset.pattern.permute.xlu0 1
      %791 = vperm.xlu0 %790, %v93
      %v792 = vpop.permute.xlu0 %791
      %794 = vset.pattern.permute.xlu0 1
      %795 = vperm.xlu0 %794, %v94
      %v796 = vpop.permute.xlu0 %795
      %798 = vset.pattern.permute.xlu0 1
      %799 = vperm.xlu0 %798, %v95
      %v800 = vpop.permute.xlu0 %799
      %802 = vset.pattern.permute.xlu0 1
      %803 = vperm.xlu0 %802, %v96
      %v804 = vpop.permute.xlu0 %803
      %806 = vset.pattern.permute.xlu0 1
      %807 = vperm.xlu0 %806, %v97
      %v808 = vpop.permute.xlu0 %807
      %810 = vset.pattern.permute.xlu0 1
      %811 = vperm.xlu0 %810, %v98
      %v812 = vpop.permute.xlu0 %811
      %814 = vset.pattern.permute.xlu0 1
      %815 = vperm.xlu0 %814, %v99
      %v816 = vpop.permute.xlu0 %815
      %818 = vset.pattern.permute.xlu0 1
      %819 = vperm.xlu0 %818, %v100
      %v820 = vpop.permute.xlu0 %819
      %822 = vset.pattern.permute.xlu0 1
      %823 = vperm.xlu0 %822, %v101
      %v824 = vpop.permute.xlu0 %823
      %v826 = vlaneseq
      %v827 = vshrl.u32 %v826, 7
      %v828 = vsub.s32 1, %v827
      %v829 = vrot.slane %v102, %v828
      %v830 = vlaneseq
      %v831 = vshrl.u32 %v830, 7
      %v832 = vsub.s32 3, %v831
      %v833 = vrot.slane %v102, %v832
      %v836 = vlaneseq
      %v837 = vshrl.u32 %v836, 7
      %v838 = vsub.s32 1, %v837
      %v839 = vrot.slane %v829, %v838
      %v840 = vlaneseq
      %v841 = vshrl.u32 %v840, 7
      %v842 = vsub.s32 1, %v841
      %v843 = vrot.slane %v833, %v842
      %v844 = vmul.f32 %v572, %v839
      %v845 = vmul.f32 %v572, %v843
      %v846 = vmul.f32 %v576, %v839
      %v847 = vmul.f32 %v576, %v843
      %v848 = vmul.f32 %v580, %v839
      %v849 = vmul.f32 %v580, %v843
      %v850 = vmul.f32 %v584, %v839
      %v851 = vmul.f32 %v584, %v843
      %v852 = vmul.f32 %v588, %v839
      %v853 = vmul.f32 %v588, %v843
      %v854 = vmul.f32 %v592, %v839
      %v855 = vmul.f32 %v592, %v843
      %v856 = vmul.f32 %v596, %v839
      %v857 = vmul.f32 %v596, %v843
      %v858 = vmul.f32 %v600, %v839
      %v859 = vmul.f32 %v600, %v843
      %v860 = vmul.f32 %v604, %v839
      %v861 = vmul.f32 %v604, %v843
      %v862 = vmul.f32 %v608, %v839
      %v863 = vmul.f32 %v608, %v843
      %v864 = vmul.f32 %v612, %v839
      %v865 = vmul.f32 %v612, %v843
      %v866 = vmul.f32 %v616, %v839
      %v867 = vmul.f32 %v616, %v843
      %v868 = vmul.f32 %v620, %v839
      %v869 = vmul.f32 %v620, %v843
      %v870 = vmul.f32 %v624, %v839
      %v871 = vmul.f32 %v624, %v843
      %v872 = vmul.f32 %v628, %v839
      %v873 = vmul.f32 %v628, %v843
      %v874 = vmul.f32 %v632, %v839
      %v875 = vmul.f32 %v632, %v843
      %v876 = vmul.f32 %v636, %v839
      %v877 = vmul.f32 %v636, %v843
      %v878 = vmul.f32 %v640, %v839
      %v879 = vmul.f32 %v640, %v843
      %v880 = vmul.f32 %v644, %v839
      %v881 = vmul.f32 %v644, %v843
      %v882 = vmul.f32 %v648, %v839
      %v883 = vmul.f32 %v648, %v843
      %v884 = vmul.f32 %v652, %v839
      %v885 = vmul.f32 %v652, %v843
      %v886 = vmul.f32 %v656, %v839
      %v887 = vmul.f32 %v656, %v843
      %v888 = vmul.f32 %v660, %v839
      %v889 = vmul.f32 %v660, %v843
      %v890 = vmul.f32 %v664, %v839
      %v891 = vmul.f32 %v664, %v843
      %v892 = vmul.f32 %v668, %v839
      %v893 = vmul.f32 %v668, %v843
      %v894 = vmul.f32 %v672, %v839
      %v895 = vmul.f32 %v672, %v843
      %v896 = vmul.f32 %v676, %v839
      %v897 = vmul.f32 %v676, %v843
      %v898 = vmul.f32 %v680, %v839
      %v899 = vmul.f32 %v680, %v843
      %v900 = vmul.f32 %v684, %v839
      %v901 = vmul.f32 %v684, %v843
      %v902 = vmul.f32 %v688, %v839
      %v903 = vmul.f32 %v688, %v843
      %v904 = vmul.f32 %v692, %v839
      %v905 = vmul.f32 %v692, %v843
      %v906 = vmul.f32 %v696, %v839
      %v907 = vmul.f32 %v696, %v843
      %v908 = vmul.f32 %v700, %v839
      %v909 = vmul.f32 %v700, %v843
      %v910 = vmul.f32 %v704, %v839
      %v911 = vmul.f32 %v704, %v843
      %v912 = vmul.f32 %v708, %v839
      %v913 = vmul.f32 %v708, %v843
      %v914 = vmul.f32 %v712, %v839
      %v915 = vmul.f32 %v712, %v843
      %v916 = vmul.f32 %v716, %v839
      %v917 = vmul.f32 %v716, %v843
      %v918 = vmul.f32 %v720, %v839
      %v919 = vmul.f32 %v720, %v843
      %v920 = vmul.f32 %v724, %v839
      %v921 = vmul.f32 %v724, %v843
      %v922 = vmul.f32 %v728, %v839
      %v923 = vmul.f32 %v728, %v843
      %v924 = vmul.f32 %v732, %v839
      %v925 = vmul.f32 %v732, %v843
      %v926 = vmul.f32 %v736, %v839
      %v927 = vmul.f32 %v736, %v843
      %v928 = vmul.f32 %v740, %v839
      %v929 = vmul.f32 %v740, %v843
      %v930 = vmul.f32 %v744, %v839
      %v931 = vmul.f32 %v744, %v843
      %v932 = vmul.f32 %v748, %v839
      %v933 = vmul.f32 %v748, %v843
      %v934 = vmul.f32 %v752, %v839
      %v935 = vmul.f32 %v752, %v843
      %v936 = vmul.f32 %v756, %v839
      %v937 = vmul.f32 %v756, %v843
      %v938 = vmul.f32 %v760, %v839
      %v939 = vmul.f32 %v760, %v843
      %v940 = vmul.f32 %v764, %v839
      %v941 = vmul.f32 %v764, %v843
      %v942 = vmul.f32 %v768, %v839
      %v943 = vmul.f32 %v768, %v843
      %v944 = vmul.f32 %v772, %v839
      %v945 = vmul.f32 %v772, %v843
      %v946 = vmul.f32 %v776, %v839
      %v947 = vmul.f32 %v776, %v843
      %v948 = vmul.f32 %v780, %v839
      %v949 = vmul.f32 %v780, %v843
      %v950 = vmul.f32 %v784, %v839
      %v951 = vmul.f32 %v784, %v843
      %v952 = vmul.f32 %v788, %v839
      %v953 = vmul.f32 %v788, %v843
      %v954 = vmul.f32 %v792, %v839
      %v955 = vmul.f32 %v792, %v843
      %v956 = vmul.f32 %v796, %v839
      %v957 = vmul.f32 %v796, %v843
      %v958 = vmul.f32 %v800, %v839
      %v959 = vmul.f32 %v800, %v843
      %v960 = vmul.f32 %v804, %v839
      %v961 = vmul.f32 %v804, %v843
      %v962 = vmul.f32 %v808, %v839
      %v963 = vmul.f32 %v808, %v843
      %v964 = vmul.f32 %v812, %v839
      %v965 = vmul.f32 %v812, %v843
      %v966 = vmul.f32 %v816, %v839
      %v967 = vmul.f32 %v816, %v843
      %v968 = vmul.f32 %v820, %v839
      %v969 = vmul.f32 %v820, %v843
      %v970 = vmul.f32 %v824, %v839
      %v971 = vmul.f32 %v824, %v843
      %v972 = vadd.f32 %v442, %v844
      %v973 = vadd.f32 %v443, %v845
      %v974 = vadd.f32 %v444, %v846
      %v975 = vadd.f32 %v445, %v847
      %v976 = vadd.f32 %v446, %v848
      %v977 = vadd.f32 %v447, %v849
      %v978 = vadd.f32 %v448, %v850
      %v979 = vadd.f32 %v449, %v851
      %v980 = vadd.f32 %v450, %v852
      %v981 = vadd.f32 %v451, %v853
      %v982 = vadd.f32 %v452, %v854
      %v983 = vadd.f32 %v453, %v855
      %v984 = vadd.f32 %v454, %v856
      %v985 = vadd.f32 %v455, %v857
      %v986 = vadd.f32 %v456, %v858
      %v987 = vadd.f32 %v457, %v859
      %v988 = vadd.f32 %v458, %v860
      %v989 = vadd.f32 %v459, %v861
      %v990 = vadd.f32 %v460, %v862
      %v991 = vadd.f32 %v461, %v863
      %v992 = vadd.f32 %v462, %v864
      %v993 = vadd.f32 %v463, %v865
      %v994 = vadd.f32 %v464, %v866
      %v995 = vadd.f32 %v465, %v867
      %v996 = vadd.f32 %v466, %v868
      %v997 = vadd.f32 %v467, %v869
      %v998 = vadd.f32 %v468, %v870
      %v999 = vadd.f32 %v469, %v871
      %v1000 = vadd.f32 %v470, %v872
      %v1001 = vadd.f32 %v471, %v873
      %v1002 = vadd.f32 %v472, %v874
      %v1003 = vadd.f32 %v473, %v875
      %v1004 = vadd.f32 %v474, %v876
      %v1005 = vadd.f32 %v475, %v877
      %v1006 = vadd.f32 %v476, %v878
      %v1007 = vadd.f32 %v477, %v879
      %v1008 = vadd.f32 %v478, %v880
      %v1009 = vadd.f32 %v479, %v881
      %v1010 = vadd.f32 %v480, %v882
      %v1011 = vadd.f32 %v481, %v883
      %v1012 = vadd.f32 %v482, %v884
      %v1013 = vadd.f32 %v483, %v885
      %v1014 = vadd.f32 %v484, %v886
      %v1015 = vadd.f32 %v485, %v887
      %v1016 = vadd.f32 %v486, %v888
      %v1017 = vadd.f32 %v487, %v889
      %v1018 = vadd.f32 %v488, %v890
      %v1019 = vadd.f32 %v489, %v891
      %v1020 = vadd.f32 %v490, %v892
      %v1021 = vadd.f32 %v491, %v893
      %v1022 = vadd.f32 %v492, %v894
      %v1023 = vadd.f32 %v493, %v895
      %v1024 = vadd.f32 %v494, %v896
      %v1025 = vadd.f32 %v495, %v897
      %v1026 = vadd.f32 %v496, %v898
      %v1027 = vadd.f32 %v497, %v899
      %v1028 = vadd.f32 %v498, %v900
      %v1029 = vadd.f32 %v499, %v901
      %v1030 = vadd.f32 %v500, %v902
      %v1031 = vadd.f32 %v501, %v903
      %v1032 = vadd.f32 %v502, %v904
      %v1033 = vadd.f32 %v503, %v905
      %v1034 = vadd.f32 %v504, %v906
      %v1035 = vadd.f32 %v505, %v907
      %v1036 = vadd.f32 %v506, %v908
      %v1037 = vadd.f32 %v507, %v909
      %v1038 = vadd.f32 %v508, %v910
      %v1039 = vadd.f32 %v509, %v911
      %v1040 = vadd.f32 %v510, %v912
      %v1041 = vadd.f32 %v511, %v913
      %v1042 = vadd.f32 %v512, %v914
      %v1043 = vadd.f32 %v513, %v915
      %v1044 = vadd.f32 %v514, %v916
      %v1045 = vadd.f32 %v515, %v917
      %v1046 = vadd.f32 %v516, %v918
      %v1047 = vadd.f32 %v517, %v919
      %v1048 = vadd.f32 %v518, %v920
      %v1049 = vadd.f32 %v519, %v921
      %v1050 = vadd.f32 %v520, %v922
      %v1051 = vadd.f32 %v521, %v923
      %v1052 = vadd.f32 %v522, %v924
      %v1053 = vadd.f32 %v523, %v925
      %v1054 = vadd.f32 %v524, %v926
      %v1055 = vadd.f32 %v525, %v927
      %v1056 = vadd.f32 %v526, %v928
      %v1057 = vadd.f32 %v527, %v929
      %v1058 = vadd.f32 %v528, %v930
      %v1059 = vadd.f32 %v529, %v931
      %v1060 = vadd.f32 %v530, %v932
      %v1061 = vadd.f32 %v531, %v933
      %v1062 = vadd.f32 %v532, %v934
      %v1063 = vadd.f32 %v533, %v935
      %v1064 = vadd.f32 %v534, %v936
      %v1065 = vadd.f32 %v535, %v937
      %v1066 = vadd.f32 %v536, %v938
      %v1067 = vadd.f32 %v537, %v939
      %v1068 = vadd.f32 %v538, %v940
      %v1069 = vadd.f32 %v539, %v941
      %v1070 = vadd.f32 %v540, %v942
      %v1071 = vadd.f32 %v541, %v943
      %v1072 = vadd.f32 %v542, %v944
      %v1073 = vadd.f32 %v543, %v945
      %v1074 = vadd.f32 %v544, %v946
      %v1075 = vadd.f32 %v545, %v947
      %v1076 = vadd.f32 %v546, %v948
      %v1077 = vadd.f32 %v547, %v949
      %v1078 = vadd.f32 %v548, %v950
      %v1079 = vadd.f32 %v549, %v951
      %v1080 = vadd.f32 %v550, %v952
      %v1081 = vadd.f32 %v551, %v953
      %v1082 = vadd.f32 %v552, %v954
      %v1083 = vadd.f32 %v553, %v955
      %v1084 = vadd.f32 %v554, %v956
      %v1085 = vadd.f32 %v555, %v957
      %v1086 = vadd.f32 %v556, %v958
      %v1087 = vadd.f32 %v557, %v959
      %v1088 = vadd.f32 %v558, %v960
      %v1089 = vadd.f32 %v559, %v961
      %v1090 = vadd.f32 %v560, %v962
      %v1091 = vadd.f32 %v561, %v963
      %v1092 = vadd.f32 %v562, %v964
      %v1093 = vadd.f32 %v563, %v965
      %v1094 = vadd.f32 %v564, %v966
      %v1095 = vadd.f32 %v565, %v967
      %v1096 = vadd.f32 %v566, %v968
      %v1097 = vadd.f32 %v567, %v969
      %v1098 = vadd.f32 %v568, %v970
      %v1099 = vadd.f32 %v569, %v971
      %v1100 = vld [vmem:[%s2] sm:$0x3]
      %v1102 = vlaneseq
      %v1103 = vshrl.u32 %v1102, 7
      %v1104 = vsub.s32 0, %v1103
      %v1105 = vrot.slane %v1100, %v1104
      %v1106 = vlaneseq
      %v1107 = vshrl.u32 %v1106, 7
      %v1108 = vsub.s32 1, %v1107
      %v1109 = vrot.slane %v1100, %v1108
      %v1112 = vadd.f32 %v972, %v1105
      %v1113 = vadd.f32 %v973, %v1109
      %v1114 = vadd.f32 %v974, %v1105
      %v1115 = vadd.f32 %v975, %v1109
      %v1116 = vadd.f32 %v976, %v1105
      %v1117 = vadd.f32 %v977, %v1109
      %v1118 = vadd.f32 %v978, %v1105
      %v1119 = vadd.f32 %v979, %v1109
      %v1120 = vadd.f32 %v980, %v1105
      %v1121 = vadd.f32 %v981, %v1109
      %v1122 = vadd.f32 %v982, %v1105
      %v1123 = vadd.f32 %v983, %v1109
      %v1124 = vadd.f32 %v984, %v1105
      %v1125 = vadd.f32 %v985, %v1109
      %v1126 = vadd.f32 %v986, %v1105
      %v1127 = vadd.f32 %v987, %v1109
      %v1128 = vadd.f32 %v988, %v1105
      %v1129 = vadd.f32 %v989, %v1109
      %v1130 = vadd.f32 %v990, %v1105
      %v1131 = vadd.f32 %v991, %v1109
      %v1132 = vadd.f32 %v992, %v1105
      %v1133 = vadd.f32 %v993, %v1109
      %v1134 = vadd.f32 %v994, %v1105
      %v1135 = vadd.f32 %v995, %v1109
      %v1136 = vadd.f32 %v996, %v1105
      %v1137 = vadd.f32 %v997, %v1109
      %v1138 = vadd.f32 %v998, %v1105
      %v1139 = vadd.f32 %v999, %v1109
      %v1140 = vadd.f32 %v1000, %v1105
      %v1141 = vadd.f32 %v1001, %v1109
      %v1142 = vadd.f32 %v1002, %v1105
      %v1143 = vadd.f32 %v1003, %v1109
      %v1144 = vadd.f32 %v1004, %v1105
      %v1145 = vadd.f32 %v1005, %v1109
      %v1146 = vadd.f32 %v1006, %v1105
      %v1147 = vadd.f32 %v1007, %v1109
      %v1148 = vadd.f32 %v1008, %v1105
      %v1149 = vadd.f32 %v1009, %v1109
      %v1150 = vadd.f32 %v1010, %v1105
      %v1151 = vadd.f32 %v1011, %v1109
      %v1152 = vadd.f32 %v1012, %v1105
      %v1153 = vadd.f32 %v1013, %v1109
      %v1154 = vadd.f32 %v1014, %v1105
      %v1155 = vadd.f32 %v1015, %v1109
      %v1156 = vadd.f32 %v1016, %v1105
      %v1157 = vadd.f32 %v1017, %v1109
      %v1158 = vadd.f32 %v1018, %v1105
      %v1159 = vadd.f32 %v1019, %v1109
      %v1160 = vadd.f32 %v1020, %v1105
      %v1161 = vadd.f32 %v1021, %v1109
      %v1162 = vadd.f32 %v1022, %v1105
      %v1163 = vadd.f32 %v1023, %v1109
      %v1164 = vadd.f32 %v1024, %v1105
      %v1165 = vadd.f32 %v1025, %v1109
      %v1166 = vadd.f32 %v1026, %v1105
      %v1167 = vadd.f32 %v1027, %v1109
      %v1168 = vadd.f32 %v1028, %v1105
      %v1169 = vadd.f32 %v1029, %v1109
      %v1170 = vadd.f32 %v1030, %v1105
      %v1171 = vadd.f32 %v1031, %v1109
      %v1172 = vadd.f32 %v1032, %v1105
      %v1173 = vadd.f32 %v1033, %v1109
      %v1174 = vadd.f32 %v1034, %v1105
      %v1175 = vadd.f32 %v1035, %v1109
      %v1176 = vadd.f32 %v1036, %v1105
      %v1177 = vadd.f32 %v1037, %v1109
      %v1178 = vadd.f32 %v1038, %v1105
      %v1179 = vadd.f32 %v1039, %v1109
      %v1180 = vadd.f32 %v1040, %v1105
      %v1181 = vadd.f32 %v1041, %v1109
      %v1182 = vadd.f32 %v1042, %v1105
      %v1183 = vadd.f32 %v1043, %v1109
      %v1184 = vadd.f32 %v1044, %v1105
      %v1185 = vadd.f32 %v1045, %v1109
      %v1186 = vadd.f32 %v1046, %v1105
      %v1187 = vadd.f32 %v1047, %v1109
      %v1188 = vadd.f32 %v1048, %v1105
      %v1189 = vadd.f32 %v1049, %v1109
      %v1190 = vadd.f32 %v1050, %v1105
      %v1191 = vadd.f32 %v1051, %v1109
      %v1192 = vadd.f32 %v1052, %v1105
      %v1193 = vadd.f32 %v1053, %v1109
      %v1194 = vadd.f32 %v1054, %v1105
      %v1195 = vadd.f32 %v1055, %v1109
      %v1196 = vadd.f32 %v1056, %v1105
      %v1197 = vadd.f32 %v1057, %v1109
      %v1198 = vadd.f32 %v1058, %v1105
      %v1199 = vadd.f32 %v1059, %v1109
      %v1200 = vadd.f32 %v1060, %v1105
      %v1201 = vadd.f32 %v1061, %v1109
      %v1202 = vadd.f32 %v1062, %v1105
      %v1203 = vadd.f32 %v1063, %v1109
      %v1204 = vadd.f32 %v1064, %v1105
      %v1205 = vadd.f32 %v1065, %v1109
      %v1206 = vadd.f32 %v1066, %v1105
      %v1207 = vadd.f32 %v1067, %v1109
      %v1208 = vadd.f32 %v1068, %v1105
      %v1209 = vadd.f32 %v1069, %v1109
      %v1210 = vadd.f32 %v1070, %v1105
      %v1211 = vadd.f32 %v1071, %v1109
      %v1212 = vadd.f32 %v1072, %v1105
      %v1213 = vadd.f32 %v1073, %v1109
      %v1214 = vadd.f32 %v1074, %v1105
      %v1215 = vadd.f32 %v1075, %v1109
      %v1216 = vadd.f32 %v1076, %v1105
      %v1217 = vadd.f32 %v1077, %v1109
      %v1218 = vadd.f32 %v1078, %v1105
      %v1219 = vadd.f32 %v1079, %v1109
      %v1220 = vadd.f32 %v1080, %v1105
      %v1221 = vadd.f32 %v1081, %v1109
      %v1222 = vadd.f32 %v1082, %v1105
      %v1223 = vadd.f32 %v1083, %v1109
      %v1224 = vadd.f32 %v1084, %v1105
      %v1225 = vadd.f32 %v1085, %v1109
      %v1226 = vadd.f32 %v1086, %v1105
      %v1227 = vadd.f32 %v1087, %v1109
      %v1228 = vadd.f32 %v1088, %v1105
      %v1229 = vadd.f32 %v1089, %v1109
      %v1230 = vadd.f32 %v1090, %v1105
      %v1231 = vadd.f32 %v1091, %v1109
      %v1232 = vadd.f32 %v1092, %v1105
      %v1233 = vadd.f32 %v1093, %v1109
      %v1234 = vadd.f32 %v1094, %v1105
      %v1235 = vadd.f32 %v1095, %v1109
      %v1236 = vadd.f32 %v1096, %v1105
      %v1237 = vadd.f32 %v1097, %v1109
      %v1238 = vadd.f32 %v1098, %v1105
      %v1239 = vadd.f32 %v1099, %v1109
      %v1240 = vmax.f32 %v1112, 0.0
      %v1241 = vmax.f32 %v1113, 0.0
      %v1242 = vmax.f32 %v1114, 0.0
      %v1243 = vmax.f32 %v1115, 0.0
      %v1244 = vmax.f32 %v1116, 0.0
      %v1245 = vmax.f32 %v1117, 0.0
      %v1246 = vmax.f32 %v1118, 0.0
      %v1247 = vmax.f32 %v1119, 0.0
      %v1248 = vmax.f32 %v1120, 0.0
      %v1249 = vmax.f32 %v1121, 0.0
      %v1250 = vmax.f32 %v1122, 0.0
      %v1251 = vmax.f32 %v1123, 0.0
      %v1252 = vmax.f32 %v1124, 0.0
      %v1253 = vmax.f32 %v1125, 0.0
      %v1254 = vmax.f32 %v1126, 0.0
      %v1255 = vmax.f32 %v1127, 0.0
      %v1256 = vmax.f32 %v1128, 0.0
      %v1257 = vmax.f32 %v1129, 0.0
      %v1258 = vmax.f32 %v1130, 0.0
      %v1259 = vmax.f32 %v1131, 0.0
      %v1260 = vmax.f32 %v1132, 0.0
      %v1261 = vmax.f32 %v1133, 0.0
      %v1262 = vmax.f32 %v1134, 0.0
      %v1263 = vmax.f32 %v1135, 0.0
      %v1264 = vmax.f32 %v1136, 0.0
      %v1265 = vmax.f32 %v1137, 0.0
      %v1266 = vmax.f32 %v1138, 0.0
      %v1267 = vmax.f32 %v1139, 0.0
      %v1268 = vmax.f32 %v1140, 0.0
      %v1269 = vmax.f32 %v1141, 0.0
      %v1270 = vmax.f32 %v1142, 0.0
      %v1271 = vmax.f32 %v1143, 0.0
      %v1272 = vmax.f32 %v1144, 0.0
      %v1273 = vmax.f32 %v1145, 0.0
      %v1274 = vmax.f32 %v1146, 0.0
      %v1275 = vmax.f32 %v1147, 0.0
      %v1276 = vmax.f32 %v1148, 0.0
      %v1277 = vmax.f32 %v1149, 0.0
      %v1278 = vmax.f32 %v1150, 0.0
      %v1279 = vmax.f32 %v1151, 0.0
      %v1280 = vmax.f32 %v1152, 0.0
      %v1281 = vmax.f32 %v1153, 0.0
      %v1282 = vmax.f32 %v1154, 0.0
      %v1283 = vmax.f32 %v1155, 0.0
      %v1284 = vmax.f32 %v1156, 0.0
      %v1285 = vmax.f32 %v1157, 0.0
      %v1286 = vmax.f32 %v1158, 0.0
      %v1287 = vmax.f32 %v1159, 0.0
      %v1288 = vmax.f32 %v1160, 0.0
      %v1289 = vmax.f32 %v1161, 0.0
      %v1290 = vmax.f32 %v1162, 0.0
      %v1291 = vmax.f32 %v1163, 0.0
      %v1292 = vmax.f32 %v1164, 0.0
      %v1293 = vmax.f32 %v1165, 0.0
      %v1294 = vmax.f32 %v1166, 0.0
      %v1295 = vmax.f32 %v1167, 0.0
      %v1296 = vmax.f32 %v1168, 0.0
      %v1297 = vmax.f32 %v1169, 0.0
      %v1298 = vmax.f32 %v1170, 0.0
      %v1299 = vmax.f32 %v1171, 0.0
      %v1300 = vmax.f32 %v1172, 0.0
      %v1301 = vmax.f32 %v1173, 0.0
      %v1302 = vmax.f32 %v1174, 0.0
      %v1303 = vmax.f32 %v1175, 0.0
      %v1304 = vmax.f32 %v1176, 0.0
      %v1305 = vmax.f32 %v1177, 0.0
      %v1306 = vmax.f32 %v1178, 0.0
      %v1307 = vmax.f32 %v1179, 0.0
      %v1308 = vmax.f32 %v1180, 0.0
      %v1309 = vmax.f32 %v1181, 0.0
      %v1310 = vmax.f32 %v1182, 0.0
      %v1311 = vmax.f32 %v1183, 0.0
      %v1312 = vmax.f32 %v1184, 0.0
      %v1313 = vmax.f32 %v1185, 0.0
      %v1314 = vmax.f32 %v1186, 0.0
      %v1315 = vmax.f32 %v1187, 0.0
      %v1316 = vmax.f32 %v1188, 0.0
      %v1317 = vmax.f32 %v1189, 0.0
      %v1318 = vmax.f32 %v1190, 0.0
      %v1319 = vmax.f32 %v1191, 0.0
      %v1320 = vmax.f32 %v1192, 0.0
      %v1321 = vmax.f32 %v1193, 0.0
      %v1322 = vmax.f32 %v1194, 0.0
      %v1323 = vmax.f32 %v1195, 0.0
      %v1324 = vmax.f32 %v1196, 0.0
      %v1325 = vmax.f32 %v1197, 0.0
      %v1326 = vmax.f32 %v1198, 0.0
      %v1327 = vmax.f32 %v1199, 0.0
      %v1328 = vmax.f32 %v1200, 0.0
      %v1329 = vmax.f32 %v1201, 0.0
      %v1330 = vmax.f32 %v1202, 0.0
      %v1331 = vmax.f32 %v1203, 0.0
      %v1332 = vmax.f32 %v1204, 0.0
      %v1333 = vmax.f32 %v1205, 0.0
      %v1334 = vmax.f32 %v1206, 0.0
      %v1335 = vmax.f32 %v1207, 0.0
      %v1336 = vmax.f32 %v1208, 0.0
      %v1337 = vmax.f32 %v1209, 0.0
      %v1338 = vmax.f32 %v1210, 0.0
      %v1339 = vmax.f32 %v1211, 0.0
      %v1340 = vmax.f32 %v1212, 0.0
      %v1341 = vmax.f32 %v1213, 0.0
      %v1342 = vmax.f32 %v1214, 0.0
      %v1343 = vmax.f32 %v1215, 0.0
      %v1344 = vmax.f32 %v1216, 0.0
      %v1345 = vmax.f32 %v1217, 0.0
      %v1346 = vmax.f32 %v1218, 0.0
      %v1347 = vmax.f32 %v1219, 0.0
      %v1348 = vmax.f32 %v1220, 0.0
      %v1349 = vmax.f32 %v1221, 0.0
      %v1350 = vmax.f32 %v1222, 0.0
      %v1351 = vmax.f32 %v1223, 0.0
      %v1352 = vmax.f32 %v1224, 0.0
      %v1353 = vmax.f32 %v1225, 0.0
      %v1354 = vmax.f32 %v1226, 0.0
      %v1355 = vmax.f32 %v1227, 0.0
      %v1356 = vmax.f32 %v1228, 0.0
      %v1357 = vmax.f32 %v1229, 0.0
      %v1358 = vmax.f32 %v1230, 0.0
      %v1359 = vmax.f32 %v1231, 0.0
      %v1360 = vmax.f32 %v1232, 0.0
      %v1361 = vmax.f32 %v1233, 0.0
      %v1362 = vmax.f32 %v1234, 0.0
      %v1363 = vmax.f32 %v1235, 0.0
      %v1364 = vmax.f32 %v1236, 0.0
      %v1365 = vmax.f32 %v1237, 0.0
      %v1366 = vmax.f32 %v1238, 0.0
      %v1367 = vmax.f32 %v1239, 0.0
      %v1368 = vpack.c.bf16 %v1242, %v1240
      %v1369 = vpack.c.bf16 %v1243, %v1241
      %v1370 = vpack.c.bf16 %v1246, %v1244
      %v1371 = vpack.c.bf16 %v1247, %v1245
      %v1372 = vpack.c.bf16 %v1250, %v1248
      %v1373 = vpack.c.bf16 %v1251, %v1249
      %v1374 = vpack.c.bf16 %v1254, %v1252
      %v1375 = vpack.c.bf16 %v1255, %v1253
      %v1376 = vpack.c.bf16 %v1258, %v1256
      %v1377 = vpack.c.bf16 %v1259, %v1257
      %v1378 = vpack.c.bf16 %v1262, %v1260
      %v1379 = vpack.c.bf16 %v1263, %v1261
      %v1380 = vpack.c.bf16 %v1266, %v1264
      %v1381 = vpack.c.bf16 %v1267, %v1265
      %v1382 = vpack.c.bf16 %v1270, %v1268
      %v1383 = vpack.c.bf16 %v1271, %v1269
      %v1384 = vpack.c.bf16 %v1274, %v1272
      %v1385 = vpack.c.bf16 %v1275, %v1273
      %v1386 = vpack.c.bf16 %v1278, %v1276
      %v1387 = vpack.c.bf16 %v1279, %v1277
      %v1388 = vpack.c.bf16 %v1282, %v1280
      %v1389 = vpack.c.bf16 %v1283, %v1281
      %v1390 = vpack.c.bf16 %v1286, %v1284
      %v1391 = vpack.c.bf16 %v1287, %v1285
      %v1392 = vpack.c.bf16 %v1290, %v1288
      %v1393 = vpack.c.bf16 %v1291, %v1289
      %v1394 = vpack.c.bf16 %v1294, %v1292
      %v1395 = vpack.c.bf16 %v1295, %v1293
      %v1396 = vpack.c.bf16 %v1298, %v1296
      %v1397 = vpack.c.bf16 %v1299, %v1297
      %v1398 = vpack.c.bf16 %v1302, %v1300
      %v1399 = vpack.c.bf16 %v1303, %v1301
      %v1400 = vpack.c.bf16 %v1306, %v1304
      %v1401 = vpack.c.bf16 %v1307, %v1305
      %v1402 = vpack.c.bf16 %v1310, %v1308
      %v1403 = vpack.c.bf16 %v1311, %v1309
      %v1404 = vpack.c.bf16 %v1314, %v1312
      %v1405 = vpack.c.bf16 %v1315, %v1313
      %v1406 = vpack.c.bf16 %v1318, %v1316
      %v1407 = vpack.c.bf16 %v1319, %v1317
      %v1408 = vpack.c.bf16 %v1322, %v1320
      %v1409 = vpack.c.bf16 %v1323, %v1321
      %v1410 = vpack.c.bf16 %v1326, %v1324
      %v1411 = vpack.c.bf16 %v1327, %v1325
      %v1412 = vpack.c.bf16 %v1330, %v1328
      %v1413 = vpack.c.bf16 %v1331, %v1329
      %v1414 = vpack.c.bf16 %v1334, %v1332
      %v1415 = vpack.c.bf16 %v1335, %v1333
      %v1416 = vpack.c.bf16 %v1338, %v1336
      %v1417 = vpack.c.bf16 %v1339, %v1337
      %v1418 = vpack.c.bf16 %v1342, %v1340
      %v1419 = vpack.c.bf16 %v1343, %v1341
      %v1420 = vpack.c.bf16 %v1346, %v1344
      %v1421 = vpack.c.bf16 %v1347, %v1345
      %v1422 = vpack.c.bf16 %v1350, %v1348
      %v1423 = vpack.c.bf16 %v1351, %v1349
      %v1424 = vpack.c.bf16 %v1354, %v1352
      %v1425 = vpack.c.bf16 %v1355, %v1353
      %v1426 = vpack.c.bf16 %v1358, %v1356
      %v1427 = vpack.c.bf16 %v1359, %v1357
      %v1428 = vpack.c.bf16 %v1362, %v1360
      %v1429 = vpack.c.bf16 %v1363, %v1361
      %v1430 = vpack.c.bf16 %v1366, %v1364
      %v1431 = vpack.c.bf16 %v1367, %v1365
      %1432 = vst [vmem:[#allocation2] sm:$0xff] %v1368
      %1433 = vst [vmem:[#allocation2 + $0x8] sm:$0xff] %v1369
      %1434 = vst [vmem:[#allocation2 + $0x10] sm:$0xff] %v1370
      %1435 = vst [vmem:[#allocation2 + $0x18] sm:$0xff] %v1371
      %1436 = vst [vmem:[#allocation2 + $0x20] sm:$0xff] %v1372
      %1437 = vst [vmem:[#allocation2 + $0x28] sm:$0xff] %v1373
      %1438 = vst [vmem:[#allocation2 + $0x30] sm:$0xff] %v1374
      %1439 = vst [vmem:[#allocation2 + $0x38] sm:$0xff] %v1375
      %1440 = vst [vmem:[#allocation2 + $0x40] sm:$0xff] %v1376
      %1441 = vst [vmem:[#allocation2 + $0x48] sm:$0xff] %v1377
      %1442 = vst [vmem:[#allocation2 + $0x50] sm:$0xff] %v1378
      %1443 = vst [vmem:[#allocation2 + $0x58] sm:$0xff] %v1379
      %1444 = vst [vmem:[#allocation2 + $0x60] sm:$0xff] %v1380
      %1445 = vst [vmem:[#allocation2 + $0x68] sm:$0xff] %v1381
      %1446 = vst [vmem:[#allocation2 + $0x70] sm:$0xff] %v1382
      %1447 = vst [vmem:[#allocation2 + $0x78] sm:$0xff] %v1383
      %1448 = vst [vmem:[#allocation2 + $0x80] sm:$0xff] %v1384
      %1449 = vst [vmem:[#allocation2 + $0x88] sm:$0xff] %v1385
      %1450 = vst [vmem:[#allocation2 + $0x90] sm:$0xff] %v1386
      %1451 = vst [vmem:[#allocation2 + $0x98] sm:$0xff] %v1387
      %1452 = vst [vmem:[#allocation2 + $0xa0] sm:$0xff] %v1388
      %1453 = vst [vmem:[#allocation2 + $0xa8] sm:$0xff] %v1389
      %1454 = vst [vmem:[#allocation2 + $0xb0] sm:$0xff] %v1390
      %1455 = vst [vmem:[#allocation2 + $0xb8] sm:$0xff] %v1391
      %1456 = vst [vmem:[#allocation2 + $0xc0] sm:$0xff] %v1392
      %1457 = vst [vmem:[#allocation2 + $0xc8] sm:$0xff] %v1393
      %1458 = vst [vmem:[#allocation2 + $0xd0] sm:$0xff] %v1394
      %1459 = vst [vmem:[#allocation2 + $0xd8] sm:$0xff] %v1395
      %1460 = vst [vmem:[#allocation2 + $0xe0] sm:$0xff] %v1396
      %1461 = vst [vmem:[#allocation2 + $0xe8] sm:$0xff] %v1397
      %1462 = vst [vmem:[#allocation2 + $0xf0] sm:$0xff] %v1398
      %1463 = vst [vmem:[#allocation2 + $0xf8] sm:$0xff] %v1399
      %1464 = vst [vmem:[#allocation2 + $0x100] sm:$0xff] %v1400
      %1465 = vst [vmem:[#allocation2 + $0x108] sm:$0xff] %v1401
      %1466 = vst [vmem:[#allocation2 + $0x110] sm:$0xff] %v1402
      %1467 = vst [vmem:[#allocation2 + $0x118] sm:$0xff] %v1403
      %1468 = vst [vmem:[#allocation2 + $0x120] sm:$0xff] %v1404
      %1469 = vst [vmem:[#allocation2 + $0x128] sm:$0xff] %v1405
      %1470 = vst [vmem:[#allocation2 + $0x130] sm:$0xff] %v1406
      %1471 = vst [vmem:[#allocation2 + $0x138] sm:$0xff] %v1407
      %1472 = vst [vmem:[#allocation2 + $0x140] sm:$0xff] %v1408
      %1473 = vst [vmem:[#allocation2 + $0x148] sm:$0xff] %v1409
      %1474 = vst [vmem:[#allocation2 + $0x150] sm:$0xff] %v1410
      %1475 = vst [vmem:[#allocation2 + $0x158] sm:$0xff] %v1411
      %1476 = vst [vmem:[#allocation2 + $0x160] sm:$0xff] %v1412
      %1477 = vst [vmem:[#allocation2 + $0x168] sm:$0xff] %v1413
      %1478 = vst [vmem:[#allocation2 + $0x170] sm:$0xff] %v1414
      %1479 = vst [vmem:[#allocation2 + $0x178] sm:$0xff] %v1415
      %1480 = vst [vmem:[#allocation2 + $0x180] sm:$0xff] %v1416
      %1481 = vst [vmem:[#allocation2 + $0x188] sm:$0xff] %v1417
      %1482 = vst [vmem:[#allocation2 + $0x190] sm:$0xff] %v1418
      %1483 = vst [vmem:[#allocation2 + $0x198] sm:$0xff] %v1419
      %1484 = vst [vmem:[#allocation2 + $0x1a0] sm:$0xff] %v1420
      %1485 = vst [vmem:[#allocation2 + $0x1a8] sm:$0xff] %v1421
      %1486 = vst [vmem:[#allocation2 + $0x1b0] sm:$0xff] %v1422
      %1487 = vst [vmem:[#allocation2 + $0x1b8] sm:$0xff] %v1423
      %1488 = vst [vmem:[#allocation2 + $0x1c0] sm:$0xff] %v1424
      %1489 = vst [vmem:[#allocation2 + $0x1c8] sm:$0xff] %v1425
      %1490 = vst [vmem:[#allocation2 + $0x1d0] sm:$0xff] %v1426
      %1491 = vst [vmem:[#allocation2 + $0x1d8] sm:$0xff] %v1427
      %1492 = vst [vmem:[#allocation2 + $0x1e0] sm:$0xff] %v1428
      %1493 = vst [vmem:[#allocation2 + $0x1e8] sm:$0xff] %v1429
      %1494 = vst [vmem:[#allocation2 + $0x1f0] sm:$0xff] %v1430
      %1495 = vst [vmem:[#allocation2 + $0x1f8] sm:$0xff] %v1431
      %1496 = vst [vmem:[#allocation3] sm:$0xff] 0.0
      %1497 = vst [vmem:[#allocation3 + $0x8] sm:$0xff] 0.0
      %1498 = vst [vmem:[#allocation3 + $0x10] sm:$0xff] 0.0
      %1499 = vst [vmem:[#allocation3 + $0x18] sm:$0xff] 0.0
      %1500 = vst [vmem:[#allocation3 + $0x20] sm:$0xff] 0.0
      %1501 = vst [vmem:[#allocation3 + $0x28] sm:$0xff] 0.0
      %1502 = vst [vmem:[#allocation3 + $0x30] sm:$0xff] 0.0
      %1503 = vst [vmem:[#allocation3 + $0x38] sm:$0xff] 0.0
      %1504 = vst [vmem:[#allocation3 + $0x40] sm:$0xff] 0.0
      %1505 = vst [vmem:[#allocation3 + $0x48] sm:$0xff] 0.0
      %1506 = vst [vmem:[#allocation3 + $0x50] sm:$0xff] 0.0
      %1507 = vst [vmem:[#allocation3 + $0x58] sm:$0xff] 0.0
      %1508 = vst [vmem:[#allocation3 + $0x60] sm:$0xff] 0.0
      %1509 = vst [vmem:[#allocation3 + $0x68] sm:$0xff] 0.0
      %1510 = vst [vmem:[#allocation3 + $0x70] sm:$0xff] 0.0
      %1511 = vst [vmem:[#allocation3 + $0x78] sm:$0xff] 0.0
      %1512 = vst [vmem:[#allocation3 + $0x80] sm:$0xff] 0.0
      %1513 = vst [vmem:[#allocation3 + $0x88] sm:$0xff] 0.0
      %1514 = vst [vmem:[#allocation3 + $0x90] sm:$0xff] 0.0
      %1515 = vst [vmem:[#allocation3 + $0x98] sm:$0xff] 0.0
      %1516 = vst [vmem:[#allocation3 + $0xa0] sm:$0xff] 0.0
      %1517 = vst [vmem:[#allocation3 + $0xa8] sm:$0xff] 0.0
      %1518 = vst [vmem:[#allocation3 + $0xb0] sm:$0xff] 0.0
      %1519 = vst [vmem:[#allocation3 + $0xb8] sm:$0xff] 0.0
      %1520 = vst [vmem:[#allocation3 + $0xc0] sm:$0xff] 0.0
      %1521 = vst [vmem:[#allocation3 + $0xc8] sm:$0xff] 0.0
      %1522 = vst [vmem:[#allocation3 + $0xd0] sm:$0xff] 0.0
      %1523 = vst [vmem:[#allocation3 + $0xd8] sm:$0xff] 0.0
      %1524 = vst [vmem:[#allocation3 + $0xe0] sm:$0xff] 0.0
      %1525 = vst [vmem:[#allocation3 + $0xe8] sm:$0xff] 0.0
      %1526 = vst [vmem:[#allocation3 + $0xf0] sm:$0xff] 0.0
      %1527 = vst [vmem:[#allocation3 + $0xf8] sm:$0xff] 0.0
      %1528 = vst [vmem:[#allocation3 + $0x100] sm:$0xff] 0.0
      %1529 = vst [vmem:[#allocation3 + $0x108] sm:$0xff] 0.0
      %1530 = vst [vmem:[#allocation3 + $0x110] sm:$0xff] 0.0
      %1531 = vst [vmem:[#allocation3 + $0x118] sm:$0xff] 0.0
      %1532 = vst [vmem:[#allocation3 + $0x120] sm:$0xff] 0.0
      %1533 = vst [vmem:[#allocation3 + $0x128] sm:$0xff] 0.0
      %1534 = vst [vmem:[#allocation3 + $0x130] sm:$0xff] 0.0
      %1535 = vst [vmem:[#allocation3 + $0x138] sm:$0xff] 0.0
      %1536 = vst [vmem:[#allocation3 + $0x140] sm:$0xff] 0.0
      %1537 = vst [vmem:[#allocation3 + $0x148] sm:$0xff] 0.0
      %1538 = vst [vmem:[#allocation3 + $0x150] sm:$0xff] 0.0
      %1539 = vst [vmem:[#allocation3 + $0x158] sm:$0xff] 0.0
      %1540 = vst [vmem:[#allocation3 + $0x160] sm:$0xff] 0.0
      %1541 = vst [vmem:[#allocation3 + $0x168] sm:$0xff] 0.0
      %1542 = vst [vmem:[#allocation3 + $0x170] sm:$0xff] 0.0
      %1543 = vst [vmem:[#allocation3 + $0x178] sm:$0xff] 0.0
      %1544 = vst [vmem:[#allocation3 + $0x180] sm:$0xff] 0.0
      %1545 = vst [vmem:[#allocation3 + $0x188] sm:$0xff] 0.0
      %1546 = vst [vmem:[#allocation3 + $0x190] sm:$0xff] 0.0
      %1547 = vst [vmem:[#allocation3 + $0x198] sm:$0xff] 0.0
      %1548 = vst [vmem:[#allocation3 + $0x1a0] sm:$0xff] 0.0
      %1549 = vst [vmem:[#allocation3 + $0x1a8] sm:$0xff] 0.0
      %1550 = vst [vmem:[#allocation3 + $0x1b0] sm:$0xff] 0.0
      %1551 = vst [vmem:[#allocation3 + $0x1b8] sm:$0xff] 0.0
      %1552 = vst [vmem:[#allocation3 + $0x1c0] sm:$0xff] 0.0
      %1553 = vst [vmem:[#allocation3 + $0x1c8] sm:$0xff] 0.0
      %1554 = vst [vmem:[#allocation3 + $0x1d0] sm:$0xff] 0.0
      %1555 = vst [vmem:[#allocation3 + $0x1d8] sm:$0xff] 0.0
      %1556 = vst [vmem:[#allocation3 + $0x1e0] sm:$0xff] 0.0
      %1557 = vst [vmem:[#allocation3 + $0x1e8] sm:$0xff] 0.0
      %1558 = vst [vmem:[#allocation3 + $0x1f0] sm:$0xff] 0.0
      %1559 = vst [vmem:[#allocation3 + $0x1f8] sm:$0xff] 0.0
      %1560 = vst [vmem:[#allocation3 + $0x200] sm:$0xff] 0.0
      %1561 = vst [vmem:[#allocation3 + $0x208] sm:$0xff] 0.0
      %1562 = vst [vmem:[#allocation3 + $0x210] sm:$0xff] 0.0
      %1563 = vst [vmem:[#allocation3 + $0x218] sm:$0xff] 0.0
      %1564 = vst [vmem:[#allocation3 + $0x220] sm:$0xff] 0.0
      %1565 = vst [vmem:[#allocation3 + $0x228] sm:$0xff] 0.0
      %1566 = vst [vmem:[#allocation3 + $0x230] sm:$0xff] 0.0
      %1567 = vst [vmem:[#allocation3 + $0x238] sm:$0xff] 0.0
      %1568 = vst [vmem:[#allocation3 + $0x240] sm:$0xff] 0.0
      %1569 = vst [vmem:[#allocation3 + $0x248] sm:$0xff] 0.0
      %1570 = vst [vmem:[#allocation3 + $0x250] sm:$0xff] 0.0
      %1571 = vst [vmem:[#allocation3 + $0x258] sm:$0xff] 0.0
      %1572 = vst [vmem:[#allocation3 + $0x260] sm:$0xff] 0.0
      %1573 = vst [vmem:[#allocation3 + $0x268] sm:$0xff] 0.0
      %1574 = vst [vmem:[#allocation3 + $0x270] sm:$0xff] 0.0
      %1575 = vst [vmem:[#allocation3 + $0x278] sm:$0xff] 0.0
      %1576 = vst [vmem:[#allocation3 + $0x280] sm:$0xff] 0.0
      %1577 = vst [vmem:[#allocation3 + $0x288] sm:$0xff] 0.0
      %1578 = vst [vmem:[#allocation3 + $0x290] sm:$0xff] 0.0
      %1579 = vst [vmem:[#allocation3 + $0x298] sm:$0xff] 0.0
      %1580 = vst [vmem:[#allocation3 + $0x2a0] sm:$0xff] 0.0
      %1581 = vst [vmem:[#allocation3 + $0x2a8] sm:$0xff] 0.0
      %1582 = vst [vmem:[#allocation3 + $0x2b0] sm:$0xff] 0.0
      %1583 = vst [vmem:[#allocation3 + $0x2b8] sm:$0xff] 0.0
      %1584 = vst [vmem:[#allocation3 + $0x2c0] sm:$0xff] 0.0
      %1585 = vst [vmem:[#allocation3 + $0x2c8] sm:$0xff] 0.0
      %1586 = vst [vmem:[#allocation3 + $0x2d0] sm:$0xff] 0.0
      %1587 = vst [vmem:[#allocation3 + $0x2d8] sm:$0xff] 0.0
      %1588 = vst [vmem:[#allocation3 + $0x2e0] sm:$0xff] 0.0
      %1589 = vst [vmem:[#allocation3 + $0x2e8] sm:$0xff] 0.0
      %1590 = vst [vmem:[#allocation3 + $0x2f0] sm:$0xff] 0.0
      %1591 = vst [vmem:[#allocation3 + $0x2f8] sm:$0xff] 0.0
      %1592 = vst [vmem:[#allocation3 + $0x300] sm:$0xff] 0.0
      %1593 = vst [vmem:[#allocation3 + $0x308] sm:$0xff] 0.0
      %1594 = vst [vmem:[#allocation3 + $0x310] sm:$0xff] 0.0
      %1595 = vst [vmem:[#allocation3 + $0x318] sm:$0xff] 0.0
      %1596 = vst [vmem:[#allocation3 + $0x320] sm:$0xff] 0.0
      %1597 = vst [vmem:[#allocation3 + $0x328] sm:$0xff] 0.0
      %1598 = vst [vmem:[#allocation3 + $0x330] sm:$0xff] 0.0
      %1599 = vst [vmem:[#allocation3 + $0x338] sm:$0xff] 0.0
      %1600 = vst [vmem:[#allocation3 + $0x340] sm:$0xff] 0.0
      %1601 = vst [vmem:[#allocation3 + $0x348] sm:$0xff] 0.0
      %1602 = vst [vmem:[#allocation3 + $0x350] sm:$0xff] 0.0
      %1603 = vst [vmem:[#allocation3 + $0x358] sm:$0xff] 0.0
      %1604 = vst [vmem:[#allocation3 + $0x360] sm:$0xff] 0.0
      %1605 = vst [vmem:[#allocation3 + $0x368] sm:$0xff] 0.0
      %1606 = vst [vmem:[#allocation3 + $0x370] sm:$0xff] 0.0
      %1607 = vst [vmem:[#allocation3 + $0x378] sm:$0xff] 0.0
      %1608 = vst [vmem:[#allocation3 + $0x380] sm:$0xff] 0.0
      %1609 = vst [vmem:[#allocation3 + $0x388] sm:$0xff] 0.0
      %1610 = vst [vmem:[#allocation3 + $0x390] sm:$0xff] 0.0
      %1611 = vst [vmem:[#allocation3 + $0x398] sm:$0xff] 0.0
      %1612 = vst [vmem:[#allocation3 + $0x3a0] sm:$0xff] 0.0
      %1613 = vst [vmem:[#allocation3 + $0x3a8] sm:$0xff] 0.0
      %1614 = vst [vmem:[#allocation3 + $0x3b0] sm:$0xff] 0.0
      %1615 = vst [vmem:[#allocation3 + $0x3b8] sm:$0xff] 0.0
      %1616 = vst [vmem:[#allocation3 + $0x3c0] sm:$0xff] 0.0
      %1617 = vst [vmem:[#allocation3 + $0x3c8] sm:$0xff] 0.0
      %1618 = vst [vmem:[#allocation3 + $0x3d0] sm:$0xff] 0.0
      %1619 = vst [vmem:[#allocation3 + $0x3d8] sm:$0xff] 0.0
      %1620 = vst [vmem:[#allocation3 + $0x3e0] sm:$0xff] 0.0
      %1621 = vst [vmem:[#allocation3 + $0x3e8] sm:$0xff] 0.0
      %1622 = vst [vmem:[#allocation3 + $0x3f0] sm:$0xff] 0.0
      %1623 = vst [vmem:[#allocation3 + $0x3f8] sm:$0xff] 0.0
    $region41: #{dis_forward.1} parent=1 // pred_fallthru
      _
    %v1624 = vld [vmem:[#allocation2] sm:$0xff]
    %v1625 = vld [vmem:[#allocation2 + $0x8] sm:$0xff]
    %v1626 = vld [vmem:[#allocation2 + $0x10] sm:$0xff]
    %v1627 = vld [vmem:[#allocation2 + $0x18] sm:$0xff]
    %v1628 = vld [vmem:[#allocation2 + $0x20] sm:$0xff]
    %v1629 = vld [vmem:[#allocation2 + $0x28] sm:$0xff]
    %v1630 = vld [vmem:[#allocation2 + $0x30] sm:$0xff]
    %v1631 = vld [vmem:[#allocation2 + $0x38] sm:$0xff]
    %v1632 = vld [vmem:[#allocation2 + $0x40] sm:$0xff]
    %v1633 = vld [vmem:[#allocation2 + $0x48] sm:$0xff]
    %v1634 = vld [vmem:[#allocation2 + $0x50] sm:$0xff]
    %v1635 = vld [vmem:[#allocation2 + $0x58] sm:$0xff]
    %v1636 = vld [vmem:[#allocation2 + $0x60] sm:$0xff]
    %v1637 = vld [vmem:[#allocation2 + $0x68] sm:$0xff]
    %v1638 = vld [vmem:[#allocation2 + $0x70] sm:$0xff]
    %v1639 = vld [vmem:[#allocation2 + $0x78] sm:$0xff]
    %v1640 = vld [vmem:[#allocation2 + $0x80] sm:$0xff]
    %v1641 = vld [vmem:[#allocation2 + $0x88] sm:$0xff]
    %v1642 = vld [vmem:[#allocation2 + $0x90] sm:$0xff]
    %v1643 = vld [vmem:[#allocation2 + $0x98] sm:$0xff]
    %v1644 = vld [vmem:[#allocation2 + $0xa0] sm:$0xff]
    %v1645 = vld [vmem:[#allocation2 + $0xa8] sm:$0xff]
    %v1646 = vld [vmem:[#allocation2 + $0xb0] sm:$0xff]
    %v1647 = vld [vmem:[#allocation2 + $0xb8] sm:$0xff]
    %v1648 = vld [vmem:[#allocation2 + $0xc0] sm:$0xff]
    %v1649 = vld [vmem:[#allocation2 + $0xc8] sm:$0xff]
    %v1650 = vld [vmem:[#allocation2 + $0xd0] sm:$0xff]
    %v1651 = vld [vmem:[#allocation2 + $0xd8] sm:$0xff]
    %v1652 = vld [vmem:[#allocation2 + $0xe0] sm:$0xff]
    %v1653 = vld [vmem:[#allocation2 + $0xe8] sm:$0xff]
    %v1654 = vld [vmem:[#allocation2 + $0xf0] sm:$0xff]
    %v1655 = vld [vmem:[#allocation2 + $0xf8] sm:$0xff]
    %v1656 = vld [vmem:[#allocation2 + $0x100] sm:$0xff]
    %v1657 = vld [vmem:[#allocation2 + $0x108] sm:$0xff]
    %v1658 = vld [vmem:[#allocation2 + $0x110] sm:$0xff]
    %v1659 = vld [vmem:[#allocation2 + $0x118] sm:$0xff]
    %v1660 = vld [vmem:[#allocation2 + $0x120] sm:$0xff]
    %v1661 = vld [vmem:[#allocation2 + $0x128] sm:$0xff]
    %v1662 = vld [vmem:[#allocation2 + $0x130] sm:$0xff]
    %v1663 = vld [vmem:[#allocation2 + $0x138] sm:$0xff]
    %v1664 = vld [vmem:[#allocation2 + $0x140] sm:$0xff]
    %v1665 = vld [vmem:[#allocation2 + $0x148] sm:$0xff]
    %v1666 = vld [vmem:[#allocation2 + $0x150] sm:$0xff]
    %v1667 = vld [vmem:[#allocation2 + $0x158] sm:$0xff]
    %v1668 = vld [vmem:[#allocation2 + $0x160] sm:$0xff]
    %v1669 = vld [vmem:[#allocation2 + $0x168] sm:$0xff]
    %v1670 = vld [vmem:[#allocation2 + $0x170] sm:$0xff]
    %v1671 = vld [vmem:[#allocation2 + $0x178] sm:$0xff]
    %v1672 = vld [vmem:[#allocation2 + $0x180] sm:$0xff]
    %v1673 = vld [vmem:[#allocation2 + $0x188] sm:$0xff]
    %v1674 = vld [vmem:[#allocation2 + $0x190] sm:$0xff]
    %v1675 = vld [vmem:[#allocation2 + $0x198] sm:$0xff]
    %v1676 = vld [vmem:[#allocation2 + $0x1a0] sm:$0xff]
    %v1677 = vld [vmem:[#allocation2 + $0x1a8] sm:$0xff]
    %v1678 = vld [vmem:[#allocation2 + $0x1b0] sm:$0xff]
    %v1679 = vld [vmem:[#allocation2 + $0x1b8] sm:$0xff]
    %v1680 = vld [vmem:[#allocation2 + $0x1c0] sm:$0xff]
    %v1681 = vld [vmem:[#allocation2 + $0x1c8] sm:$0xff]
    %v1682 = vld [vmem:[#allocation2 + $0x1d0] sm:$0xff]
    %v1683 = vld [vmem:[#allocation2 + $0x1d8] sm:$0xff]
    %v1684 = vld [vmem:[#allocation2 + $0x1e0] sm:$0xff]
    %v1685 = vld [vmem:[#allocation2 + $0x1e8] sm:$0xff]
    %v1686 = vld [vmem:[#allocation2 + $0x1f0] sm:$0xff]
    %v1687 = vld [vmem:[#allocation2 + $0x1f8] sm:$0xff]
    %v1688 = vld [vmem:[%s3] sm:$0xff]
    %v1689 = vld [vmem:[%s3 + $0x8] sm:$0xff]
    %v1690 = vld [vmem:[%s3 + $0x10] sm:$0xff]
    %v1691 = vld [vmem:[%s3 + $0x18] sm:$0xff]
    %v1692 = vld [vmem:[%s3 + $0x20] sm:$0xff]
    %v1693 = vld [vmem:[%s3 + $0x28] sm:$0xff]
    %v1694 = vld [vmem:[%s3 + $0x30] sm:$0xff]
    %v1695 = vld [vmem:[%s3 + $0x38] sm:$0xff]
    %v1696 = vld [vmem:[%s3 + $0x40] sm:$0xff]
    %v1697 = vld [vmem:[%s3 + $0x48] sm:$0xff]
    %v1698 = vld [vmem:[%s3 + $0x50] sm:$0xff]
    %v1699 = vld [vmem:[%s3 + $0x58] sm:$0xff]
    %v1700 = vld [vmem:[%s3 + $0x60] sm:$0xff]
    %v1701 = vld [vmem:[%s3 + $0x68] sm:$0xff]
    %v1702 = vld [vmem:[%s3 + $0x70] sm:$0xff]
    %v1703 = vld [vmem:[%s3 + $0x78] sm:$0xff]
    %v1704 = vld [vmem:[%s3 + $0x80] sm:$0xff]
    %v1705 = vld [vmem:[%s3 + $0x88] sm:$0xff]
    %v1706 = vld [vmem:[%s3 + $0x90] sm:$0xff]
    %v1707 = vld [vmem:[%s3 + $0x98] sm:$0xff]
    %v1708 = vld [vmem:[%s3 + $0xa0] sm:$0xff]
    %v1709 = vld [vmem:[%s3 + $0xa8] sm:$0xff]
    %v1710 = vld [vmem:[%s3 + $0xb0] sm:$0xff]
    %v1711 = vld [vmem:[%s3 + $0xb8] sm:$0xff]
    %v1712 = vld [vmem:[%s3 + $0xc0] sm:$0xff]
    %v1713 = vld [vmem:[%s3 + $0xc8] sm:$0xff]
    %v1714 = vld [vmem:[%s3 + $0xd0] sm:$0xff]
    %v1715 = vld [vmem:[%s3 + $0xd8] sm:$0xff]
    %v1716 = vld [vmem:[%s3 + $0xe0] sm:$0xff]
    %v1717 = vld [vmem:[%s3 + $0xe8] sm:$0xff]
    %v1718 = vld [vmem:[%s3 + $0xf0] sm:$0xff]
    %v1719 = vld [vmem:[%s3 + $0xf8] sm:$0xff]
    %v1720 = vld [vmem:[%s4] sm:$0x3]
    %v1722 = vlaneseq
    %v1723 = vshrl.u32 %v1722, 7
    %v1724 = vsub.s32 0, %v1723
    %v1725 = vrot.slane %v1720, %v1724
    %v1726 = vlaneseq
    %v1727 = vshrl.u32 %v1726, 7
    %v1728 = vsub.s32 1, %v1727
    %v1729 = vrot.slane %v1720, %v1728
    %v1764 = vunpack.c.l.b16 %v1688
    %v1765 = vunpack.c.h.b16 %v1688
    %v1766 = vunpack.c.l.b16 %v1689
    %v1767 = vunpack.c.h.b16 %v1689
    %v1768 = vunpack.c.l.b16 %v1690
    %v1769 = vunpack.c.h.b16 %v1690
    %v1770 = vunpack.c.l.b16 %v1691
    %v1771 = vunpack.c.h.b16 %v1691
    %v1772 = vunpack.c.l.b16 %v1692
    %v1773 = vunpack.c.h.b16 %v1692
    %v1774 = vunpack.c.l.b16 %v1693
    %v1775 = vunpack.c.h.b16 %v1693
    %v1776 = vunpack.c.l.b16 %v1694
    %v1777 = vunpack.c.h.b16 %v1694
    %v1778 = vunpack.c.l.b16 %v1695
    %v1779 = vunpack.c.h.b16 %v1695
    %v1780 = vunpack.c.l.b16 %v1696
    %v1781 = vunpack.c.h.b16 %v1696
    %v1782 = vunpack.c.l.b16 %v1697
    %v1783 = vunpack.c.h.b16 %v1697
    %v1784 = vunpack.c.l.b16 %v1698
    %v1785 = vunpack.c.h.b16 %v1698
    %v1786 = vunpack.c.l.b16 %v1699
    %v1787 = vunpack.c.h.b16 %v1699
    %v1788 = vunpack.c.l.b16 %v1700
    %v1789 = vunpack.c.h.b16 %v1700
    %v1790 = vunpack.c.l.b16 %v1701
    %v1791 = vunpack.c.h.b16 %v1701
    %v1792 = vunpack.c.l.b16 %v1702
    %v1793 = vunpack.c.h.b16 %v1702
    %v1794 = vunpack.c.l.b16 %v1703
    %v1795 = vunpack.c.h.b16 %v1703
    %v1796 = vunpack.c.l.b16 %v1704
    %v1797 = vunpack.c.h.b16 %v1704
    %v1798 = vunpack.c.l.b16 %v1705
    %v1799 = vunpack.c.h.b16 %v1705
    %v1800 = vunpack.c.l.b16 %v1706
    %v1801 = vunpack.c.h.b16 %v1706
    %v1802 = vunpack.c.l.b16 %v1707
    %v1803 = vunpack.c.h.b16 %v1707
    %v1804 = vunpack.c.l.b16 %v1708
    %v1805 = vunpack.c.h.b16 %v1708
    %v1806 = vunpack.c.l.b16 %v1709
    %v1807 = vunpack.c.h.b16 %v1709
    %v1808 = vunpack.c.l.b16 %v1710
    %v1809 = vunpack.c.h.b16 %v1710
    %v1810 = vunpack.c.l.b16 %v1711
    %v1811 = vunpack.c.h.b16 %v1711
    %v1812 = vunpack.c.l.b16 %v1712
    %v1813 = vunpack.c.h.b16 %v1712
    %v1814 = vunpack.c.l.b16 %v1713
    %v1815 = vunpack.c.h.b16 %v1713
    %v1816 = vunpack.c.l.b16 %v1714
    %v1817 = vunpack.c.h.b16 %v1714
    %v1818 = vunpack.c.l.b16 %v1715
    %v1819 = vunpack.c.h.b16 %v1715
    %v1820 = vunpack.c.l.b16 %v1716
    %v1821 = vunpack.c.h.b16 %v1716
    %v1822 = vunpack.c.l.b16 %v1717
    %v1823 = vunpack.c.h.b16 %v1717
    %v1824 = vunpack.c.l.b16 %v1718
    %v1825 = vunpack.c.h.b16 %v1718
    %v1826 = vunpack.c.l.b16 %v1719
    %v1827 = vunpack.c.h.b16 %v1719
    %v1828 = vpack.c.b16 %v1766, %v1764
    %v1829 = vpack.c.b16 %v1767, %v1765
    %v1830 = vpack.c.b16 %v1770, %v1768
    %v1831 = vpack.c.b16 %v1771, %v1769
    %v1832 = vpack.c.b16 %v1774, %v1772
    %v1833 = vpack.c.b16 %v1775, %v1773
    %v1834 = vpack.c.b16 %v1778, %v1776
    %v1835 = vpack.c.b16 %v1779, %v1777
    %v1836 = vpack.c.b16 %v1782, %v1780
    %v1837 = vpack.c.b16 %v1783, %v1781
    %v1838 = vpack.c.b16 %v1786, %v1784
    %v1839 = vpack.c.b16 %v1787, %v1785
    %v1840 = vpack.c.b16 %v1790, %v1788
    %v1841 = vpack.c.b16 %v1791, %v1789
    %v1842 = vpack.c.b16 %v1794, %v1792
    %v1843 = vpack.c.b16 %v1795, %v1793
    %v1844 = vpack.c.b16 %v1798, %v1796
    %v1845 = vpack.c.b16 %v1799, %v1797
    %v1846 = vpack.c.b16 %v1802, %v1800
    %v1847 = vpack.c.b16 %v1803, %v1801
    %v1848 = vpack.c.b16 %v1806, %v1804
    %v1849 = vpack.c.b16 %v1807, %v1805
    %v1850 = vpack.c.b16 %v1810, %v1808
    %v1851 = vpack.c.b16 %v1811, %v1809
    %v1852 = vpack.c.b16 %v1814, %v1812
    %v1853 = vpack.c.b16 %v1815, %v1813
    %v1854 = vpack.c.b16 %v1818, %v1816
    %v1855 = vpack.c.b16 %v1819, %v1817
    %v1856 = vpack.c.b16 %v1822, %v1820
    %v1857 = vpack.c.b16 %v1823, %v1821
    %v1858 = vpack.c.b16 %v1826, %v1824
    %v1859 = vpack.c.b16 %v1827, %v1825
    %1892 = vmatprep.subr.bf16.mxu0 %v1829
    %1893 = vmatpush1.bf16.msra.mxu0 %v1828
    %1894 = vmatprep.subr.bf16.mxu0 %v1831
    %1895 = vmatpush1.bf16.msra.mxu0 %v1830
    %1896 = vmatprep.subr.bf16.mxu0 %v1833
    %1897 = vmatpush1.bf16.msra.mxu0 %v1832
    %1898 = vmatprep.subr.bf16.mxu0 %v1835
    %1899 = vmatpush1.bf16.msra.mxu0 %v1834
    %1900 = vmatprep.subr.bf16.mxu0 %v1837
    %1901 = vmatpush1.bf16.msra.mxu0 %v1836
    %1902 = vmatprep.subr.bf16.mxu0 %v1839
    %1903 = vmatpush1.bf16.msra.mxu0 %v1838
    %1904 = vmatprep.subr.bf16.mxu0 %v1841
    %1905 = vmatpush1.bf16.msra.mxu0 %v1840
    %1906 = vmatprep.subr.bf16.mxu0 %v1843
    %1907 = vmatpush1.bf16.msra.mxu0 %v1842
    %1908 = vmatprep.subr.bf16.mxu0 %v1845
    %1909 = vmatpush1.bf16.msra.mxu0 %v1844
    %1910 = vmatprep.subr.bf16.mxu0 %v1847
    %1911 = vmatpush1.bf16.msra.mxu0 %v1846
    %1912 = vmatprep.subr.bf16.mxu0 %v1849
    %1913 = vmatpush1.bf16.msra.mxu0 %v1848
    %1914 = vmatprep.subr.bf16.mxu0 %v1851
    %1915 = vmatpush1.bf16.msra.mxu0 %v1850
    %1916 = vmatprep.subr.bf16.mxu0 %v1853
    %1917 = vmatpush1.bf16.msra.mxu0 %v1852
    %1918 = vmatprep.subr.bf16.mxu0 %v1855
    %1919 = vmatpush1.bf16.msra.mxu0 %v1854
    %1920 = vmatprep.subr.bf16.mxu0 %v1857
    %1921 = vmatpush1.bf16.msra.mxu0 %v1856
    %1922 = vmatprep.subr.bf16.mxu0 %v1859
    %1923 = vmatpush1.bf16.msra.mxu0 %v1858
    %1924 = vmatprep.mubr.bf16.mxu0 %v1625
    %1925 = vmatmul.mubr.bf16.gmra.mrb[0].mxu0 %v1624
    %v1926 = vpop.f32.mrb[0].mxu0
    %v1927 = vadd.f32 %v1725, %v1926
    %v1928 = vpop.f32.mrb[0].mxu0
    %v1929 = vadd.f32 %v1729, %v1928
    %v1930 = vpop.f32.mrb[0].mxu0
    %v1931 = vadd.f32 %v1725, %v1930
    %v1932 = vpop.f32.mrb[0].mxu0
    %v1933 = vadd.f32 %v1729, %v1932
    %1934 = vmatprep.mubr.bf16.mxu0 %v1627
    %1935 = vmatmul.mubr.bf16.gmra.mrb[0].mxu0 %v1626
    %v1936 = vpop.f32.mrb[0].mxu0
    %v1937 = vadd.f32 %v1725, %v1936
    %v1938 = vpop.f32.mrb[0].mxu0
    %v1939 = vadd.f32 %v1729, %v1938
    %v1940 = vpop.f32.mrb[0].mxu0
    %v1941 = vadd.f32 %v1725, %v1940
    %v1942 = vpop.f32.mrb[0].mxu0
    %v1943 = vadd.f32 %v1729, %v1942
    %1944 = vmatprep.mubr.bf16.mxu0 %v1629
    %1945 = vmatmul.mubr.bf16.gmra.mrb[0].mxu0 %v1628
    %v1946 = vpop.f32.mrb[0].mxu0
    %v1947 = vadd.f32 %v1725, %v1946
    %v1948 = vpop.f32.mrb[0].mxu0
    %v1949 = vadd.f32 %v1729, %v1948
    %v1950 = vpop.f32.mrb[0].mxu0
    %v1951 = vadd.f32 %v1725, %v1950
    %v1952 = vpop.f32.mrb[0].mxu0
    %v1953 = vadd.f32 %v1729, %v1952
    %1954 = vmatprep.mubr.bf16.mxu0 %v1631
    %1955 = vmatmul.mubr.bf16.gmra.mrb[0].mxu0 %v1630
    %v1956 = vpop.f32.mrb[0].mxu0
    %v1957 = vadd.f32 %v1725, %v1956
    %v1958 = vpop.f32.mrb[0].mxu0
    %v1959 = vadd.f32 %v1729, %v1958
    %v1960 = vpop.f32.mrb[0].mxu0
    %v1961 = vadd.f32 %v1725, %v1960
    %v1962 = vpop.f32.mrb[0].mxu0
    %v1963 = vadd.f32 %v1729, %v1962
    %1964 = vmatprep.mubr.bf16.mxu0 %v1633
    %1965 = vmatmul.mubr.bf16.gmra.mrb[0].mxu0 %v1632
    %v1966 = vpop.f32.mrb[0].mxu0
    %v1967 = vadd.f32 %v1725, %v1966
    %v1968 = vpop.f32.mrb[0].mxu0
    %v1969 = vadd.f32 %v1729, %v1968
    %v1970 = vpop.f32.mrb[0].mxu0
    %v1971 = vadd.f32 %v1725, %v1970
    %v1972 = vpop.f32.mrb[0].mxu0
    %v1973 = vadd.f32 %v1729, %v1972
    %1974 = vmatprep.mubr.bf16.mxu0 %v1635
    %1975 = vmatmul.mubr.bf16.gmra.mrb[0].mxu0 %v1634
    %v1976 = vpop.f32.mrb[0].mxu0
    %v1977 = vadd.f32 %v1725, %v1976
    %v1978 = vpop.f32.mrb[0].mxu0
    %v1979 = vadd.f32 %v1729, %v1978
    %v1980 = vpop.f32.mrb[0].mxu0
    %v1981 = vadd.f32 %v1725, %v1980
    %v1982 = vpop.f32.mrb[0].mxu0
    %v1983 = vadd.f32 %v1729, %v1982
    %1984 = vmatprep.mubr.bf16.mxu0 %v1637
    %1985 = vmatmul.mubr.bf16.gmra.mrb[0].mxu0 %v1636
    %v1986 = vpop.f32.mrb[0].mxu0
    %v1987 = vadd.f32 %v1725, %v1986
    %v1988 = vpop.f32.mrb[0].mxu0
    %v1989 = vadd.f32 %v1729, %v1988
    %v1990 = vpop.f32.mrb[0].mxu0
    %v1991 = vadd.f32 %v1725, %v1990
    %v1992 = vpop.f32.mrb[0].mxu0
    %v1993 = vadd.f32 %v1729, %v1992
    %1994 = vmatprep.mubr.bf16.mxu0 %v1639
    %1995 = vmatmul.mubr.bf16.gmra.mrb[0].mxu0 %v1638
    %v1996 = vpop.f32.mrb[0].mxu0
    %v1997 = vadd.f32 %v1725, %v1996
    %v1998 = vpop.f32.mrb[0].mxu0
    %v1999 = vadd.f32 %v1729, %v1998
    %v2000 = vpop.f32.mrb[0].mxu0
    %v2001 = vadd.f32 %v1725, %v2000
    %v2002 = vpop.f32.mrb[0].mxu0
    %v2003 = vadd.f32 %v1729, %v2002
    %2004 = vmatprep.mubr.bf16.mxu0 %v1641
    %2005 = vmatmul.mubr.bf16.gmra.mrb[0].mxu0 %v1640
    %v2006 = vpop.f32.mrb[0].mxu0
    %v2007 = vadd.f32 %v1725, %v2006
    %v2008 = vpop.f32.mrb[0].mxu0
    %v2009 = vadd.f32 %v1729, %v2008
    %v2010 = vpop.f32.mrb[0].mxu0
    %v2011 = vadd.f32 %v1725, %v2010
    %v2012 = vpop.f32.mrb[0].mxu0
    %v2013 = vadd.f32 %v1729, %v2012
    %2014 = vmatprep.mubr.bf16.mxu0 %v1643
    %2015 = vmatmul.mubr.bf16.gmra.mrb[0].mxu0 %v1642
    %v2016 = vpop.f32.mrb[0].mxu0
    %v2017 = vadd.f32 %v1725, %v2016
    %v2018 = vpop.f32.mrb[0].mxu0
    %v2019 = vadd.f32 %v1729, %v2018
    %v2020 = vpop.f32.mrb[0].mxu0
    %v2021 = vadd.f32 %v1725, %v2020
    %v2022 = vpop.f32.mrb[0].mxu0
    %v2023 = vadd.f32 %v1729, %v2022
    %2024 = vmatprep.mubr.bf16.mxu0 %v1645
    %2025 = vmatmul.mubr.bf16.gmra.mrb[0].mxu0 %v1644
    %v2026 = vpop.f32.mrb[0].mxu0
    %v2027 = vadd.f32 %v1725, %v2026
    %v2028 = vpop.f32.mrb[0].mxu0
    %v2029 = vadd.f32 %v1729, %v2028
    %v2030 = vpop.f32.mrb[0].mxu0
    %v2031 = vadd.f32 %v1725, %v2030
    %v2032 = vpop.f32.mrb[0].mxu0
    %v2033 = vadd.f32 %v1729, %v2032
    %2034 = vmatprep.mubr.bf16.mxu0 %v1647
    %2035 = vmatmul.mubr.bf16.gmra.mrb[0].mxu0 %v1646
    %v2036 = vpop.f32.mrb[0].mxu0
    %v2037 = vadd.f32 %v1725, %v2036
    %v2038 = vpop.f32.mrb[0].mxu0
    %v2039 = vadd.f32 %v1729, %v2038
    %v2040 = vpop.f32.mrb[0].mxu0
    %v2041 = vadd.f32 %v1725, %v2040
    %v2042 = vpop.f32.mrb[0].mxu0
    %v2043 = vadd.f32 %v1729, %v2042
    %2044 = vmatprep.mubr.bf16.mxu0 %v1649
    %2045 = vmatmul.mubr.bf16.gmra.mrb[0].mxu0 %v1648
    %v2046 = vpop.f32.mrb[0].mxu0
    %v2047 = vadd.f32 %v1725, %v2046
    %v2048 = vpop.f32.mrb[0].mxu0
    %v2049 = vadd.f32 %v1729, %v2048
    %v2050 = vpop.f32.mrb[0].mxu0
    %v2051 = vadd.f32 %v1725, %v2050
    %v2052 = vpop.f32.mrb[0].mxu0
    %v2053 = vadd.f32 %v1729, %v2052
    %2054 = vmatprep.mubr.bf16.mxu0 %v1651
    %2055 = vmatmul.mubr.bf16.gmra.mrb[0].mxu0 %v1650
    %v2056 = vpop.f32.mrb[0].mxu0
    %v2057 = vadd.f32 %v1725, %v2056
    %v2058 = vpop.f32.mrb[0].mxu0
    %v2059 = vadd.f32 %v1729, %v2058
    %v2060 = vpop.f32.mrb[0].mxu0
    %v2061 = vadd.f32 %v1725, %v2060
    %v2062 = vpop.f32.mrb[0].mxu0
    %v2063 = vadd.f32 %v1729, %v2062
    %2064 = vmatprep.mubr.bf16.mxu0 %v1653
    %2065 = vmatmul.mubr.bf16.gmra.mrb[0].mxu0 %v1652
    %v2066 = vpop.f32.mrb[0].mxu0
    %v2067 = vadd.f32 %v1725, %v2066
    %v2068 = vpop.f32.mrb[0].mxu0
    %v2069 = vadd.f32 %v1729, %v2068
    %v2070 = vpop.f32.mrb[0].mxu0
    %v2071 = vadd.f32 %v1725, %v2070
    %v2072 = vpop.f32.mrb[0].mxu0
    %v2073 = vadd.f32 %v1729, %v2072
    %2074 = vmatprep.mubr.bf16.mxu0 %v1655
    %2075 = vmatmul.mubr.bf16.gmra.mrb[0].mxu0 %v1654
    %v2076 = vpop.f32.mrb[0].mxu0
    %v2077 = vadd.f32 %v1725, %v2076
    %v2078 = vpop.f32.mrb[0].mxu0
    %v2079 = vadd.f32 %v1729, %v2078
    %v2080 = vpop.f32.mrb[0].mxu0
    %v2081 = vadd.f32 %v1725, %v2080
    %v2082 = vpop.f32.mrb[0].mxu0
    %v2083 = vadd.f32 %v1729, %v2082
    %2084 = vmatprep.mubr.bf16.mxu0 %v1657
    %2085 = vmatmul.mubr.bf16.gmra.mrb[0].mxu0 %v1656
    %v2086 = vpop.f32.mrb[0].mxu0
    %v2087 = vadd.f32 %v1725, %v2086
    %v2088 = vpop.f32.mrb[0].mxu0
    %v2089 = vadd.f32 %v1729, %v2088
    %v2090 = vpop.f32.mrb[0].mxu0
    %v2091 = vadd.f32 %v1725, %v2090
    %v2092 = vpop.f32.mrb[0].mxu0
    %v2093 = vadd.f32 %v1729, %v2092
    %2094 = vmatprep.mubr.bf16.mxu0 %v1659
    %2095 = vmatmul.mubr.bf16.gmra.mrb[0].mxu0 %v1658
    %v2096 = vpop.f32.mrb[0].mxu0
    %v2097 = vadd.f32 %v1725, %v2096
    %v2098 = vpop.f32.mrb[0].mxu0
    %v2099 = vadd.f32 %v1729, %v2098
    %v2100 = vpop.f32.mrb[0].mxu0
    %v2101 = vadd.f32 %v1725, %v2100
    %v2102 = vpop.f32.mrb[0].mxu0
    %v2103 = vadd.f32 %v1729, %v2102
    %2104 = vmatprep.mubr.bf16.mxu0 %v1661
    %2105 = vmatmul.mubr.bf16.gmra.mrb[0].mxu0 %v1660
    %v2106 = vpop.f32.mrb[0].mxu0
    %v2107 = vadd.f32 %v1725, %v2106
    %v2108 = vpop.f32.mrb[0].mxu0
    %v2109 = vadd.f32 %v1729, %v2108
    %v2110 = vpop.f32.mrb[0].mxu0
    %v2111 = vadd.f32 %v1725, %v2110
    %v2112 = vpop.f32.mrb[0].mxu0
    %v2113 = vadd.f32 %v1729, %v2112
    %2114 = vmatprep.mubr.bf16.mxu0 %v1663
    %2115 = vmatmul.mubr.bf16.gmra.mrb[0].mxu0 %v1662
    %v2116 = vpop.f32.mrb[0].mxu0
    %v2117 = vadd.f32 %v1725, %v2116
    %v2118 = vpop.f32.mrb[0].mxu0
    %v2119 = vadd.f32 %v1729, %v2118
    %v2120 = vpop.f32.mrb[0].mxu0
    %v2121 = vadd.f32 %v1725, %v2120
    %v2122 = vpop.f32.mrb[0].mxu0
    %v2123 = vadd.f32 %v1729, %v2122
    %2124 = vmatprep.mubr.bf16.mxu0 %v1665
    %2125 = vmatmul.mubr.bf16.gmra.mrb[0].mxu0 %v1664
    %v2126 = vpop.f32.mrb[0].mxu0
    %v2127 = vadd.f32 %v1725, %v2126
    %v2128 = vpop.f32.mrb[0].mxu0
    %v2129 = vadd.f32 %v1729, %v2128
    %v2130 = vpop.f32.mrb[0].mxu0
    %v2131 = vadd.f32 %v1725, %v2130
    %v2132 = vpop.f32.mrb[0].mxu0
    %v2133 = vadd.f32 %v1729, %v2132
    %2134 = vmatprep.mubr.bf16.mxu0 %v1667
    %2135 = vmatmul.mubr.bf16.gmra.mrb[0].mxu0 %v1666
    %v2136 = vpop.f32.mrb[0].mxu0
    %v2137 = vadd.f32 %v1725, %v2136
    %v2138 = vpop.f32.mrb[0].mxu0
    %v2139 = vadd.f32 %v1729, %v2138
    %v2140 = vpop.f32.mrb[0].mxu0
    %v2141 = vadd.f32 %v1725, %v2140
    %v2142 = vpop.f32.mrb[0].mxu0
    %v2143 = vadd.f32 %v1729, %v2142
    %2144 = vmatprep.mubr.bf16.mxu0 %v1669
    %2145 = vmatmul.mubr.bf16.gmra.mrb[0].mxu0 %v1668
    %v2146 = vpop.f32.mrb[0].mxu0
    %v2147 = vadd.f32 %v1725, %v2146
    %v2148 = vpop.f32.mrb[0].mxu0
    %v2149 = vadd.f32 %v1729, %v2148
    %v2150 = vpop.f32.mrb[0].mxu0
    %v2151 = vadd.f32 %v1725, %v2150
    %v2152 = vpop.f32.mrb[0].mxu0
    %v2153 = vadd.f32 %v1729, %v2152
    %2154 = vmatprep.mubr.bf16.mxu0 %v1671
    %2155 = vmatmul.mubr.bf16.gmra.mrb[0].mxu0 %v1670
    %v2156 = vpop.f32.mrb[0].mxu0
    %v2157 = vadd.f32 %v1725, %v2156
    %v2158 = vpop.f32.mrb[0].mxu0
    %v2159 = vadd.f32 %v1729, %v2158
    %v2160 = vpop.f32.mrb[0].mxu0
    %v2161 = vadd.f32 %v1725, %v2160
    %v2162 = vpop.f32.mrb[0].mxu0
    %v2163 = vadd.f32 %v1729, %v2162
    %2164 = vmatprep.mubr.bf16.mxu0 %v1673
    %2165 = vmatmul.mubr.bf16.gmra.mrb[0].mxu0 %v1672
    %v2166 = vpop.f32.mrb[0].mxu0
    %v2167 = vadd.f32 %v1725, %v2166
    %v2168 = vpop.f32.mrb[0].mxu0
    %v2169 = vadd.f32 %v1729, %v2168
    %v2170 = vpop.f32.mrb[0].mxu0
    %v2171 = vadd.f32 %v1725, %v2170
    %v2172 = vpop.f32.mrb[0].mxu0
    %v2173 = vadd.f32 %v1729, %v2172
    %2174 = vmatprep.mubr.bf16.mxu0 %v1675
    %2175 = vmatmul.mubr.bf16.gmra.mrb[0].mxu0 %v1674
    %v2176 = vpop.f32.mrb[0].mxu0
    %v2177 = vadd.f32 %v1725, %v2176
    %v2178 = vpop.f32.mrb[0].mxu0
    %v2179 = vadd.f32 %v1729, %v2178
    %v2180 = vpop.f32.mrb[0].mxu0
    %v2181 = vadd.f32 %v1725, %v2180
    %v2182 = vpop.f32.mrb[0].mxu0
    %v2183 = vadd.f32 %v1729, %v2182
    %2184 = vmatprep.mubr.bf16.mxu0 %v1677
    %2185 = vmatmul.mubr.bf16.gmra.mrb[0].mxu0 %v1676
    %v2186 = vpop.f32.mrb[0].mxu0
    %v2187 = vadd.f32 %v1725, %v2186
    %v2188 = vpop.f32.mrb[0].mxu0
    %v2189 = vadd.f32 %v1729, %v2188
    %v2190 = vpop.f32.mrb[0].mxu0
    %v2191 = vadd.f32 %v1725, %v2190
    %v2192 = vpop.f32.mrb[0].mxu0
    %v2193 = vadd.f32 %v1729, %v2192
    %2194 = vmatprep.mubr.bf16.mxu0 %v1679
    %2195 = vmatmul.mubr.bf16.gmra.mrb[0].mxu0 %v1678
    %v2196 = vpop.f32.mrb[0].mxu0
    %v2197 = vadd.f32 %v1725, %v2196
    %v2198 = vpop.f32.mrb[0].mxu0
    %v2199 = vadd.f32 %v1729, %v2198
    %v2200 = vpop.f32.mrb[0].mxu0
    %v2201 = vadd.f32 %v1725, %v2200
    %v2202 = vpop.f32.mrb[0].mxu0
    %v2203 = vadd.f32 %v1729, %v2202
    %2204 = vmatprep.mubr.bf16.mxu0 %v1681
    %2205 = vmatmul.mubr.bf16.gmra.mrb[0].mxu0 %v1680
    %v2206 = vpop.f32.mrb[0].mxu0
    %v2207 = vadd.f32 %v1725, %v2206
    %v2208 = vpop.f32.mrb[0].mxu0
    %v2209 = vadd.f32 %v1729, %v2208
    %v2210 = vpop.f32.mrb[0].mxu0
    %v2211 = vadd.f32 %v1725, %v2210
    %v2212 = vpop.f32.mrb[0].mxu0
    %v2213 = vadd.f32 %v1729, %v2212
    %2214 = vmatprep.mubr.bf16.mxu0 %v1683
    %2215 = vmatmul.mubr.bf16.gmra.mrb[0].mxu0 %v1682
    %v2216 = vpop.f32.mrb[0].mxu0
    %v2217 = vadd.f32 %v1725, %v2216
    %v2218 = vpop.f32.mrb[0].mxu0
    %v2219 = vadd.f32 %v1729, %v2218
    %v2220 = vpop.f32.mrb[0].mxu0
    %v2221 = vadd.f32 %v1725, %v2220
    %v2222 = vpop.f32.mrb[0].mxu0
    %v2223 = vadd.f32 %v1729, %v2222
    %2224 = vmatprep.mubr.bf16.mxu0 %v1685
    %2225 = vmatmul.mubr.bf16.gmra.mrb[0].mxu0 %v1684
    %v2226 = vpop.f32.mrb[0].mxu0
    %v2227 = vadd.f32 %v1725, %v2226
    %v2228 = vpop.f32.mrb[0].mxu0
    %v2229 = vadd.f32 %v1729, %v2228
    %v2230 = vpop.f32.mrb[0].mxu0
    %v2231 = vadd.f32 %v1725, %v2230
    %v2232 = vpop.f32.mrb[0].mxu0
    %v2233 = vadd.f32 %v1729, %v2232
    %2234 = vmatprep.mubr.bf16.mxu0 %v1687
    %2235 = vmatmul.mubr.bf16.gmra.mrb[0].mxu0 %v1686
    %v2236 = vpop.f32.mrb[0].mxu0
    %v2237 = vadd.f32 %v1725, %v2236
    %v2238 = vpop.f32.mrb[0].mxu0
    %v2239 = vadd.f32 %v1729, %v2238
    %v2240 = vpop.f32.mrb[0].mxu0
    %v2241 = vadd.f32 %v1725, %v2240
    %v2242 = vpop.f32.mrb[0].mxu0
    %v2243 = vadd.f32 %v1729, %v2242
    %2244 = vdwg.mxu0
    %v2245 = vmax.f32 %v1927, 0.0
    %v2246 = vmax.f32 %v1929, 0.0
    %v2247 = vmax.f32 %v1931, 0.0
    %v2248 = vmax.f32 %v1933, 0.0
    %v2249 = vmax.f32 %v1937, 0.0
    %v2250 = vmax.f32 %v1939, 0.0
    %v2251 = vmax.f32 %v1941, 0.0
    %v2252 = vmax.f32 %v1943, 0.0
    %v2253 = vmax.f32 %v1947, 0.0
    %v2254 = vmax.f32 %v1949, 0.0
    %v2255 = vmax.f32 %v1951, 0.0
    %v2256 = vmax.f32 %v1953, 0.0
    %v2257 = vmax.f32 %v1957, 0.0
    %v2258 = vmax.f32 %v1959, 0.0
    %v2259 = vmax.f32 %v1961, 0.0
    %v2260 = vmax.f32 %v1963, 0.0
    %v2261 = vmax.f32 %v1967, 0.0
    %v2262 = vmax.f32 %v1969, 0.0
    %v2263 = vmax.f32 %v1971, 0.0
    %v2264 = vmax.f32 %v1973, 0.0
    %v2265 = vmax.f32 %v1977, 0.0
    %v2266 = vmax.f32 %v1979, 0.0
    %v2267 = vmax.f32 %v1981, 0.0
    %v2268 = vmax.f32 %v1983, 0.0
    %v2269 = vmax.f32 %v1987, 0.0
    %v2270 = vmax.f32 %v1989, 0.0
    %v2271 = vmax.f32 %v1991, 0.0
    %v2272 = vmax.f32 %v1993, 0.0
    %v2273 = vmax.f32 %v1997, 0.0
    %v2274 = vmax.f32 %v1999, 0.0
    %v2275 = vmax.f32 %v2001, 0.0
    %v2276 = vmax.f32 %v2003, 0.0
    %v2277 = vmax.f32 %v2007, 0.0
    %v2278 = vmax.f32 %v2009, 0.0
    %v2279 = vmax.f32 %v2011, 0.0
    %v2280 = vmax.f32 %v2013, 0.0
    %v2281 = vmax.f32 %v2017, 0.0
    %v2282 = vmax.f32 %v2019, 0.0
    %v2283 = vmax.f32 %v2021, 0.0
    %v2284 = vmax.f32 %v2023, 0.0
    %v2285 = vmax.f32 %v2027, 0.0
    %v2286 = vmax.f32 %v2029, 0.0
    %v2287 = vmax.f32 %v2031, 0.0
    %v2288 = vmax.f32 %v2033, 0.0
    %v2289 = vmax.f32 %v2037, 0.0
    %v2290 = vmax.f32 %v2039, 0.0
    %v2291 = vmax.f32 %v2041, 0.0
    %v2292 = vmax.f32 %v2043, 0.0
    %v2293 = vmax.f32 %v2047, 0.0
    %v2294 = vmax.f32 %v2049, 0.0
    %v2295 = vmax.f32 %v2051, 0.0
    %v2296 = vmax.f32 %v2053, 0.0
    %v2297 = vmax.f32 %v2057, 0.0
    %v2298 = vmax.f32 %v2059, 0.0
    %v2299 = vmax.f32 %v2061, 0.0
    %v2300 = vmax.f32 %v2063, 0.0
    %v2301 = vmax.f32 %v2067, 0.0
    %v2302 = vmax.f32 %v2069, 0.0
    %v2303 = vmax.f32 %v2071, 0.0
    %v2304 = vmax.f32 %v2073, 0.0
    %v2305 = vmax.f32 %v2077, 0.0
    %v2306 = vmax.f32 %v2079, 0.0
    %v2307 = vmax.f32 %v2081, 0.0
    %v2308 = vmax.f32 %v2083, 0.0
    %v2309 = vmax.f32 %v2087, 0.0
    %v2310 = vmax.f32 %v2089, 0.0
    %v2311 = vmax.f32 %v2091, 0.0
    %v2312 = vmax.f32 %v2093, 0.0
    %v2313 = vmax.f32 %v2097, 0.0
    %v2314 = vmax.f32 %v2099, 0.0
    %v2315 = vmax.f32 %v2101, 0.0
    %v2316 = vmax.f32 %v2103, 0.0
    %v2317 = vmax.f32 %v2107, 0.0
    %v2318 = vmax.f32 %v2109, 0.0
    %v2319 = vmax.f32 %v2111, 0.0
    %v2320 = vmax.f32 %v2113, 0.0
    %v2321 = vmax.f32 %v2117, 0.0
    %v2322 = vmax.f32 %v2119, 0.0
    %v2323 = vmax.f32 %v2121, 0.0
    %v2324 = vmax.f32 %v2123, 0.0
    %v2325 = vmax.f32 %v2127, 0.0
    %v2326 = vmax.f32 %v2129, 0.0
    %v2327 = vmax.f32 %v2131, 0.0
    %v2328 = vmax.f32 %v2133, 0.0
    %v2329 = vmax.f32 %v2137, 0.0
    %v2330 = vmax.f32 %v2139, 0.0
    %v2331 = vmax.f32 %v2141, 0.0
    %v2332 = vmax.f32 %v2143, 0.0
    %v2333 = vmax.f32 %v2147, 0.0
    %v2334 = vmax.f32 %v2149, 0.0
    %v2335 = vmax.f32 %v2151, 0.0
    %v2336 = vmax.f32 %v2153, 0.0
    %v2337 = vmax.f32 %v2157, 0.0
    %v2338 = vmax.f32 %v2159, 0.0
    %v2339 = vmax.f32 %v2161, 0.0
    %v2340 = vmax.f32 %v2163, 0.0
    %v2341 = vmax.f32 %v2167, 0.0
    %v2342 = vmax.f32 %v2169, 0.0
    %v2343 = vmax.f32 %v2171, 0.0
    %v2344 = vmax.f32 %v2173, 0.0
    %v2345 = vmax.f32 %v2177, 0.0
    %v2346 = vmax.f32 %v2179, 0.0
    %v2347 = vmax.f32 %v2181, 0.0
    %v2348 = vmax.f32 %v2183, 0.0
    %v2349 = vmax.f32 %v2187, 0.0
    %v2350 = vmax.f32 %v2189, 0.0
    %v2351 = vmax.f32 %v2191, 0.0
    %v2352 = vmax.f32 %v2193, 0.0
    %v2353 = vmax.f32 %v2197, 0.0
    %v2354 = vmax.f32 %v2199, 0.0
    %v2355 = vmax.f32 %v2201, 0.0
    %v2356 = vmax.f32 %v2203, 0.0
    %v2357 = vmax.f32 %v2207, 0.0
    %v2358 = vmax.f32 %v2209, 0.0
    %v2359 = vmax.f32 %v2211, 0.0
    %v2360 = vmax.f32 %v2213, 0.0
    %v2361 = vmax.f32 %v2217, 0.0
    %v2362 = vmax.f32 %v2219, 0.0
    %v2363 = vmax.f32 %v2221, 0.0
    %v2364 = vmax.f32 %v2223, 0.0
    %v2365 = vmax.f32 %v2227, 0.0
    %v2366 = vmax.f32 %v2229, 0.0
    %v2367 = vmax.f32 %v2231, 0.0
    %v2368 = vmax.f32 %v2233, 0.0
    %v2369 = vmax.f32 %v2237, 0.0
    %v2370 = vmax.f32 %v2239, 0.0
    %v2371 = vmax.f32 %v2241, 0.0
    %v2372 = vmax.f32 %v2243, 0.0
    %v2373 = vpack.c.bf16 %v2247, %v2245
    %v2374 = vpack.c.bf16 %v2248, %v2246
    %v2375 = vpack.c.bf16 %v2251, %v2249
    %v2376 = vpack.c.bf16 %v2252, %v2250
    %v2377 = vpack.c.bf16 %v2255, %v2253
    %v2378 = vpack.c.bf16 %v2256, %v2254
    %v2379 = vpack.c.bf16 %v2259, %v2257
    %v2380 = vpack.c.bf16 %v2260, %v2258
    %v2381 = vpack.c.bf16 %v2263, %v2261
    %v2382 = vpack.c.bf16 %v2264, %v2262
    %v2383 = vpack.c.bf16 %v2267, %v2265
    %v2384 = vpack.c.bf16 %v2268, %v2266
    %v2385 = vpack.c.bf16 %v2271, %v2269
    %v2386 = vpack.c.bf16 %v2272, %v2270
    %v2387 = vpack.c.bf16 %v2275, %v2273
    %v2388 = vpack.c.bf16 %v2276, %v2274
    %v2389 = vpack.c.bf16 %v2279, %v2277
    %v2390 = vpack.c.bf16 %v2280, %v2278
    %v2391 = vpack.c.bf16 %v2283, %v2281
    %v2392 = vpack.c.bf16 %v2284, %v2282
    %v2393 = vpack.c.bf16 %v2287, %v2285
    %v2394 = vpack.c.bf16 %v2288, %v2286
    %v2395 = vpack.c.bf16 %v2291, %v2289
    %v2396 = vpack.c.bf16 %v2292, %v2290
    %v2397 = vpack.c.bf16 %v2295, %v2293
    %v2398 = vpack.c.bf16 %v2296, %v2294
    %v2399 = vpack.c.bf16 %v2299, %v2297
    %v2400 = vpack.c.bf16 %v2300, %v2298
    %v2401 = vpack.c.bf16 %v2303, %v2301
    %v2402 = vpack.c.bf16 %v2304, %v2302
    %v2403 = vpack.c.bf16 %v2307, %v2305
    %v2404 = vpack.c.bf16 %v2308, %v2306
    %v2405 = vpack.c.bf16 %v2311, %v2309
    %v2406 = vpack.c.bf16 %v2312, %v2310
    %v2407 = vpack.c.bf16 %v2315, %v2313
    %v2408 = vpack.c.bf16 %v2316, %v2314
    %v2409 = vpack.c.bf16 %v2319, %v2317
    %v2410 = vpack.c.bf16 %v2320, %v2318
    %v2411 = vpack.c.bf16 %v2323, %v2321
    %v2412 = vpack.c.bf16 %v2324, %v2322
    %v2413 = vpack.c.bf16 %v2327, %v2325
    %v2414 = vpack.c.bf16 %v2328, %v2326
    %v2415 = vpack.c.bf16 %v2331, %v2329
    %v2416 = vpack.c.bf16 %v2332, %v2330
    %v2417 = vpack.c.bf16 %v2335, %v2333
    %v2418 = vpack.c.bf16 %v2336, %v2334
    %v2419 = vpack.c.bf16 %v2339, %v2337
    %v2420 = vpack.c.bf16 %v2340, %v2338
    %v2421 = vpack.c.bf16 %v2343, %v2341
    %v2422 = vpack.c.bf16 %v2344, %v2342
    %v2423 = vpack.c.bf16 %v2347, %v2345
    %v2424 = vpack.c.bf16 %v2348, %v2346
    %v2425 = vpack.c.bf16 %v2351, %v2349
    %v2426 = vpack.c.bf16 %v2352, %v2350
    %v2427 = vpack.c.bf16 %v2355, %v2353
    %v2428 = vpack.c.bf16 %v2356, %v2354
    %v2429 = vpack.c.bf16 %v2359, %v2357
    %v2430 = vpack.c.bf16 %v2360, %v2358
    %v2431 = vpack.c.bf16 %v2363, %v2361
    %v2432 = vpack.c.bf16 %v2364, %v2362
    %v2433 = vpack.c.bf16 %v2367, %v2365
    %v2434 = vpack.c.bf16 %v2368, %v2366
    %v2435 = vpack.c.bf16 %v2371, %v2369
    %v2436 = vpack.c.bf16 %v2372, %v2370
    %v2437 = vld [vmem:[#allocation3] sm:$0xff]
    %v2438 = vld [vmem:[#allocation3 + $0x8] sm:$0xff]
    %v2439 = vld [vmem:[#allocation3 + $0x10] sm:$0xff]
    %v2440 = vld [vmem:[#allocation3 + $0x18] sm:$0xff]
    %v2441 = vld [vmem:[#allocation3 + $0x20] sm:$0xff]
    %v2442 = vld [vmem:[#allocation3 + $0x28] sm:$0xff]
    %v2443 = vld [vmem:[#allocation3 + $0x30] sm:$0xff]
    %v2444 = vld [vmem:[#allocation3 + $0x38] sm:$0xff]
    %v2445 = vld [vmem:[#allocation3 + $0x40] sm:$0xff]
    %v2446 = vld [vmem:[#allocation3 + $0x48] sm:$0xff]
    %v2447 = vld [vmem:[#allocation3 + $0x50] sm:$0xff]
    %v2448 = vld [vmem:[#allocation3 + $0x58] sm:$0xff]
    %v2449 = vld [vmem:[#allocation3 + $0x60] sm:$0xff]
    %v2450 = vld [vmem:[#allocation3 + $0x68] sm:$0xff]
    %v2451 = vld [vmem:[#allocation3 + $0x70] sm:$0xff]
    %v2452 = vld [vmem:[#allocation3 + $0x78] sm:$0xff]
    %v2453 = vld [vmem:[#allocation3 + $0x80] sm:$0xff]
    %v2454 = vld [vmem:[#allocation3 + $0x88] sm:$0xff]
    %v2455 = vld [vmem:[#allocation3 + $0x90] sm:$0xff]
    %v2456 = vld [vmem:[#allocation3 + $0x98] sm:$0xff]
    %v2457 = vld [vmem:[#allocation3 + $0xa0] sm:$0xff]
    %v2458 = vld [vmem:[#allocation3 + $0xa8] sm:$0xff]
    %v2459 = vld [vmem:[#allocation3 + $0xb0] sm:$0xff]
    %v2460 = vld [vmem:[#allocation3 + $0xb8] sm:$0xff]
    %v2461 = vld [vmem:[#allocation3 + $0xc0] sm:$0xff]
    %v2462 = vld [vmem:[#allocation3 + $0xc8] sm:$0xff]
    %v2463 = vld [vmem:[#allocation3 + $0xd0] sm:$0xff]
    %v2464 = vld [vmem:[#allocation3 + $0xd8] sm:$0xff]
    %v2465 = vld [vmem:[#allocation3 + $0xe0] sm:$0xff]
    %v2466 = vld [vmem:[#allocation3 + $0xe8] sm:$0xff]
    %v2467 = vld [vmem:[#allocation3 + $0xf0] sm:$0xff]
    %v2468 = vld [vmem:[#allocation3 + $0xf8] sm:$0xff]
    %v2469 = vld [vmem:[#allocation3 + $0x100] sm:$0xff]
    %v2470 = vld [vmem:[#allocation3 + $0x108] sm:$0xff]
    %v2471 = vld [vmem:[#allocation3 + $0x110] sm:$0xff]
    %v2472 = vld [vmem:[#allocation3 + $0x118] sm:$0xff]
    %v2473 = vld [vmem:[#allocation3 + $0x120] sm:$0xff]
    %v2474 = vld [vmem:[#allocation3 + $0x128] sm:$0xff]
    %v2475 = vld [vmem:[#allocation3 + $0x130] sm:$0xff]
    %v2476 = vld [vmem:[#allocation3 + $0x138] sm:$0xff]
    %v2477 = vld [vmem:[#allocation3 + $0x140] sm:$0xff]
    %v2478 = vld [vmem:[#allocation3 + $0x148] sm:$0xff]
    %v2479 = vld [vmem:[#allocation3 + $0x150] sm:$0xff]
    %v2480 = vld [vmem:[#allocation3 + $0x158] sm:$0xff]
    %v2481 = vld [vmem:[#allocation3 + $0x160] sm:$0xff]
    %v2482 = vld [vmem:[#allocation3 + $0x168] sm:$0xff]
    %v2483 = vld [vmem:[#allocation3 + $0x170] sm:$0xff]
    %v2484 = vld [vmem:[#allocation3 + $0x178] sm:$0xff]
    %v2485 = vld [vmem:[#allocation3 + $0x180] sm:$0xff]
    %v2486 = vld [vmem:[#allocation3 + $0x188] sm:$0xff]
    %v2487 = vld [vmem:[#allocation3 + $0x190] sm:$0xff]
    %v2488 = vld [vmem:[#allocation3 + $0x198] sm:$0xff]
    %v2489 = vld [vmem:[#allocation3 + $0x1a0] sm:$0xff]
    %v2490 = vld [vmem:[#allocation3 + $0x1a8] sm:$0xff]
    %v2491 = vld [vmem:[#allocation3 + $0x1b0] sm:$0xff]
    %v2492 = vld [vmem:[#allocation3 + $0x1b8] sm:$0xff]
    %v2493 = vld [vmem:[#allocation3 + $0x1c0] sm:$0xff]
    %v2494 = vld [vmem:[#allocation3 + $0x1c8] sm:$0xff]
    %v2495 = vld [vmem:[#allocation3 + $0x1d0] sm:$0xff]
    %v2496 = vld [vmem:[#allocation3 + $0x1d8] sm:$0xff]
    %v2497 = vld [vmem:[#allocation3 + $0x1e0] sm:$0xff]
    %v2498 = vld [vmem:[#allocation3 + $0x1e8] sm:$0xff]
    %v2499 = vld [vmem:[#allocation3 + $0x1f0] sm:$0xff]
    %v2500 = vld [vmem:[#allocation3 + $0x1f8] sm:$0xff]
    %v2501 = vld [vmem:[#allocation3 + $0x200] sm:$0xff]
    %v2502 = vld [vmem:[#allocation3 + $0x208] sm:$0xff]
    %v2503 = vld [vmem:[#allocation3 + $0x210] sm:$0xff]
    %v2504 = vld [vmem:[#allocation3 + $0x218] sm:$0xff]
    %v2505 = vld [vmem:[#allocation3 + $0x220] sm:$0xff]
    %v2506 = vld [vmem:[#allocation3 + $0x228] sm:$0xff]
    %v2507 = vld [vmem:[#allocation3 + $0x230] sm:$0xff]
    %v2508 = vld [vmem:[#allocation3 + $0x238] sm:$0xff]
    %v2509 = vld [vmem:[#allocation3 + $0x240] sm:$0xff]
    %v2510 = vld [vmem:[#allocation3 + $0x248] sm:$0xff]
    %v2511 = vld [vmem:[#allocation3 + $0x250] sm:$0xff]
    %v2512 = vld [vmem:[#allocation3 + $0x258] sm:$0xff]
    %v2513 = vld [vmem:[#allocation3 + $0x260] sm:$0xff]
    %v2514 = vld [vmem:[#allocation3 + $0x268] sm:$0xff]
    %v2515 = vld [vmem:[#allocation3 + $0x270] sm:$0xff]
    %v2516 = vld [vmem:[#allocation3 + $0x278] sm:$0xff]
    %v2517 = vld [vmem:[#allocation3 + $0x280] sm:$0xff]
    %v2518 = vld [vmem:[#allocation3 + $0x288] sm:$0xff]
    %v2519 = vld [vmem:[#allocation3 + $0x290] sm:$0xff]
    %v2520 = vld [vmem:[#allocation3 + $0x298] sm:$0xff]
    %v2521 = vld [vmem:[#allocation3 + $0x2a0] sm:$0xff]
    %v2522 = vld [vmem:[#allocation3 + $0x2a8] sm:$0xff]
    %v2523 = vld [vmem:[#allocation3 + $0x2b0] sm:$0xff]
    %v2524 = vld [vmem:[#allocation3 + $0x2b8] sm:$0xff]
    %v2525 = vld [vmem:[#allocation3 + $0x2c0] sm:$0xff]
    %v2526 = vld [vmem:[#allocation3 + $0x2c8] sm:$0xff]
    %v2527 = vld [vmem:[#allocation3 + $0x2d0] sm:$0xff]
    %v2528 = vld [vmem:[#allocation3 + $0x2d8] sm:$0xff]
    %v2529 = vld [vmem:[#allocation3 + $0x2e0] sm:$0xff]
    %v2530 = vld [vmem:[#allocation3 + $0x2e8] sm:$0xff]
    %v2531 = vld [vmem:[#allocation3 + $0x2f0] sm:$0xff]
    %v2532 = vld [vmem:[#allocation3 + $0x2f8] sm:$0xff]
    %v2533 = vld [vmem:[#allocation3 + $0x300] sm:$0xff]
    %v2534 = vld [vmem:[#allocation3 + $0x308] sm:$0xff]
    %v2535 = vld [vmem:[#allocation3 + $0x310] sm:$0xff]
    %v2536 = vld [vmem:[#allocation3 + $0x318] sm:$0xff]
    %v2537 = vld [vmem:[#allocation3 + $0x320] sm:$0xff]
    %v2538 = vld [vmem:[#allocation3 + $0x328] sm:$0xff]
    %v2539 = vld [vmem:[#allocation3 + $0x330] sm:$0xff]
    %v2540 = vld [vmem:[#allocation3 + $0x338] sm:$0xff]
    %v2541 = vld [vmem:[#allocation3 + $0x340] sm:$0xff]
    %v2542 = vld [vmem:[#allocation3 + $0x348] sm:$0xff]
    %v2543 = vld [vmem:[#allocation3 + $0x350] sm:$0xff]
    %v2544 = vld [vmem:[#allocation3 + $0x358] sm:$0xff]
    %v2545 = vld [vmem:[#allocation3 + $0x360] sm:$0xff]
    %v2546 = vld [vmem:[#allocation3 + $0x368] sm:$0xff]
    %v2547 = vld [vmem:[#allocation3 + $0x370] sm:$0xff]
    %v2548 = vld [vmem:[#allocation3 + $0x378] sm:$0xff]
    %v2549 = vld [vmem:[#allocation3 + $0x380] sm:$0xff]
    %v2550 = vld [vmem:[#allocation3 + $0x388] sm:$0xff]
    %v2551 = vld [vmem:[#allocation3 + $0x390] sm:$0xff]
    %v2552 = vld [vmem:[#allocation3 + $0x398] sm:$0xff]
    %v2553 = vld [vmem:[#allocation3 + $0x3a0] sm:$0xff]
    %v2554 = vld [vmem:[#allocation3 + $0x3a8] sm:$0xff]
    %v2555 = vld [vmem:[#allocation3 + $0x3b0] sm:$0xff]
    %v2556 = vld [vmem:[#allocation3 + $0x3b8] sm:$0xff]
    %v2557 = vld [vmem:[#allocation3 + $0x3c0] sm:$0xff]
    %v2558 = vld [vmem:[#allocation3 + $0x3c8] sm:$0xff]
    %v2559 = vld [vmem:[#allocation3 + $0x3d0] sm:$0xff]
    %v2560 = vld [vmem:[#allocation3 + $0x3d8] sm:$0xff]
    %v2561 = vld [vmem:[#allocation3 + $0x3e0] sm:$0xff]
    %v2562 = vld [vmem:[#allocation3 + $0x3e8] sm:$0xff]
    %v2563 = vld [vmem:[#allocation3 + $0x3f0] sm:$0xff]
    %v2564 = vld [vmem:[#allocation3 + $0x3f8] sm:$0xff]
    %v2565 = vld [vmem:[%s5] sm:$0xff]
    %v2566 = vld [vmem:[%s5 + $0x8] sm:$0xff]
    %v2567 = vld [vmem:[%s5 + $0x10] sm:$0xff]
    %v2568 = vld [vmem:[%s5 + $0x18] sm:$0xff]
    %v2569 = vld [vmem:[%s5 + $0x20] sm:$0xff]
    %v2570 = vld [vmem:[%s5 + $0x28] sm:$0xff]
    %v2571 = vld [vmem:[%s5 + $0x30] sm:$0xff]
    %v2572 = vld [vmem:[%s5 + $0x38] sm:$0xff]
    %v2573 = vld [vmem:[%s5 + $0x40] sm:$0xff]
    %v2574 = vld [vmem:[%s5 + $0x48] sm:$0xff]
    %v2575 = vld [vmem:[%s5 + $0x50] sm:$0xff]
    %v2576 = vld [vmem:[%s5 + $0x58] sm:$0xff]
    %v2577 = vld [vmem:[%s5 + $0x60] sm:$0xff]
    %v2578 = vld [vmem:[%s5 + $0x68] sm:$0xff]
    %v2579 = vld [vmem:[%s5 + $0x70] sm:$0xff]
    %v2580 = vld [vmem:[%s5 + $0x78] sm:$0xff]
    %v2581 = vld [vmem:[%s5 + $0x80] sm:$0xff]
    %v2582 = vld [vmem:[%s5 + $0x88] sm:$0xff]
    %v2583 = vld [vmem:[%s5 + $0x90] sm:$0xff]
    %v2584 = vld [vmem:[%s5 + $0x98] sm:$0xff]
    %v2585 = vld [vmem:[%s5 + $0xa0] sm:$0xff]
    %v2586 = vld [vmem:[%s5 + $0xa8] sm:$0xff]
    %v2587 = vld [vmem:[%s5 + $0xb0] sm:$0xff]
    %v2588 = vld [vmem:[%s5 + $0xb8] sm:$0xff]
    %v2589 = vld [vmem:[%s5 + $0xc0] sm:$0xff]
    %v2590 = vld [vmem:[%s5 + $0xc8] sm:$0xff]
    %v2591 = vld [vmem:[%s5 + $0xd0] sm:$0xff]
    %v2592 = vld [vmem:[%s5 + $0xd8] sm:$0xff]
    %v2593 = vld [vmem:[%s5 + $0xe0] sm:$0xff]
    %v2594 = vld [vmem:[%s5 + $0xe8] sm:$0xff]
    %v2595 = vld [vmem:[%s5 + $0xf0] sm:$0xff]
    %v2596 = vld [vmem:[%s5 + $0xf8] sm:$0xff]
    %v2629 = vunpack.c.l.b16 %v2565
    %v2630 = vunpack.c.h.b16 %v2565
    %v2631 = vunpack.c.l.b16 %v2566
    %v2632 = vunpack.c.h.b16 %v2566
    %v2633 = vunpack.c.l.b16 %v2567
    %v2634 = vunpack.c.h.b16 %v2567
    %v2635 = vunpack.c.l.b16 %v2568
    %v2636 = vunpack.c.h.b16 %v2568
    %v2637 = vunpack.c.l.b16 %v2569
    %v2638 = vunpack.c.h.b16 %v2569
    %v2639 = vunpack.c.l.b16 %v2570
    %v2640 = vunpack.c.h.b16 %v2570
    %v2641 = vunpack.c.l.b16 %v2571
    %v2642 = vunpack.c.h.b16 %v2571
    %v2643 = vunpack.c.l.b16 %v2572
    %v2644 = vunpack.c.h.b16 %v2572
    %v2645 = vunpack.c.l.b16 %v2573
    %v2646 = vunpack.c.h.b16 %v2573
    %v2647 = vunpack.c.l.b16 %v2574
    %v2648 = vunpack.c.h.b16 %v2574
    %v2649 = vunpack.c.l.b16 %v2575
    %v2650 = vunpack.c.h.b16 %v2575
    %v2651 = vunpack.c.l.b16 %v2576
    %v2652 = vunpack.c.h.b16 %v2576
    %v2653 = vunpack.c.l.b16 %v2577
    %v2654 = vunpack.c.h.b16 %v2577
    %v2655 = vunpack.c.l.b16 %v2578
    %v2656 = vunpack.c.h.b16 %v2578
    %v2657 = vunpack.c.l.b16 %v2579
    %v2658 = vunpack.c.h.b16 %v2579
    %v2659 = vunpack.c.l.b16 %v2580
    %v2660 = vunpack.c.h.b16 %v2580
    %v2661 = vunpack.c.l.b16 %v2581
    %v2662 = vunpack.c.h.b16 %v2581
    %v2663 = vunpack.c.l.b16 %v2582
    %v2664 = vunpack.c.h.b16 %v2582
    %v2665 = vunpack.c.l.b16 %v2583
    %v2666 = vunpack.c.h.b16 %v2583
    %v2667 = vunpack.c.l.b16 %v2584
    %v2668 = vunpack.c.h.b16 %v2584
    %v2669 = vunpack.c.l.b16 %v2585
    %v2670 = vunpack.c.h.b16 %v2585
    %v2671 = vunpack.c.l.b16 %v2586
    %v2672 = vunpack.c.h.b16 %v2586
    %v2673 = vunpack.c.l.b16 %v2587
    %v2674 = vunpack.c.h.b16 %v2587
    %v2675 = vunpack.c.l.b16 %v2588
    %v2676 = vunpack.c.h.b16 %v2588
    %v2677 = vunpack.c.l.b16 %v2589
    %v2678 = vunpack.c.h.b16 %v2589
    %v2679 = vunpack.c.l.b16 %v2590
    %v2680 = vunpack.c.h.b16 %v2590
    %v2681 = vunpack.c.l.b16 %v2591
    %v2682 = vunpack.c.h.b16 %v2591
    %v2683 = vunpack.c.l.b16 %v2592
    %v2684 = vunpack.c.h.b16 %v2592
    %v2685 = vunpack.c.l.b16 %v2593
    %v2686 = vunpack.c.h.b16 %v2593
    %v2687 = vunpack.c.l.b16 %v2594
    %v2688 = vunpack.c.h.b16 %v2594
    %v2689 = vunpack.c.l.b16 %v2595
    %v2690 = vunpack.c.h.b16 %v2595
    %v2691 = vunpack.c.l.b16 %v2596
    %v2692 = vunpack.c.h.b16 %v2596
    %v2693 = vpack.c.b16 %v2631, %v2629
    %v2694 = vpack.c.b16 %v2632, %v2630
    %v2695 = vpack.c.b16 %v2635, %v2633
    %v2696 = vpack.c.b16 %v2636, %v2634
    %v2697 = vpack.c.b16 %v2639, %v2637
    %v2698 = vpack.c.b16 %v2640, %v2638
    %v2699 = vpack.c.b16 %v2643, %v2641
    %v2700 = vpack.c.b16 %v2644, %v2642
    %v2701 = vpack.c.b16 %v2647, %v2645
    %v2702 = vpack.c.b16 %v2648, %v2646
    %v2703 = vpack.c.b16 %v2651, %v2649
    %v2704 = vpack.c.b16 %v2652, %v2650
    %v2705 = vpack.c.b16 %v2655, %v2653
    %v2706 = vpack.c.b16 %v2656, %v2654
    %v2707 = vpack.c.b16 %v2659, %v2657
    %v2708 = vpack.c.b16 %v2660, %v2658
    %v2709 = vpack.c.b16 %v2663, %v2661
    %v2710 = vpack.c.b16 %v2664, %v2662
    %v2711 = vpack.c.b16 %v2667, %v2665
    %v2712 = vpack.c.b16 %v2668, %v2666
    %v2713 = vpack.c.b16 %v2671, %v2669
    %v2714 = vpack.c.b16 %v2672, %v2670
    %v2715 = vpack.c.b16 %v2675, %v2673
    %v2716 = vpack.c.b16 %v2676, %v2674
    %v2717 = vpack.c.b16 %v2679, %v2677
    %v2718 = vpack.c.b16 %v2680, %v2678
    %v2719 = vpack.c.b16 %v2683, %v2681
    %v2720 = vpack.c.b16 %v2684, %v2682
    %v2721 = vpack.c.b16 %v2687, %v2685
    %v2722 = vpack.c.b16 %v2688, %v2686
    %v2723 = vpack.c.b16 %v2691, %v2689
    %v2724 = vpack.c.b16 %v2692, %v2690
    %2757 = vmatprep.subr.bf16.mxu0 %v2694
    %2758 = vmatpush1.bf16.msra.mxu0 %v2693
    %2759 = vmatprep.subr.bf16.mxu0 %v2696
    %2760 = vmatpush1.bf16.msra.mxu0 %v2695
    %2761 = vmatprep.subr.bf16.mxu0 %v2698
    %2762 = vmatpush1.bf16.msra.mxu0 %v2697
    %2763 = vmatprep.subr.bf16.mxu0 %v2700
    %2764 = vmatpush1.bf16.msra.mxu0 %v2699
    %2765 = vmatprep.subr.bf16.mxu0 %v2702
    %2766 = vmatpush1.bf16.msra.mxu0 %v2701
    %2767 = vmatprep.subr.bf16.mxu0 %v2704
    %2768 = vmatpush1.bf16.msra.mxu0 %v2703
    %2769 = vmatprep.subr.bf16.mxu0 %v2706
    %2770 = vmatpush1.bf16.msra.mxu0 %v2705
    %2771 = vmatprep.subr.bf16.mxu0 %v2708
    %2772 = vmatpush1.bf16.msra.mxu0 %v2707
    %2773 = vmatprep.subr.bf16.mxu0 %v2710
    %2774 = vmatpush1.bf16.msra.mxu0 %v2709
    %2775 = vmatprep.subr.bf16.mxu0 %v2712
    %2776 = vmatpush1.bf16.msra.mxu0 %v2711
    %2777 = vmatprep.subr.bf16.mxu0 %v2714
    %2778 = vmatpush1.bf16.msra.mxu0 %v2713
    %2779 = vmatprep.subr.bf16.mxu0 %v2716
    %2780 = vmatpush1.bf16.msra.mxu0 %v2715
    %2781 = vmatprep.subr.bf16.mxu0 %v2718
    %2782 = vmatpush1.bf16.msra.mxu0 %v2717
    %2783 = vmatprep.subr.bf16.mxu0 %v2720
    %2784 = vmatpush1.bf16.msra.mxu0 %v2719
    %2785 = vmatprep.subr.bf16.mxu0 %v2722
    %2786 = vmatpush1.bf16.msra.mxu0 %v2721
    %2787 = vmatprep.subr.bf16.mxu0 %v2724
    %2788 = vmatpush1.bf16.msra.mxu0 %v2723
    %2789 = vmatprep.mubr.bf16.mxu0 %v2374
    %2790 = vmatmul.mubr.bf16.gmra.mrb[0].mxu0 %v2373
    %v2791 = vpop.f32.mrb[0].mxu0
    %v2792 = vadd.f32 0.0, %v2791
    %v2793 = vpop.f32.mrb[0].mxu0
    %v2794 = vadd.f32 0.0, %v2793
    %v2795 = vpop.f32.mrb[0].mxu0
    %v2796 = vadd.f32 0.0, %v2795
    %v2797 = vpop.f32.mrb[0].mxu0
    %v2798 = vadd.f32 0.0, %v2797
    %2799 = vmatprep.mubr.bf16.mxu0 %v2376
    %2800 = vmatmul.mubr.bf16.gmra.mrb[0].mxu0 %v2375
    %v2801 = vpop.f32.mrb[0].mxu0
    %v2802 = vadd.f32 0.0, %v2801
    %v2803 = vpop.f32.mrb[0].mxu0
    %v2804 = vadd.f32 0.0, %v2803
    %v2805 = vpop.f32.mrb[0].mxu0
    %v2806 = vadd.f32 0.0, %v2805
    %v2807 = vpop.f32.mrb[0].mxu0
    %v2808 = vadd.f32 0.0, %v2807
    %2809 = vmatprep.mubr.bf16.mxu0 %v2378
    %2810 = vmatmul.mubr.bf16.gmra.mrb[0].mxu0 %v2377
    %v2811 = vpop.f32.mrb[0].mxu0
    %v2812 = vadd.f32 0.0, %v2811
    %v2813 = vpop.f32.mrb[0].mxu0
    %v2814 = vadd.f32 0.0, %v2813
    %v2815 = vpop.f32.mrb[0].mxu0
    %v2816 = vadd.f32 0.0, %v2815
    %v2817 = vpop.f32.mrb[0].mxu0
    %v2818 = vadd.f32 0.0, %v2817
    %2819 = vmatprep.mubr.bf16.mxu0 %v2380
    %2820 = vmatmul.mubr.bf16.gmra.mrb[0].mxu0 %v2379
    %v2821 = vpop.f32.mrb[0].mxu0
    %v2822 = vadd.f32 0.0, %v2821
    %v2823 = vpop.f32.mrb[0].mxu0
    %v2824 = vadd.f32 0.0, %v2823
    %v2825 = vpop.f32.mrb[0].mxu0
    %v2826 = vadd.f32 0.0, %v2825
    %v2827 = vpop.f32.mrb[0].mxu0
    %v2828 = vadd.f32 0.0, %v2827
    %2829 = vmatprep.mubr.bf16.mxu0 %v2382
    %2830 = vmatmul.mubr.bf16.gmra.mrb[0].mxu0 %v2381
    %v2831 = vpop.f32.mrb[0].mxu0
    %v2832 = vadd.f32 0.0, %v2831
    %v2833 = vpop.f32.mrb[0].mxu0
    %v2834 = vadd.f32 0.0, %v2833
    %v2835 = vpop.f32.mrb[0].mxu0
    %v2836 = vadd.f32 0.0, %v2835
    %v2837 = vpop.f32.mrb[0].mxu0
    %v2838 = vadd.f32 0.0, %v2837
    %2839 = vmatprep.mubr.bf16.mxu0 %v2384
    %2840 = vmatmul.mubr.bf16.gmra.mrb[0].mxu0 %v2383
    %v2841 = vpop.f32.mrb[0].mxu0
    %v2842 = vadd.f32 0.0, %v2841
    %v2843 = vpop.f32.mrb[0].mxu0
    %v2844 = vadd.f32 0.0, %v2843
    %v2845 = vpop.f32.mrb[0].mxu0
    %v2846 = vadd.f32 0.0, %v2845
    %v2847 = vpop.f32.mrb[0].mxu0
    %v2848 = vadd.f32 0.0, %v2847
    %2849 = vmatprep.mubr.bf16.mxu0 %v2386
    %2850 = vmatmul.mubr.bf16.gmra.mrb[0].mxu0 %v2385
    %v2851 = vpop.f32.mrb[0].mxu0
    %v2852 = vadd.f32 0.0, %v2851
    %v2853 = vpop.f32.mrb[0].mxu0
    %v2854 = vadd.f32 0.0, %v2853
    %v2855 = vpop.f32.mrb[0].mxu0
    %v2856 = vadd.f32 0.0, %v2855
    %v2857 = vpop.f32.mrb[0].mxu0
    %v2858 = vadd.f32 0.0, %v2857
    %2859 = vmatprep.mubr.bf16.mxu0 %v2388
    %2860 = vmatmul.mubr.bf16.gmra.mrb[0].mxu0 %v2387
    %v2861 = vpop.f32.mrb[0].mxu0
    %v2862 = vadd.f32 0.0, %v2861
    %v2863 = vpop.f32.mrb[0].mxu0
    %v2864 = vadd.f32 0.0, %v2863
    %v2865 = vpop.f32.mrb[0].mxu0
    %v2866 = vadd.f32 0.0, %v2865
    %v2867 = vpop.f32.mrb[0].mxu0
    %v2868 = vadd.f32 0.0, %v2867
    %2869 = vmatprep.mubr.bf16.mxu0 %v2390
    %2870 = vmatmul.mubr.bf16.gmra.mrb[0].mxu0 %v2389
    %v2871 = vpop.f32.mrb[0].mxu0
    %v2872 = vadd.f32 0.0, %v2871
    %v2873 = vpop.f32.mrb[0].mxu0
    %v2874 = vadd.f32 0.0, %v2873
    %v2875 = vpop.f32.mrb[0].mxu0
    %v2876 = vadd.f32 0.0, %v2875
    %v2877 = vpop.f32.mrb[0].mxu0
    %v2878 = vadd.f32 0.0, %v2877
    %2879 = vmatprep.mubr.bf16.mxu0 %v2392
    %2880 = vmatmul.mubr.bf16.gmra.mrb[0].mxu0 %v2391
    %v2881 = vpop.f32.mrb[0].mxu0
    %v2882 = vadd.f32 0.0, %v2881
    %v2883 = vpop.f32.mrb[0].mxu0
    %v2884 = vadd.f32 0.0, %v2883
    %v2885 = vpop.f32.mrb[0].mxu0
    %v2886 = vadd.f32 0.0, %v2885
    %v2887 = vpop.f32.mrb[0].mxu0
    %v2888 = vadd.f32 0.0, %v2887
    %2889 = vmatprep.mubr.bf16.mxu0 %v2394
    %2890 = vmatmul.mubr.bf16.gmra.mrb[0].mxu0 %v2393
    %v2891 = vpop.f32.mrb[0].mxu0
    %v2892 = vadd.f32 0.0, %v2891
    %v2893 = vpop.f32.mrb[0].mxu0
    %v2894 = vadd.f32 0.0, %v2893
    %v2895 = vpop.f32.mrb[0].mxu0
    %v2896 = vadd.f32 0.0, %v2895
    %v2897 = vpop.f32.mrb[0].mxu0
    %v2898 = vadd.f32 0.0, %v2897
    %2899 = vmatprep.mubr.bf16.mxu0 %v2396
    %2900 = vmatmul.mubr.bf16.gmra.mrb[0].mxu0 %v2395
    %v2901 = vpop.f32.mrb[0].mxu0
    %v2902 = vadd.f32 0.0, %v2901
    %v2903 = vpop.f32.mrb[0].mxu0
    %v2904 = vadd.f32 0.0, %v2903
    %v2905 = vpop.f32.mrb[0].mxu0
    %v2906 = vadd.f32 0.0, %v2905
    %v2907 = vpop.f32.mrb[0].mxu0
    %v2908 = vadd.f32 0.0, %v2907
    %2909 = vmatprep.mubr.bf16.mxu0 %v2398
    %2910 = vmatmul.mubr.bf16.gmra.mrb[0].mxu0 %v2397
    %v2911 = vpop.f32.mrb[0].mxu0
    %v2912 = vadd.f32 0.0, %v2911
    %v2913 = vpop.f32.mrb[0].mxu0
    %v2914 = vadd.f32 0.0, %v2913
    %v2915 = vpop.f32.mrb[0].mxu0
    %v2916 = vadd.f32 0.0, %v2915
    %v2917 = vpop.f32.mrb[0].mxu0
    %v2918 = vadd.f32 0.0, %v2917
    %2919 = vmatprep.mubr.bf16.mxu0 %v2400
    %2920 = vmatmul.mubr.bf16.gmra.mrb[0].mxu0 %v2399
    %v2921 = vpop.f32.mrb[0].mxu0
    %v2922 = vadd.f32 0.0, %v2921
    %v2923 = vpop.f32.mrb[0].mxu0
    %v2924 = vadd.f32 0.0, %v2923
    %v2925 = vpop.f32.mrb[0].mxu0
    %v2926 = vadd.f32 0.0, %v2925
    %v2927 = vpop.f32.mrb[0].mxu0
    %v2928 = vadd.f32 0.0, %v2927
    %2929 = vmatprep.mubr.bf16.mxu0 %v2402
    %2930 = vmatmul.mubr.bf16.gmra.mrb[0].mxu0 %v2401
    %v2931 = vpop.f32.mrb[0].mxu0
    %v2932 = vadd.f32 0.0, %v2931
    %v2933 = vpop.f32.mrb[0].mxu0
    %v2934 = vadd.f32 0.0, %v2933
    %v2935 = vpop.f32.mrb[0].mxu0
    %v2936 = vadd.f32 0.0, %v2935
    %v2937 = vpop.f32.mrb[0].mxu0
    %v2938 = vadd.f32 0.0, %v2937
    %2939 = vmatprep.mubr.bf16.mxu0 %v2404
    %2940 = vmatmul.mubr.bf16.gmra.mrb[0].mxu0 %v2403
    %v2941 = vpop.f32.mrb[0].mxu0
    %v2942 = vadd.f32 0.0, %v2941
    %v2943 = vpop.f32.mrb[0].mxu0
    %v2944 = vadd.f32 0.0, %v2943
    %v2945 = vpop.f32.mrb[0].mxu0
    %v2946 = vadd.f32 0.0, %v2945
    %v2947 = vpop.f32.mrb[0].mxu0
    %v2948 = vadd.f32 0.0, %v2947
    %2949 = vmatprep.mubr.bf16.mxu0 %v2406
    %2950 = vmatmul.mubr.bf16.gmra.mrb[0].mxu0 %v2405
    %v2951 = vpop.f32.mrb[0].mxu0
    %v2952 = vadd.f32 0.0, %v2951
    %v2953 = vpop.f32.mrb[0].mxu0
    %v2954 = vadd.f32 0.0, %v2953
    %v2955 = vpop.f32.mrb[0].mxu0
    %v2956 = vadd.f32 0.0, %v2955
    %v2957 = vpop.f32.mrb[0].mxu0
    %v2958 = vadd.f32 0.0, %v2957
    %2959 = vmatprep.mubr.bf16.mxu0 %v2408
    %2960 = vmatmul.mubr.bf16.gmra.mrb[0].mxu0 %v2407
    %v2961 = vpop.f32.mrb[0].mxu0
    %v2962 = vadd.f32 0.0, %v2961
    %v2963 = vpop.f32.mrb[0].mxu0
    %v2964 = vadd.f32 0.0, %v2963
    %v2965 = vpop.f32.mrb[0].mxu0
    %v2966 = vadd.f32 0.0, %v2965
    %v2967 = vpop.f32.mrb[0].mxu0
    %v2968 = vadd.f32 0.0, %v2967
    %2969 = vmatprep.mubr.bf16.mxu0 %v2410
    %2970 = vmatmul.mubr.bf16.gmra.mrb[0].mxu0 %v2409
    %v2971 = vpop.f32.mrb[0].mxu0
    %v2972 = vadd.f32 0.0, %v2971
    %v2973 = vpop.f32.mrb[0].mxu0
    %v2974 = vadd.f32 0.0, %v2973
    %v2975 = vpop.f32.mrb[0].mxu0
    %v2976 = vadd.f32 0.0, %v2975
    %v2977 = vpop.f32.mrb[0].mxu0
    %v2978 = vadd.f32 0.0, %v2977
    %2979 = vmatprep.mubr.bf16.mxu0 %v2412
    %2980 = vmatmul.mubr.bf16.gmra.mrb[0].mxu0 %v2411
    %v2981 = vpop.f32.mrb[0].mxu0
    %v2982 = vadd.f32 0.0, %v2981
    %v2983 = vpop.f32.mrb[0].mxu0
    %v2984 = vadd.f32 0.0, %v2983
    %v2985 = vpop.f32.mrb[0].mxu0
    %v2986 = vadd.f32 0.0, %v2985
    %v2987 = vpop.f32.mrb[0].mxu0
    %v2988 = vadd.f32 0.0, %v2987
    %2989 = vmatprep.mubr.bf16.mxu0 %v2414
    %2990 = vmatmul.mubr.bf16.gmra.mrb[0].mxu0 %v2413
    %v2991 = vpop.f32.mrb[0].mxu0
    %v2992 = vadd.f32 0.0, %v2991
    %v2993 = vpop.f32.mrb[0].mxu0
    %v2994 = vadd.f32 0.0, %v2993
    %v2995 = vpop.f32.mrb[0].mxu0
    %v2996 = vadd.f32 0.0, %v2995
    %v2997 = vpop.f32.mrb[0].mxu0
    %v2998 = vadd.f32 0.0, %v2997
    %2999 = vmatprep.mubr.bf16.mxu0 %v2416
    %3000 = vmatmul.mubr.bf16.gmra.mrb[0].mxu0 %v2415
    %v3001 = vpop.f32.mrb[0].mxu0
    %v3002 = vadd.f32 0.0, %v3001
    %v3003 = vpop.f32.mrb[0].mxu0
    %v3004 = vadd.f32 0.0, %v3003
    %v3005 = vpop.f32.mrb[0].mxu0
    %v3006 = vadd.f32 0.0, %v3005
    %v3007 = vpop.f32.mrb[0].mxu0
    %v3008 = vadd.f32 0.0, %v3007
    %3009 = vmatprep.mubr.bf16.mxu0 %v2418
    %3010 = vmatmul.mubr.bf16.gmra.mrb[0].mxu0 %v2417
    %v3011 = vpop.f32.mrb[0].mxu0
    %v3012 = vadd.f32 0.0, %v3011
    %v3013 = vpop.f32.mrb[0].mxu0
    %v3014 = vadd.f32 0.0, %v3013
    %v3015 = vpop.f32.mrb[0].mxu0
    %v3016 = vadd.f32 0.0, %v3015
    %v3017 = vpop.f32.mrb[0].mxu0
    %v3018 = vadd.f32 0.0, %v3017
    %3019 = vmatprep.mubr.bf16.mxu0 %v2420
    %3020 = vmatmul.mubr.bf16.gmra.mrb[0].mxu0 %v2419
    %v3021 = vpop.f32.mrb[0].mxu0
    %v3022 = vadd.f32 0.0, %v3021
    %v3023 = vpop.f32.mrb[0].mxu0
    %v3024 = vadd.f32 0.0, %v3023
    %v3025 = vpop.f32.mrb[0].mxu0
    %v3026 = vadd.f32 0.0, %v3025
    %v3027 = vpop.f32.mrb[0].mxu0
    %v3028 = vadd.f32 0.0, %v3027
    %3029 = vmatprep.mubr.bf16.mxu0 %v2422
    %3030 = vmatmul.mubr.bf16.gmra.mrb[0].mxu0 %v2421
    %v3031 = vpop.f32.mrb[0].mxu0
    %v3032 = vadd.f32 0.0, %v3031
    %v3033 = vpop.f32.mrb[0].mxu0
    %v3034 = vadd.f32 0.0, %v3033
    %v3035 = vpop.f32.mrb[0].mxu0
    %v3036 = vadd.f32 0.0, %v3035
    %v3037 = vpop.f32.mrb[0].mxu0
    %v3038 = vadd.f32 0.0, %v3037
    %3039 = vmatprep.mubr.bf16.mxu0 %v2424
    %3040 = vmatmul.mubr.bf16.gmra.mrb[0].mxu0 %v2423
    %v3041 = vpop.f32.mrb[0].mxu0
    %v3042 = vadd.f32 0.0, %v3041
    %v3043 = vpop.f32.mrb[0].mxu0
    %v3044 = vadd.f32 0.0, %v3043
    %v3045 = vpop.f32.mrb[0].mxu0
    %v3046 = vadd.f32 0.0, %v3045
    %v3047 = vpop.f32.mrb[0].mxu0
    %v3048 = vadd.f32 0.0, %v3047
    %3049 = vmatprep.mubr.bf16.mxu0 %v2426
    %3050 = vmatmul.mubr.bf16.gmra.mrb[0].mxu0 %v2425
    %v3051 = vpop.f32.mrb[0].mxu0
    %v3052 = vadd.f32 0.0, %v3051
    %v3053 = vpop.f32.mrb[0].mxu0
    %v3054 = vadd.f32 0.0, %v3053
    %v3055 = vpop.f32.mrb[0].mxu0
    %v3056 = vadd.f32 0.0, %v3055
    %v3057 = vpop.f32.mrb[0].mxu0
    %v3058 = vadd.f32 0.0, %v3057
    %3059 = vmatprep.mubr.bf16.mxu0 %v2428
    %3060 = vmatmul.mubr.bf16.gmra.mrb[0].mxu0 %v2427
    %v3061 = vpop.f32.mrb[0].mxu0
    %v3062 = vadd.f32 0.0, %v3061
    %v3063 = vpop.f32.mrb[0].mxu0
    %v3064 = vadd.f32 0.0, %v3063
    %v3065 = vpop.f32.mrb[0].mxu0
    %v3066 = vadd.f32 0.0, %v3065
    %v3067 = vpop.f32.mrb[0].mxu0
    %v3068 = vadd.f32 0.0, %v3067
    %3069 = vmatprep.mubr.bf16.mxu0 %v2430
    %3070 = vmatmul.mubr.bf16.gmra.mrb[0].mxu0 %v2429
    %v3071 = vpop.f32.mrb[0].mxu0
    %v3072 = vadd.f32 0.0, %v3071
    %v3073 = vpop.f32.mrb[0].mxu0
    %v3074 = vadd.f32 0.0, %v3073
    %v3075 = vpop.f32.mrb[0].mxu0
    %v3076 = vadd.f32 0.0, %v3075
    %v3077 = vpop.f32.mrb[0].mxu0
    %v3078 = vadd.f32 0.0, %v3077
    %3079 = vmatprep.mubr.bf16.mxu0 %v2432
    %3080 = vmatmul.mubr.bf16.gmra.mrb[0].mxu0 %v2431
    %v3081 = vpop.f32.mrb[0].mxu0
    %v3082 = vadd.f32 0.0, %v3081
    %v3083 = vpop.f32.mrb[0].mxu0
    %v3084 = vadd.f32 0.0, %v3083
    %v3085 = vpop.f32.mrb[0].mxu0
    %v3086 = vadd.f32 0.0, %v3085
    %v3087 = vpop.f32.mrb[0].mxu0
    %v3088 = vadd.f32 0.0, %v3087
    %3089 = vmatprep.mubr.bf16.mxu0 %v2434
    %3090 = vmatmul.mubr.bf16.gmra.mrb[0].mxu0 %v2433
    %v3091 = vpop.f32.mrb[0].mxu0
    %v3092 = vadd.f32 0.0, %v3091
    %v3093 = vpop.f32.mrb[0].mxu0
    %v3094 = vadd.f32 0.0, %v3093
    %v3095 = vpop.f32.mrb[0].mxu0
    %v3096 = vadd.f32 0.0, %v3095
    %v3097 = vpop.f32.mrb[0].mxu0
    %v3098 = vadd.f32 0.0, %v3097
    %3099 = vmatprep.mubr.bf16.mxu0 %v2436
    %3100 = vmatmul.mubr.bf16.gmra.mrb[0].mxu0 %v2435
    %v3101 = vpop.f32.mrb[0].mxu0
    %v3102 = vadd.f32 0.0, %v3101
    %v3103 = vpop.f32.mrb[0].mxu0
    %v3104 = vadd.f32 0.0, %v3103
    %v3105 = vpop.f32.mrb[0].mxu0
    %v3106 = vadd.f32 0.0, %v3105
    %v3107 = vpop.f32.mrb[0].mxu0
    %v3108 = vadd.f32 0.0, %v3107
    %3109 = vdwg.mxu0
    %v3110 = vadd.f32 %v2437, %v2792
    %v3111 = vadd.f32 %v2438, %v2794
    %v3112 = vadd.f32 %v2439, %v2796
    %v3113 = vadd.f32 %v2440, %v2798
    %v3114 = vadd.f32 %v2441, %v2802
    %v3115 = vadd.f32 %v2442, %v2804
    %v3116 = vadd.f32 %v2443, %v2806
    %v3117 = vadd.f32 %v2444, %v2808
    %v3118 = vadd.f32 %v2445, %v2812
    %v3119 = vadd.f32 %v2446, %v2814
    %v3120 = vadd.f32 %v2447, %v2816
    %v3121 = vadd.f32 %v2448, %v2818
    %v3122 = vadd.f32 %v2449, %v2822
    %v3123 = vadd.f32 %v2450, %v2824
    %v3124 = vadd.f32 %v2451, %v2826
    %v3125 = vadd.f32 %v2452, %v2828
    %v3126 = vadd.f32 %v2453, %v2832
    %v3127 = vadd.f32 %v2454, %v2834
    %v3128 = vadd.f32 %v2455, %v2836
    %v3129 = vadd.f32 %v2456, %v2838
    %v3130 = vadd.f32 %v2457, %v2842
    %v3131 = vadd.f32 %v2458, %v2844
    %v3132 = vadd.f32 %v2459, %v2846
    %v3133 = vadd.f32 %v2460, %v2848
    %v3134 = vadd.f32 %v2461, %v2852
    %v3135 = vadd.f32 %v2462, %v2854
    %v3136 = vadd.f32 %v2463, %v2856
    %v3137 = vadd.f32 %v2464, %v2858
    %v3138 = vadd.f32 %v2465, %v2862
    %v3139 = vadd.f32 %v2466, %v2864
    %v3140 = vadd.f32 %v2467, %v2866
    %v3141 = vadd.f32 %v2468, %v2868
    %v3142 = vadd.f32 %v2469, %v2872
    %v3143 = vadd.f32 %v2470, %v2874
    %v3144 = vadd.f32 %v2471, %v2876
    %v3145 = vadd.f32 %v2472, %v2878
    %v3146 = vadd.f32 %v2473, %v2882
    %v3147 = vadd.f32 %v2474, %v2884
    %v3148 = vadd.f32 %v2475, %v2886
    %v3149 = vadd.f32 %v2476, %v2888
    %v3150 = vadd.f32 %v2477, %v2892
    %v3151 = vadd.f32 %v2478, %v2894
    %v3152 = vadd.f32 %v2479, %v2896
    %v3153 = vadd.f32 %v2480, %v2898
    %v3154 = vadd.f32 %v2481, %v2902
    %v3155 = vadd.f32 %v2482, %v2904
    %v3156 = vadd.f32 %v2483, %v2906
    %v3157 = vadd.f32 %v2484, %v2908
    %v3158 = vadd.f32 %v2485, %v2912
    %v3159 = vadd.f32 %v2486, %v2914
    %v3160 = vadd.f32 %v2487, %v2916
    %v3161 = vadd.f32 %v2488, %v2918
    %v3162 = vadd.f32 %v2489, %v2922
    %v3163 = vadd.f32 %v2490, %v2924
    %v3164 = vadd.f32 %v2491, %v2926
    %v3165 = vadd.f32 %v2492, %v2928
    %v3166 = vadd.f32 %v2493, %v2932
    %v3167 = vadd.f32 %v2494, %v2934
    %v3168 = vadd.f32 %v2495, %v2936
    %v3169 = vadd.f32 %v2496, %v2938
    %v3170 = vadd.f32 %v2497, %v2942
    %v3171 = vadd.f32 %v2498, %v2944
    %v3172 = vadd.f32 %v2499, %v2946
    %v3173 = vadd.f32 %v2500, %v2948
    %v3174 = vadd.f32 %v2501, %v2952
    %v3175 = vadd.f32 %v2502, %v2954
    %v3176 = vadd.f32 %v2503, %v2956
    %v3177 = vadd.f32 %v2504, %v2958
    %v3178 = vadd.f32 %v2505, %v2962
    %v3179 = vadd.f32 %v2506, %v2964
    %v3180 = vadd.f32 %v2507, %v2966
    %v3181 = vadd.f32 %v2508, %v2968
    %v3182 = vadd.f32 %v2509, %v2972
    %v3183 = vadd.f32 %v2510, %v2974
    %v3184 = vadd.f32 %v2511, %v2976
    %v3185 = vadd.f32 %v2512, %v2978
    %v3186 = vadd.f32 %v2513, %v2982
    %v3187 = vadd.f32 %v2514, %v2984
    %v3188 = vadd.f32 %v2515, %v2986
    %v3189 = vadd.f32 %v2516, %v2988
    %v3190 = vadd.f32 %v2517, %v2992
    %v3191 = vadd.f32 %v2518, %v2994
    %v3192 = vadd.f32 %v2519, %v2996
    %v3193 = vadd.f32 %v2520, %v2998
    %v3194 = vadd.f32 %v2521, %v3002
    %v3195 = vadd.f32 %v2522, %v3004
    %v3196 = vadd.f32 %v2523, %v3006
    %v3197 = vadd.f32 %v2524, %v3008
    %v3198 = vadd.f32 %v2525, %v3012
    %v3199 = vadd.f32 %v2526, %v3014
    %v3200 = vadd.f32 %v2527, %v3016
    %v3201 = vadd.f32 %v2528, %v3018
    %v3202 = vadd.f32 %v2529, %v3022
    %v3203 = vadd.f32 %v2530, %v3024
    %v3204 = vadd.f32 %v2531, %v3026
    %v3205 = vadd.f32 %v2532, %v3028
    %v3206 = vadd.f32 %v2533, %v3032
    %v3207 = vadd.f32 %v2534, %v3034
    %v3208 = vadd.f32 %v2535, %v3036
    %v3209 = vadd.f32 %v2536, %v3038
    %v3210 = vadd.f32 %v2537, %v3042
    %v3211 = vadd.f32 %v2538, %v3044
    %v3212 = vadd.f32 %v2539, %v3046
    %v3213 = vadd.f32 %v2540, %v3048
    %v3214 = vadd.f32 %v2541, %v3052
    %v3215 = vadd.f32 %v2542, %v3054
    %v3216 = vadd.f32 %v2543, %v3056
    %v3217 = vadd.f32 %v2544, %v3058
    %v3218 = vadd.f32 %v2545, %v3062
    %v3219 = vadd.f32 %v2546, %v3064
    %v3220 = vadd.f32 %v2547, %v3066
    %v3221 = vadd.f32 %v2548, %v3068
    %v3222 = vadd.f32 %v2549, %v3072
    %v3223 = vadd.f32 %v2550, %v3074
    %v3224 = vadd.f32 %v2551, %v3076
    %v3225 = vadd.f32 %v2552, %v3078
    %v3226 = vadd.f32 %v2553, %v3082
    %v3227 = vadd.f32 %v2554, %v3084
    %v3228 = vadd.f32 %v2555, %v3086
    %v3229 = vadd.f32 %v2556, %v3088
    %v3230 = vadd.f32 %v2557, %v3092
    %v3231 = vadd.f32 %v2558, %v3094
    %v3232 = vadd.f32 %v2559, %v3096
    %v3233 = vadd.f32 %v2560, %v3098
    %v3234 = vadd.f32 %v2561, %v3102
    %v3235 = vadd.f32 %v2562, %v3104
    %v3236 = vadd.f32 %v2563, %v3106
    %v3237 = vadd.f32 %v2564, %v3108
    %3238 = vst [vmem:[#allocation3] sm:$0xff] %v3110
    %3239 = vst [vmem:[#allocation3 + $0x8] sm:$0xff] %v3111
    %3240 = vst [vmem:[#allocation3 + $0x10] sm:$0xff] %v3112
    %3241 = vst [vmem:[#allocation3 + $0x18] sm:$0xff] %v3113
    %3242 = vst [vmem:[#allocation3 + $0x20] sm:$0xff] %v3114
    %3243 = vst [vmem:[#allocation3 + $0x28] sm:$0xff] %v3115
    %3244 = vst [vmem:[#allocation3 + $0x30] sm:$0xff] %v3116
    %3245 = vst [vmem:[#allocation3 + $0x38] sm:$0xff] %v3117
    %3246 = vst [vmem:[#allocation3 + $0x40] sm:$0xff] %v3118
    %3247 = vst [vmem:[#allocation3 + $0x48] sm:$0xff] %v3119
    %3248 = vst [vmem:[#allocation3 + $0x50] sm:$0xff] %v3120
    %3249 = vst [vmem:[#allocation3 + $0x58] sm:$0xff] %v3121
    %3250 = vst [vmem:[#allocation3 + $0x60] sm:$0xff] %v3122
    %3251 = vst [vmem:[#allocation3 + $0x68] sm:$0xff] %v3123
    %3252 = vst [vmem:[#allocation3 + $0x70] sm:$0xff] %v3124
    %3253 = vst [vmem:[#allocation3 + $0x78] sm:$0xff] %v3125
    %3254 = vst [vmem:[#allocation3 + $0x80] sm:$0xff] %v3126
    %3255 = vst [vmem:[#allocation3 + $0x88] sm:$0xff] %v3127
    %3256 = vst [vmem:[#allocation3 + $0x90] sm:$0xff] %v3128
    %3257 = vst [vmem:[#allocation3 + $0x98] sm:$0xff] %v3129
    %3258 = vst [vmem:[#allocation3 + $0xa0] sm:$0xff] %v3130
    %3259 = vst [vmem:[#allocation3 + $0xa8] sm:$0xff] %v3131
    %3260 = vst [vmem:[#allocation3 + $0xb0] sm:$0xff] %v3132
    %3261 = vst [vmem:[#allocation3 + $0xb8] sm:$0xff] %v3133
    %3262 = vst [vmem:[#allocation3 + $0xc0] sm:$0xff] %v3134
    %3263 = vst [vmem:[#allocation3 + $0xc8] sm:$0xff] %v3135
    %3264 = vst [vmem:[#allocation3 + $0xd0] sm:$0xff] %v3136
    %3265 = vst [vmem:[#allocation3 + $0xd8] sm:$0xff] %v3137
    %3266 = vst [vmem:[#allocation3 + $0xe0] sm:$0xff] %v3138
    %3267 = vst [vmem:[#allocation3 + $0xe8] sm:$0xff] %v3139
    %3268 = vst [vmem:[#allocation3 + $0xf0] sm:$0xff] %v3140
    %3269 = vst [vmem:[#allocation3 + $0xf8] sm:$0xff] %v3141
    %3270 = vst [vmem:[#allocation3 + $0x100] sm:$0xff] %v3142
    %3271 = vst [vmem:[#allocation3 + $0x108] sm:$0xff] %v3143
    %3272 = vst [vmem:[#allocation3 + $0x110] sm:$0xff] %v3144
    %3273 = vst [vmem:[#allocation3 + $0x118] sm:$0xff] %v3145
    %3274 = vst [vmem:[#allocation3 + $0x120] sm:$0xff] %v3146
    %3275 = vst [vmem:[#allocation3 + $0x128] sm:$0xff] %v3147
    %3276 = vst [vmem:[#allocation3 + $0x130] sm:$0xff] %v3148
    %3277 = vst [vmem:[#allocation3 + $0x138] sm:$0xff] %v3149
    %3278 = vst [vmem:[#allocation3 + $0x140] sm:$0xff] %v3150
    %3279 = vst [vmem:[#allocation3 + $0x148] sm:$0xff] %v3151
    %3280 = vst [vmem:[#allocation3 + $0x150] sm:$0xff] %v3152
    %3281 = vst [vmem:[#allocation3 + $0x158] sm:$0xff] %v3153
    %3282 = vst [vmem:[#allocation3 + $0x160] sm:$0xff] %v3154
    %3283 = vst [vmem:[#allocation3 + $0x168] sm:$0xff] %v3155
    %3284 = vst [vmem:[#allocation3 + $0x170] sm:$0xff] %v3156
    %3285 = vst [vmem:[#allocation3 + $0x178] sm:$0xff] %v3157
    %3286 = vst [vmem:[#allocation3 + $0x180] sm:$0xff] %v3158
    %3287 = vst [vmem:[#allocation3 + $0x188] sm:$0xff] %v3159
    %3288 = vst [vmem:[#allocation3 + $0x190] sm:$0xff] %v3160
    %3289 = vst [vmem:[#allocation3 + $0x198] sm:$0xff] %v3161
    %3290 = vst [vmem:[#allocation3 + $0x1a0] sm:$0xff] %v3162
    %3291 = vst [vmem:[#allocation3 + $0x1a8] sm:$0xff] %v3163
    %3292 = vst [vmem:[#allocation3 + $0x1b0] sm:$0xff] %v3164
    %3293 = vst [vmem:[#allocation3 + $0x1b8] sm:$0xff] %v3165
    %3294 = vst [vmem:[#allocation3 + $0x1c0] sm:$0xff] %v3166
    %3295 = vst [vmem:[#allocation3 + $0x1c8] sm:$0xff] %v3167
    %3296 = vst [vmem:[#allocation3 + $0x1d0] sm:$0xff] %v3168
    %3297 = vst [vmem:[#allocation3 + $0x1d8] sm:$0xff] %v3169
    %3298 = vst [vmem:[#allocation3 + $0x1e0] sm:$0xff] %v3170
    %3299 = vst [vmem:[#allocation3 + $0x1e8] sm:$0xff] %v3171
    %3300 = vst [vmem:[#allocation3 + $0x1f0] sm:$0xff] %v3172
    %3301 = vst [vmem:[#allocation3 + $0x1f8] sm:$0xff] %v3173
    %3302 = vst [vmem:[#allocation3 + $0x200] sm:$0xff] %v3174
    %3303 = vst [vmem:[#allocation3 + $0x208] sm:$0xff] %v3175
    %3304 = vst [vmem:[#allocation3 + $0x210] sm:$0xff] %v3176
    %3305 = vst [vmem:[#allocation3 + $0x218] sm:$0xff] %v3177
    %3306 = vst [vmem:[#allocation3 + $0x220] sm:$0xff] %v3178
    %3307 = vst [vmem:[#allocation3 + $0x228] sm:$0xff] %v3179
    %3308 = vst [vmem:[#allocation3 + $0x230] sm:$0xff] %v3180
    %3309 = vst [vmem:[#allocation3 + $0x238] sm:$0xff] %v3181
    %3310 = vst [vmem:[#allocation3 + $0x240] sm:$0xff] %v3182
    %3311 = vst [vmem:[#allocation3 + $0x248] sm:$0xff] %v3183
    %3312 = vst [vmem:[#allocation3 + $0x250] sm:$0xff] %v3184
    %3313 = vst [vmem:[#allocation3 + $0x258] sm:$0xff] %v3185
    %3314 = vst [vmem:[#allocation3 + $0x260] sm:$0xff] %v3186
    %3315 = vst [vmem:[#allocation3 + $0x268] sm:$0xff] %v3187
    %3316 = vst [vmem:[#allocation3 + $0x270] sm:$0xff] %v3188
    %3317 = vst [vmem:[#allocation3 + $0x278] sm:$0xff] %v3189
    %3318 = vst [vmem:[#allocation3 + $0x280] sm:$0xff] %v3190
    %3319 = vst [vmem:[#allocation3 + $0x288] sm:$0xff] %v3191
    %3320 = vst [vmem:[#allocation3 + $0x290] sm:$0xff] %v3192
    %3321 = vst [vmem:[#allocation3 + $0x298] sm:$0xff] %v3193
    %3322 = vst [vmem:[#allocation3 + $0x2a0] sm:$0xff] %v3194
    %3323 = vst [vmem:[#allocation3 + $0x2a8] sm:$0xff] %v3195
    %3324 = vst [vmem:[#allocation3 + $0x2b0] sm:$0xff] %v3196
    %3325 = vst [vmem:[#allocation3 + $0x2b8] sm:$0xff] %v3197
    %3326 = vst [vmem:[#allocation3 + $0x2c0] sm:$0xff] %v3198
    %3327 = vst [vmem:[#allocation3 + $0x2c8] sm:$0xff] %v3199
    %3328 = vst [vmem:[#allocation3 + $0x2d0] sm:$0xff] %v3200
    %3329 = vst [vmem:[#allocation3 + $0x2d8] sm:$0xff] %v3201
    %3330 = vst [vmem:[#allocation3 + $0x2e0] sm:$0xff] %v3202
    %3331 = vst [vmem:[#allocation3 + $0x2e8] sm:$0xff] %v3203
    %3332 = vst [vmem:[#allocation3 + $0x2f0] sm:$0xff] %v3204
    %3333 = vst [vmem:[#allocation3 + $0x2f8] sm:$0xff] %v3205
    %3334 = vst [vmem:[#allocation3 + $0x300] sm:$0xff] %v3206
    %3335 = vst [vmem:[#allocation3 + $0x308] sm:$0xff] %v3207
    %3336 = vst [vmem:[#allocation3 + $0x310] sm:$0xff] %v3208
    %3337 = vst [vmem:[#allocation3 + $0x318] sm:$0xff] %v3209
    %3338 = vst [vmem:[#allocation3 + $0x320] sm:$0xff] %v3210
    %3339 = vst [vmem:[#allocation3 + $0x328] sm:$0xff] %v3211
    %3340 = vst [vmem:[#allocation3 + $0x330] sm:$0xff] %v3212
    %3341 = vst [vmem:[#allocation3 + $0x338] sm:$0xff] %v3213
    %3342 = vst [vmem:[#allocation3 + $0x340] sm:$0xff] %v3214
    %3343 = vst [vmem:[#allocation3 + $0x348] sm:$0xff] %v3215
    %3344 = vst [vmem:[#allocation3 + $0x350] sm:$0xff] %v3216
    %3345 = vst [vmem:[#allocation3 + $0x358] sm:$0xff] %v3217
    %3346 = vst [vmem:[#allocation3 + $0x360] sm:$0xff] %v3218
    %3347 = vst [vmem:[#allocation3 + $0x368] sm:$0xff] %v3219
    %3348 = vst [vmem:[#allocation3 + $0x370] sm:$0xff] %v3220
    %3349 = vst [vmem:[#allocation3 + $0x378] sm:$0xff] %v3221
    %3350 = vst [vmem:[#allocation3 + $0x380] sm:$0xff] %v3222
    %3351 = vst [vmem:[#allocation3 + $0x388] sm:$0xff] %v3223
    %3352 = vst [vmem:[#allocation3 + $0x390] sm:$0xff] %v3224
    %3353 = vst [vmem:[#allocation3 + $0x398] sm:$0xff] %v3225
    %3354 = vst [vmem:[#allocation3 + $0x3a0] sm:$0xff] %v3226
    %3355 = vst [vmem:[#allocation3 + $0x3a8] sm:$0xff] %v3227
    %3356 = vst [vmem:[#allocation3 + $0x3b0] sm:$0xff] %v3228
    %3357 = vst [vmem:[#allocation3 + $0x3b8] sm:$0xff] %v3229
    %3358 = vst [vmem:[#allocation3 + $0x3c0] sm:$0xff] %v3230
    %3359 = vst [vmem:[#allocation3 + $0x3c8] sm:$0xff] %v3231
    %3360 = vst [vmem:[#allocation3 + $0x3d0] sm:$0xff] %v3232
    %3361 = vst [vmem:[#allocation3 + $0x3d8] sm:$0xff] %v3233
    %3362 = vst [vmem:[#allocation3 + $0x3e0] sm:$0xff] %v3234
    %3363 = vst [vmem:[#allocation3 + $0x3e8] sm:$0xff] %v3235
    %3364 = vst [vmem:[#allocation3 + $0x3f0] sm:$0xff] %v3236
    %3365 = vst [vmem:[#allocation3 + $0x3f8] sm:$0xff] %v3237
    // Predicated region
    $region42: #{dis_forward.1} parent=1 // pred_check
      %p3366 = pneg %p34
    $region43: #{dis_forward.1} parent=1 // pred_check_branch
      %3368 = sbr.rel (%p3366) target = $region45
    $region44: #{dis_forward.1} parent=1 // pred_region
      %v3369 = vld [vmem:[#allocation3] sm:$0xff]
      %v3370 = vld [vmem:[#allocation3 + $0x8] sm:$0xff]
      %v3371 = vld [vmem:[#allocation3 + $0x10] sm:$0xff]
      %v3372 = vld [vmem:[#allocation3 + $0x18] sm:$0xff]
      %v3373 = vld [vmem:[#allocation3 + $0x20] sm:$0xff]
      %v3374 = vld [vmem:[#allocation3 + $0x28] sm:$0xff]
      %v3375 = vld [vmem:[#allocation3 + $0x30] sm:$0xff]
      %v3376 = vld [vmem:[#allocation3 + $0x38] sm:$0xff]
      %v3377 = vld [vmem:[#allocation3 + $0x40] sm:$0xff]
      %v3378 = vld [vmem:[#allocation3 + $0x48] sm:$0xff]
      %v3379 = vld [vmem:[#allocation3 + $0x50] sm:$0xff]
      %v3380 = vld [vmem:[#allocation3 + $0x58] sm:$0xff]
      %v3381 = vld [vmem:[#allocation3 + $0x60] sm:$0xff]
      %v3382 = vld [vmem:[#allocation3 + $0x68] sm:$0xff]
      %v3383 = vld [vmem:[#allocation3 + $0x70] sm:$0xff]
      %v3384 = vld [vmem:[#allocation3 + $0x78] sm:$0xff]
      %v3385 = vld [vmem:[#allocation3 + $0x80] sm:$0xff]
      %v3386 = vld [vmem:[#allocation3 + $0x88] sm:$0xff]
      %v3387 = vld [vmem:[#allocation3 + $0x90] sm:$0xff]
      %v3388 = vld [vmem:[#allocation3 + $0x98] sm:$0xff]
      %v3389 = vld [vmem:[#allocation3 + $0xa0] sm:$0xff]
      %v3390 = vld [vmem:[#allocation3 + $0xa8] sm:$0xff]
      %v3391 = vld [vmem:[#allocation3 + $0xb0] sm:$0xff]
      %v3392 = vld [vmem:[#allocation3 + $0xb8] sm:$0xff]
      %v3393 = vld [vmem:[#allocation3 + $0xc0] sm:$0xff]
      %v3394 = vld [vmem:[#allocation3 + $0xc8] sm:$0xff]
      %v3395 = vld [vmem:[#allocation3 + $0xd0] sm:$0xff]
      %v3396 = vld [vmem:[#allocation3 + $0xd8] sm:$0xff]
      %v3397 = vld [vmem:[#allocation3 + $0xe0] sm:$0xff]
      %v3398 = vld [vmem:[#allocation3 + $0xe8] sm:$0xff]
      %v3399 = vld [vmem:[#allocation3 + $0xf0] sm:$0xff]
      %v3400 = vld [vmem:[#allocation3 + $0xf8] sm:$0xff]
      %v3401 = vld [vmem:[#allocation3 + $0x100] sm:$0xff]
      %v3402 = vld [vmem:[#allocation3 + $0x108] sm:$0xff]
      %v3403 = vld [vmem:[#allocation3 + $0x110] sm:$0xff]
      %v3404 = vld [vmem:[#allocation3 + $0x118] sm:$0xff]
      %v3405 = vld [vmem:[#allocation3 + $0x120] sm:$0xff]
      %v3406 = vld [vmem:[#allocation3 + $0x128] sm:$0xff]
      %v3407 = vld [vmem:[#allocation3 + $0x130] sm:$0xff]
      %v3408 = vld [vmem:[#allocation3 + $0x138] sm:$0xff]
      %v3409 = vld [vmem:[#allocation3 + $0x140] sm:$0xff]
      %v3410 = vld [vmem:[#allocation3 + $0x148] sm:$0xff]
      %v3411 = vld [vmem:[#allocation3 + $0x150] sm:$0xff]
      %v3412 = vld [vmem:[#allocation3 + $0x158] sm:$0xff]
      %v3413 = vld [vmem:[#allocation3 + $0x160] sm:$0xff]
      %v3414 = vld [vmem:[#allocation3 + $0x168] sm:$0xff]
      %v3415 = vld [vmem:[#allocation3 + $0x170] sm:$0xff]
      %v3416 = vld [vmem:[#allocation3 + $0x178] sm:$0xff]
      %v3417 = vld [vmem:[#allocation3 + $0x180] sm:$0xff]
      %v3418 = vld [vmem:[#allocation3 + $0x188] sm:$0xff]
      %v3419 = vld [vmem:[#allocation3 + $0x190] sm:$0xff]
      %v3420 = vld [vmem:[#allocation3 + $0x198] sm:$0xff]
      %v3421 = vld [vmem:[#allocation3 + $0x1a0] sm:$0xff]
      %v3422 = vld [vmem:[#allocation3 + $0x1a8] sm:$0xff]
      %v3423 = vld [vmem:[#allocation3 + $0x1b0] sm:$0xff]
      %v3424 = vld [vmem:[#allocation3 + $0x1b8] sm:$0xff]
      %v3425 = vld [vmem:[#allocation3 + $0x1c0] sm:$0xff]
      %v3426 = vld [vmem:[#allocation3 + $0x1c8] sm:$0xff]
      %v3427 = vld [vmem:[#allocation3 + $0x1d0] sm:$0xff]
      %v3428 = vld [vmem:[#allocation3 + $0x1d8] sm:$0xff]
      %v3429 = vld [vmem:[#allocation3 + $0x1e0] sm:$0xff]
      %v3430 = vld [vmem:[#allocation3 + $0x1e8] sm:$0xff]
      %v3431 = vld [vmem:[#allocation3 + $0x1f0] sm:$0xff]
      %v3432 = vld [vmem:[#allocation3 + $0x1f8] sm:$0xff]
      %v3433 = vld [vmem:[#allocation3 + $0x200] sm:$0xff]
      %v3434 = vld [vmem:[#allocation3 + $0x208] sm:$0xff]
      %v3435 = vld [vmem:[#allocation3 + $0x210] sm:$0xff]
      %v3436 = vld [vmem:[#allocation3 + $0x218] sm:$0xff]
      %v3437 = vld [vmem:[#allocation3 + $0x220] sm:$0xff]
      %v3438 = vld [vmem:[#allocation3 + $0x228] sm:$0xff]
      %v3439 = vld [vmem:[#allocation3 + $0x230] sm:$0xff]
      %v3440 = vld [vmem:[#allocation3 + $0x238] sm:$0xff]
      %v3441 = vld [vmem:[#allocation3 + $0x240] sm:$0xff]
      %v3442 = vld [vmem:[#allocation3 + $0x248] sm:$0xff]
      %v3443 = vld [vmem:[#allocation3 + $0x250] sm:$0xff]
      %v3444 = vld [vmem:[#allocation3 + $0x258] sm:$0xff]
      %v3445 = vld [vmem:[#allocation3 + $0x260] sm:$0xff]
      %v3446 = vld [vmem:[#allocation3 + $0x268] sm:$0xff]
      %v3447 = vld [vmem:[#allocation3 + $0x270] sm:$0xff]
      %v3448 = vld [vmem:[#allocation3 + $0x278] sm:$0xff]
      %v3449 = vld [vmem:[#allocation3 + $0x280] sm:$0xff]
      %v3450 = vld [vmem:[#allocation3 + $0x288] sm:$0xff]
      %v3451 = vld [vmem:[#allocation3 + $0x290] sm:$0xff]
      %v3452 = vld [vmem:[#allocation3 + $0x298] sm:$0xff]
      %v3453 = vld [vmem:[#allocation3 + $0x2a0] sm:$0xff]
      %v3454 = vld [vmem:[#allocation3 + $0x2a8] sm:$0xff]
      %v3455 = vld [vmem:[#allocation3 + $0x2b0] sm:$0xff]
      %v3456 = vld [vmem:[#allocation3 + $0x2b8] sm:$0xff]
      %v3457 = vld [vmem:[#allocation3 + $0x2c0] sm:$0xff]
      %v3458 = vld [vmem:[#allocation3 + $0x2c8] sm:$0xff]
      %v3459 = vld [vmem:[#allocation3 + $0x2d0] sm:$0xff]
      %v3460 = vld [vmem:[#allocation3 + $0x2d8] sm:$0xff]
      %v3461 = vld [vmem:[#allocation3 + $0x2e0] sm:$0xff]
      %v3462 = vld [vmem:[#allocation3 + $0x2e8] sm:$0xff]
      %v3463 = vld [vmem:[#allocation3 + $0x2f0] sm:$0xff]
      %v3464 = vld [vmem:[#allocation3 + $0x2f8] sm:$0xff]
      %v3465 = vld [vmem:[#allocation3 + $0x300] sm:$0xff]
      %v3466 = vld [vmem:[#allocation3 + $0x308] sm:$0xff]
      %v3467 = vld [vmem:[#allocation3 + $0x310] sm:$0xff]
      %v3468 = vld [vmem:[#allocation3 + $0x318] sm:$0xff]
      %v3469 = vld [vmem:[#allocation3 + $0x320] sm:$0xff]
      %v3470 = vld [vmem:[#allocation3 + $0x328] sm:$0xff]
      %v3471 = vld [vmem:[#allocation3 + $0x330] sm:$0xff]
      %v3472 = vld [vmem:[#allocation3 + $0x338] sm:$0xff]
      %v3473 = vld [vmem:[#allocation3 + $0x340] sm:$0xff]
      %v3474 = vld [vmem:[#allocation3 + $0x348] sm:$0xff]
      %v3475 = vld [vmem:[#allocation3 + $0x350] sm:$0xff]
      %v3476 = vld [vmem:[#allocation3 + $0x358] sm:$0xff]
      %v3477 = vld [vmem:[#allocation3 + $0x360] sm:$0xff]
      %v3478 = vld [vmem:[#allocation3 + $0x368] sm:$0xff]
      %v3479 = vld [vmem:[#allocation3 + $0x370] sm:$0xff]
      %v3480 = vld [vmem:[#allocation3 + $0x378] sm:$0xff]
      %v3481 = vld [vmem:[#allocation3 + $0x380] sm:$0xff]
      %v3482 = vld [vmem:[#allocation3 + $0x388] sm:$0xff]
      %v3483 = vld [vmem:[#allocation3 + $0x390] sm:$0xff]
      %v3484 = vld [vmem:[#allocation3 + $0x398] sm:$0xff]
      %v3485 = vld [vmem:[#allocation3 + $0x3a0] sm:$0xff]
      %v3486 = vld [vmem:[#allocation3 + $0x3a8] sm:$0xff]
      %v3487 = vld [vmem:[#allocation3 + $0x3b0] sm:$0xff]
      %v3488 = vld [vmem:[#allocation3 + $0x3b8] sm:$0xff]
      %v3489 = vld [vmem:[#allocation3 + $0x3c0] sm:$0xff]
      %v3490 = vld [vmem:[#allocation3 + $0x3c8] sm:$0xff]
      %v3491 = vld [vmem:[#allocation3 + $0x3d0] sm:$0xff]
      %v3492 = vld [vmem:[#allocation3 + $0x3d8] sm:$0xff]
      %v3493 = vld [vmem:[#allocation3 + $0x3e0] sm:$0xff]
      %v3494 = vld [vmem:[#allocation3 + $0x3e8] sm:$0xff]
      %v3495 = vld [vmem:[#allocation3 + $0x3f0] sm:$0xff]
      %v3496 = vld [vmem:[#allocation3 + $0x3f8] sm:$0xff]
      %v3497 = vld [vmem:[%s6] sm:$0x3]
      %v3499 = vlaneseq
      %v3500 = vshrl.u32 %v3499, 7
      %v3501 = vsub.s32 0, %v3500
      %v3502 = vrot.slane %v3497, %v3501
      %v3503 = vlaneseq
      %v3504 = vshrl.u32 %v3503, 7
      %v3505 = vsub.s32 1, %v3504
      %v3506 = vrot.slane %v3497, %v3505
      %v3509 = vadd.f32 %v3369, %v3502
      %v3510 = vadd.f32 %v3370, %v3506
      %v3511 = vadd.f32 %v3371, %v3502
      %v3512 = vadd.f32 %v3372, %v3506
      %v3513 = vadd.f32 %v3373, %v3502
      %v3514 = vadd.f32 %v3374, %v3506
      %v3515 = vadd.f32 %v3375, %v3502
      %v3516 = vadd.f32 %v3376, %v3506
      %v3517 = vadd.f32 %v3377, %v3502
      %v3518 = vadd.f32 %v3378, %v3506
      %v3519 = vadd.f32 %v3379, %v3502
      %v3520 = vadd.f32 %v3380, %v3506
      %v3521 = vadd.f32 %v3381, %v3502
      %v3522 = vadd.f32 %v3382, %v3506
      %v3523 = vadd.f32 %v3383, %v3502
      %v3524 = vadd.f32 %v3384, %v3506
      %v3525 = vadd.f32 %v3385, %v3502
      %v3526 = vadd.f32 %v3386, %v3506
      %v3527 = vadd.f32 %v3387, %v3502
      %v3528 = vadd.f32 %v3388, %v3506
      %v3529 = vadd.f32 %v3389, %v3502
      %v3530 = vadd.f32 %v3390, %v3506
      %v3531 = vadd.f32 %v3391, %v3502
      %v3532 = vadd.f32 %v3392, %v3506
      %v3533 = vadd.f32 %v3393, %v3502
      %v3534 = vadd.f32 %v3394, %v3506
      %v3535 = vadd.f32 %v3395, %v3502
      %v3536 = vadd.f32 %v3396, %v3506
      %v3537 = vadd.f32 %v3397, %v3502
      %v3538 = vadd.f32 %v3398, %v3506
      %v3539 = vadd.f32 %v3399, %v3502
      %v3540 = vadd.f32 %v3400, %v3506
      %v3541 = vadd.f32 %v3401, %v3502
      %v3542 = vadd.f32 %v3402, %v3506
      %v3543 = vadd.f32 %v3403, %v3502
      %v3544 = vadd.f32 %v3404, %v3506
      %v3545 = vadd.f32 %v3405, %v3502
      %v3546 = vadd.f32 %v3406, %v3506
      %v3547 = vadd.f32 %v3407, %v3502
      %v3548 = vadd.f32 %v3408, %v3506
      %v3549 = vadd.f32 %v3409, %v3502
      %v3550 = vadd.f32 %v3410, %v3506
      %v3551 = vadd.f32 %v3411, %v3502
      %v3552 = vadd.f32 %v3412, %v3506
      %v3553 = vadd.f32 %v3413, %v3502
      %v3554 = vadd.f32 %v3414, %v3506
      %v3555 = vadd.f32 %v3415, %v3502
      %v3556 = vadd.f32 %v3416, %v3506
      %v3557 = vadd.f32 %v3417, %v3502
      %v3558 = vadd.f32 %v3418, %v3506
      %v3559 = vadd.f32 %v3419, %v3502
      %v3560 = vadd.f32 %v3420, %v3506
      %v3561 = vadd.f32 %v3421, %v3502
      %v3562 = vadd.f32 %v3422, %v3506
      %v3563 = vadd.f32 %v3423, %v3502
      %v3564 = vadd.f32 %v3424, %v3506
      %v3565 = vadd.f32 %v3425, %v3502
      %v3566 = vadd.f32 %v3426, %v3506
      %v3567 = vadd.f32 %v3427, %v3502
      %v3568 = vadd.f32 %v3428, %v3506
      %v3569 = vadd.f32 %v3429, %v3502
      %v3570 = vadd.f32 %v3430, %v3506
      %v3571 = vadd.f32 %v3431, %v3502
      %v3572 = vadd.f32 %v3432, %v3506
      %v3573 = vadd.f32 %v3433, %v3502
      %v3574 = vadd.f32 %v3434, %v3506
      %v3575 = vadd.f32 %v3435, %v3502
      %v3576 = vadd.f32 %v3436, %v3506
      %v3577 = vadd.f32 %v3437, %v3502
      %v3578 = vadd.f32 %v3438, %v3506
      %v3579 = vadd.f32 %v3439, %v3502
      %v3580 = vadd.f32 %v3440, %v3506
      %v3581 = vadd.f32 %v3441, %v3502
      %v3582 = vadd.f32 %v3442, %v3506
      %v3583 = vadd.f32 %v3443, %v3502
      %v3584 = vadd.f32 %v3444, %v3506
      %v3585 = vadd.f32 %v3445, %v3502
      %v3586 = vadd.f32 %v3446, %v3506
      %v3587 = vadd.f32 %v3447, %v3502
      %v3588 = vadd.f32 %v3448, %v3506
      %v3589 = vadd.f32 %v3449, %v3502
      %v3590 = vadd.f32 %v3450, %v3506
      %v3591 = vadd.f32 %v3451, %v3502
      %v3592 = vadd.f32 %v3452, %v3506
      %v3593 = vadd.f32 %v3453, %v3502
      %v3594 = vadd.f32 %v3454, %v3506
      %v3595 = vadd.f32 %v3455, %v3502
      %v3596 = vadd.f32 %v3456, %v3506
      %v3597 = vadd.f32 %v3457, %v3502
      %v3598 = vadd.f32 %v3458, %v3506
      %v3599 = vadd.f32 %v3459, %v3502
      %v3600 = vadd.f32 %v3460, %v3506
      %v3601 = vadd.f32 %v3461, %v3502
      %v3602 = vadd.f32 %v3462, %v3506
      %v3603 = vadd.f32 %v3463, %v3502
      %v3604 = vadd.f32 %v3464, %v3506
      %v3605 = vadd.f32 %v3465, %v3502
      %v3606 = vadd.f32 %v3466, %v3506
      %v3607 = vadd.f32 %v3467, %v3502
      %v3608 = vadd.f32 %v3468, %v3506
      %v3609 = vadd.f32 %v3469, %v3502
      %v3610 = vadd.f32 %v3470, %v3506
      %v3611 = vadd.f32 %v3471, %v3502
      %v3612 = vadd.f32 %v3472, %v3506
      %v3613 = vadd.f32 %v3473, %v3502
      %v3614 = vadd.f32 %v3474, %v3506
      %v3615 = vadd.f32 %v3475, %v3502
      %v3616 = vadd.f32 %v3476, %v3506
      %v3617 = vadd.f32 %v3477, %v3502
      %v3618 = vadd.f32 %v3478, %v3506
      %v3619 = vadd.f32 %v3479, %v3502
      %v3620 = vadd.f32 %v3480, %v3506
      %v3621 = vadd.f32 %v3481, %v3502
      %v3622 = vadd.f32 %v3482, %v3506
      %v3623 = vadd.f32 %v3483, %v3502
      %v3624 = vadd.f32 %v3484, %v3506
      %v3625 = vadd.f32 %v3485, %v3502
      %v3626 = vadd.f32 %v3486, %v3506
      %v3627 = vadd.f32 %v3487, %v3502
      %v3628 = vadd.f32 %v3488, %v3506
      %v3629 = vadd.f32 %v3489, %v3502
      %v3630 = vadd.f32 %v3490, %v3506
      %v3631 = vadd.f32 %v3491, %v3502
      %v3632 = vadd.f32 %v3492, %v3506
      %v3633 = vadd.f32 %v3493, %v3502
      %v3634 = vadd.f32 %v3494, %v3506
      %v3635 = vadd.f32 %v3495, %v3502
      %v3636 = vadd.f32 %v3496, %v3506
      %v3637 = vmax.f32 %v3509, 0.0
      %v3638 = vmax.f32 %v3510, 0.0
      %v3639 = vmax.f32 %v3511, 0.0
      %v3640 = vmax.f32 %v3512, 0.0
      %v3641 = vmax.f32 %v3513, 0.0
      %v3642 = vmax.f32 %v3514, 0.0
      %v3643 = vmax.f32 %v3515, 0.0
      %v3644 = vmax.f32 %v3516, 0.0
      %v3645 = vmax.f32 %v3517, 0.0
      %v3646 = vmax.f32 %v3518, 0.0
      %v3647 = vmax.f32 %v3519, 0.0
      %v3648 = vmax.f32 %v3520, 0.0
      %v3649 = vmax.f32 %v3521, 0.0
      %v3650 = vmax.f32 %v3522, 0.0
      %v3651 = vmax.f32 %v3523, 0.0
      %v3652 = vmax.f32 %v3524, 0.0
      %v3653 = vmax.f32 %v3525, 0.0
      %v3654 = vmax.f32 %v3526, 0.0
      %v3655 = vmax.f32 %v3527, 0.0
      %v3656 = vmax.f32 %v3528, 0.0
      %v3657 = vmax.f32 %v3529, 0.0
      %v3658 = vmax.f32 %v3530, 0.0
      %v3659 = vmax.f32 %v3531, 0.0
      %v3660 = vmax.f32 %v3532, 0.0
      %v3661 = vmax.f32 %v3533, 0.0
      %v3662 = vmax.f32 %v3534, 0.0
      %v3663 = vmax.f32 %v3535, 0.0
      %v3664 = vmax.f32 %v3536, 0.0
      %v3665 = vmax.f32 %v3537, 0.0
      %v3666 = vmax.f32 %v3538, 0.0
      %v3667 = vmax.f32 %v3539, 0.0
      %v3668 = vmax.f32 %v3540, 0.0
      %v3669 = vmax.f32 %v3541, 0.0
      %v3670 = vmax.f32 %v3542, 0.0
      %v3671 = vmax.f32 %v3543, 0.0
      %v3672 = vmax.f32 %v3544, 0.0
      %v3673 = vmax.f32 %v3545, 0.0
      %v3674 = vmax.f32 %v3546, 0.0
      %v3675 = vmax.f32 %v3547, 0.0
      %v3676 = vmax.f32 %v3548, 0.0
      %v3677 = vmax.f32 %v3549, 0.0
      %v3678 = vmax.f32 %v3550, 0.0
      %v3679 = vmax.f32 %v3551, 0.0
      %v3680 = vmax.f32 %v3552, 0.0
      %v3681 = vmax.f32 %v3553, 0.0
      %v3682 = vmax.f32 %v3554, 0.0
      %v3683 = vmax.f32 %v3555, 0.0
      %v3684 = vmax.f32 %v3556, 0.0
      %v3685 = vmax.f32 %v3557, 0.0
      %v3686 = vmax.f32 %v3558, 0.0
      %v3687 = vmax.f32 %v3559, 0.0
      %v3688 = vmax.f32 %v3560, 0.0
      %v3689 = vmax.f32 %v3561, 0.0
      %v3690 = vmax.f32 %v3562, 0.0
      %v3691 = vmax.f32 %v3563, 0.0
      %v3692 = vmax.f32 %v3564, 0.0
      %v3693 = vmax.f32 %v3565, 0.0
      %v3694 = vmax.f32 %v3566, 0.0
      %v3695 = vmax.f32 %v3567, 0.0
      %v3696 = vmax.f32 %v3568, 0.0
      %v3697 = vmax.f32 %v3569, 0.0
      %v3698 = vmax.f32 %v3570, 0.0
      %v3699 = vmax.f32 %v3571, 0.0
      %v3700 = vmax.f32 %v3572, 0.0
      %v3701 = vmax.f32 %v3573, 0.0
      %v3702 = vmax.f32 %v3574, 0.0
      %v3703 = vmax.f32 %v3575, 0.0
      %v3704 = vmax.f32 %v3576, 0.0
      %v3705 = vmax.f32 %v3577, 0.0
      %v3706 = vmax.f32 %v3578, 0.0
      %v3707 = vmax.f32 %v3579, 0.0
      %v3708 = vmax.f32 %v3580, 0.0
      %v3709 = vmax.f32 %v3581, 0.0
      %v3710 = vmax.f32 %v3582, 0.0
      %v3711 = vmax.f32 %v3583, 0.0
      %v3712 = vmax.f32 %v3584, 0.0
      %v3713 = vmax.f32 %v3585, 0.0
      %v3714 = vmax.f32 %v3586, 0.0
      %v3715 = vmax.f32 %v3587, 0.0
      %v3716 = vmax.f32 %v3588, 0.0
      %v3717 = vmax.f32 %v3589, 0.0
      %v3718 = vmax.f32 %v3590, 0.0
      %v3719 = vmax.f32 %v3591, 0.0
      %v3720 = vmax.f32 %v3592, 0.0
      %v3721 = vmax.f32 %v3593, 0.0
      %v3722 = vmax.f32 %v3594, 0.0
      %v3723 = vmax.f32 %v3595, 0.0
      %v3724 = vmax.f32 %v3596, 0.0
      %v3725 = vmax.f32 %v3597, 0.0
      %v3726 = vmax.f32 %v3598, 0.0
      %v3727 = vmax.f32 %v3599, 0.0
      %v3728 = vmax.f32 %v3600, 0.0
      %v3729 = vmax.f32 %v3601, 0.0
      %v3730 = vmax.f32 %v3602, 0.0
      %v3731 = vmax.f32 %v3603, 0.0
      %v3732 = vmax.f32 %v3604, 0.0
      %v3733 = vmax.f32 %v3605, 0.0
      %v3734 = vmax.f32 %v3606, 0.0
      %v3735 = vmax.f32 %v3607, 0.0
      %v3736 = vmax.f32 %v3608, 0.0
      %v3737 = vmax.f32 %v3609, 0.0
      %v3738 = vmax.f32 %v3610, 0.0
      %v3739 = vmax.f32 %v3611, 0.0
      %v3740 = vmax.f32 %v3612, 0.0
      %v3741 = vmax.f32 %v3613, 0.0
      %v3742 = vmax.f32 %v3614, 0.0
      %v3743 = vmax.f32 %v3615, 0.0
      %v3744 = vmax.f32 %v3616, 0.0
      %v3745 = vmax.f32 %v3617, 0.0
      %v3746 = vmax.f32 %v3618, 0.0
      %v3747 = vmax.f32 %v3619, 0.0
      %v3748 = vmax.f32 %v3620, 0.0
      %v3749 = vmax.f32 %v3621, 0.0
      %v3750 = vmax.f32 %v3622, 0.0
      %v3751 = vmax.f32 %v3623, 0.0
      %v3752 = vmax.f32 %v3624, 0.0
      %v3753 = vmax.f32 %v3625, 0.0
      %v3754 = vmax.f32 %v3626, 0.0
      %v3755 = vmax.f32 %v3627, 0.0
      %v3756 = vmax.f32 %v3628, 0.0
      %v3757 = vmax.f32 %v3629, 0.0
      %v3758 = vmax.f32 %v3630, 0.0
      %v3759 = vmax.f32 %v3631, 0.0
      %v3760 = vmax.f32 %v3632, 0.0
      %v3761 = vmax.f32 %v3633, 0.0
      %v3762 = vmax.f32 %v3634, 0.0
      %v3763 = vmax.f32 %v3635, 0.0
      %v3764 = vmax.f32 %v3636, 0.0
      %v3765 = vld [vmem:[%s7] sm:$0x3]
      %s3766 = sld [smem:[#allocation4]]
      %v3767 = vstv %s3766
      %v3769 = vlaneseq
      %v3770 = vshrl.u32 %v3769, 7
      %v3771 = vsub.s32 0, %v3770
      %v3772 = vrot.slane %v3765, %v3771
      %v3773 = vlaneseq
      %v3774 = vshrl.u32 %v3773, 7
      %v3775 = vsub.s32 1, %v3774
      %v3776 = vrot.slane %v3765, %v3775
      %3779 = vmatprep.subr.mxu0 %v3638
      %3780 = vmatpush1.xpose.msra.mxu0 %v3637
      %3781 = vmatprep.subr.mxu0 %v3640
      %3782 = vmatpush1.xpose.msra.mxu0 %v3639
      %3783 = vmatprep.subr.mxu0 %v3642
      %3784 = vmatpush1.xpose.msra.mxu0 %v3641
      %3785 = vmatprep.subr.mxu0 %v3644
      %3786 = vmatpush1.xpose.msra.mxu0 %v3643
      %3787 = vmatprep.subr.mxu0 %v3646
      %3788 = vmatpush1.xpose.msra.mxu0 %v3645
      %3789 = vmatprep.subr.mxu0 %v3648
      %3790 = vmatpush1.xpose.msra.mxu0 %v3647
      %3791 = vmatprep.subr.mxu0 %v3650
      %3792 = vmatpush1.xpose.msra.mxu0 %v3649
      %3793 = vmatprep.subr.mxu0 %v3652
      %3794 = vmatpush1.xpose.msra.mxu0 %v3651
      %3795 = vmatprep.subr.mxu0 %v3654
      %3796 = vmatpush1.xpose.msra.mxu0 %v3653
      %3797 = vmatprep.subr.mxu0 %v3656
      %3798 = vmatpush1.xpose.msra.mxu0 %v3655
      %3799 = vmatprep.subr.mxu0 %v3658
      %3800 = vmatpush1.xpose.msra.mxu0 %v3657
      %3801 = vmatprep.subr.mxu0 %v3660
      %3802 = vmatpush1.xpose.msra.mxu0 %v3659
      %3803 = vmatprep.subr.mxu0 %v3662
      %3804 = vmatpush1.xpose.msra.mxu0 %v3661
      %3805 = vmatprep.subr.mxu0 %v3664
      %3806 = vmatpush1.xpose.msra.mxu0 %v3663
      %3807 = vmatprep.subr.mxu0 %v3666
      %3808 = vmatpush1.xpose.msra.mxu0 %v3665
      %3809 = vmatprep.subr.mxu0 %v3668
      %3810 = vmatpush1.xpose.msra.mxu0 %v3667
      %3811 = vmatprep.subr.mxu0 %v3670
      %3812 = vmatpush1.xpose.msra.mxu0 %v3669
      %3813 = vmatprep.subr.mxu0 %v3672
      %3814 = vmatpush1.xpose.msra.mxu0 %v3671
      %3815 = vmatprep.subr.mxu0 %v3674
      %3816 = vmatpush1.xpose.msra.mxu0 %v3673
      %3817 = vmatprep.subr.mxu0 %v3676
      %3818 = vmatpush1.xpose.msra.mxu0 %v3675
      %3819 = vmatprep.subr.mxu0 %v3678
      %3820 = vmatpush1.xpose.msra.mxu0 %v3677
      %3821 = vmatprep.subr.mxu0 %v3680
      %3822 = vmatpush1.xpose.msra.mxu0 %v3679
      %3823 = vmatprep.subr.mxu0 %v3682
      %3824 = vmatpush1.xpose.msra.mxu0 %v3681
      %3825 = vmatprep.subr.mxu0 %v3684
      %3826 = vmatpush1.xpose.msra.mxu0 %v3683
      %3827 = vmatprep.subr.mxu0 %v3686
      %3828 = vmatpush1.xpose.msra.mxu0 %v3685
      %3829 = vmatprep.subr.mxu0 %v3688
      %3830 = vmatpush1.xpose.msra.mxu0 %v3687
      %3831 = vmatprep.subr.mxu0 %v3690
      %3832 = vmatpush1.xpose.msra.mxu0 %v3689
      %3833 = vmatprep.subr.mxu0 %v3692
      %3834 = vmatpush1.xpose.msra.mxu0 %v3691
      %3835 = vmatprep.subr.mxu0 %v3694
      %3836 = vmatpush1.xpose.msra.mxu0 %v3693
      %3837 = vmatprep.subr.mxu0 %v3696
      %3838 = vmatpush1.xpose.msra.mxu0 %v3695
      %3839 = vmatprep.subr.mxu0 %v3698
      %3840 = vmatpush1.xpose.msra.mxu0 %v3697
      %3841 = vmatprep.subr.mxu0 %v3700
      %3842 = vmatpush1.xpose.msra.mxu0 %v3699
      %3843 = vmatprep.mubr.f32.mxu0 %v3776
      %3844 = vmatmul.mubr.f32.gmra.mrb[0].mxu0 %v3772
      %v3845 = vpop.f32.mrb[0].mxu0
      %v3846 = vadd.f32 %v3767, %v3845
      %v3847 = vpop.f32.mrb[0].mxu0
      %v3848 = vadd.f32 %v3767, %v3847
      %3849 = vdwg.mxu0
      %3850 = vmatprep.subr.mxu0 %v3702
      %3851 = vmatpush1.xpose.msra.mxu0 %v3701
      %3852 = vmatprep.subr.mxu0 %v3704
      %3853 = vmatpush1.xpose.msra.mxu0 %v3703
      %3854 = vmatprep.subr.mxu0 %v3706
      %3855 = vmatpush1.xpose.msra.mxu0 %v3705
      %3856 = vmatprep.subr.mxu0 %v3708
      %3857 = vmatpush1.xpose.msra.mxu0 %v3707
      %3858 = vmatprep.subr.mxu0 %v3710
      %3859 = vmatpush1.xpose.msra.mxu0 %v3709
      %3860 = vmatprep.subr.mxu0 %v3712
      %3861 = vmatpush1.xpose.msra.mxu0 %v3711
      %3862 = vmatprep.subr.mxu0 %v3714
      %3863 = vmatpush1.xpose.msra.mxu0 %v3713
      %3864 = vmatprep.subr.mxu0 %v3716
      %3865 = vmatpush1.xpose.msra.mxu0 %v3715
      %3866 = vmatprep.subr.mxu0 %v3718
      %3867 = vmatpush1.xpose.msra.mxu0 %v3717
      %3868 = vmatprep.subr.mxu0 %v3720
      %3869 = vmatpush1.xpose.msra.mxu0 %v3719
      %3870 = vmatprep.subr.mxu0 %v3722
      %3871 = vmatpush1.xpose.msra.mxu0 %v3721
      %3872 = vmatprep.subr.mxu0 %v3724
      %3873 = vmatpush1.xpose.msra.mxu0 %v3723
      %3874 = vmatprep.subr.mxu0 %v3726
      %3875 = vmatpush1.xpose.msra.mxu0 %v3725
      %3876 = vmatprep.subr.mxu0 %v3728
      %3877 = vmatpush1.xpose.msra.mxu0 %v3727
      %3878 = vmatprep.subr.mxu0 %v3730
      %3879 = vmatpush1.xpose.msra.mxu0 %v3729
      %3880 = vmatprep.subr.mxu0 %v3732
      %3881 = vmatpush1.xpose.msra.mxu0 %v3731
      %3882 = vmatprep.subr.mxu0 %v3734
      %3883 = vmatpush1.xpose.msra.mxu0 %v3733
      %3884 = vmatprep.subr.mxu0 %v3736
      %3885 = vmatpush1.xpose.msra.mxu0 %v3735
      %3886 = vmatprep.subr.mxu0 %v3738
      %3887 = vmatpush1.xpose.msra.mxu0 %v3737
      %3888 = vmatprep.subr.mxu0 %v3740
      %3889 = vmatpush1.xpose.msra.mxu0 %v3739
      %3890 = vmatprep.subr.mxu0 %v3742
      %3891 = vmatpush1.xpose.msra.mxu0 %v3741
      %3892 = vmatprep.subr.mxu0 %v3744
      %3893 = vmatpush1.xpose.msra.mxu0 %v3743
      %3894 = vmatprep.subr.mxu0 %v3746
      %3895 = vmatpush1.xpose.msra.mxu0 %v3745
      %3896 = vmatprep.subr.mxu0 %v3748
      %3897 = vmatpush1.xpose.msra.mxu0 %v3747
      %3898 = vmatprep.subr.mxu0 %v3750
      %3899 = vmatpush1.xpose.msra.mxu0 %v3749
      %3900 = vmatprep.subr.mxu0 %v3752
      %3901 = vmatpush1.xpose.msra.mxu0 %v3751
      %3902 = vmatprep.subr.mxu0 %v3754
      %3903 = vmatpush1.xpose.msra.mxu0 %v3753
      %3904 = vmatprep.subr.mxu0 %v3756
      %3905 = vmatpush1.xpose.msra.mxu0 %v3755
      %3906 = vmatprep.subr.mxu0 %v3758
      %3907 = vmatpush1.xpose.msra.mxu0 %v3757
      %3908 = vmatprep.subr.mxu0 %v3760
      %3909 = vmatpush1.xpose.msra.mxu0 %v3759
      %3910 = vmatprep.subr.mxu0 %v3762
      %3911 = vmatpush1.xpose.msra.mxu0 %v3761
      %3912 = vmatprep.subr.mxu0 %v3764
      %3913 = vmatpush1.xpose.msra.mxu0 %v3763
      %3914 = vmatprep.mubr.f32.mxu0 %v3776
      %3915 = vmatmul.mubr.f32.gmra.mrb[0].mxu0 %v3772
      %v3916 = vpop.f32.mrb[0].mxu0
      %v3917 = vadd.f32 %v3767, %v3916
      %v3918 = vpop.f32.mrb[0].mxu0
      %v3919 = vadd.f32 %v3767, %v3918
      %3920 = vdwg.mxu0
      %v3925 = vcombine.low %v3846, %v3848
      %v3926 = vcombine.low %v3917, %v3919
      %v3928 = vunpack.c.l.s4 1966171168
      %v3929 = vunpack.c.0.s8 %v3928
      %v3930 = vlaneseq
      %v3931 = vshrl.u32 %v3930, 7
      %v3932 = vsub.s32 %v3929, %v3931
      %v3933 = vrot.slane %v3925, %v3932
      %v3935 = vunpack.c.l.s4 1966171168
      %v3936 = vunpack.c.0.s8 %v3935
      %v3937 = vlaneseq
      %v3938 = vshrl.u32 %v3937, 7
      %v3939 = vsub.s32 %v3936, %v3938
      %v3940 = vrot.slane %v3926, %v3939
      %v3941 = vcombine.low %v3933, %v3940
      %v3943 = vunpack.c.l.s4 1966171168
      %v3944 = vunpack.c.0.s8 %v3943
      %v3945 = vlaneseq
      %v3946 = vshrl.u32 %v3945, 7
      %v3947 = vsub.s32 %v3944, %v3946
      %v3948 = vrot.slane %v3941, %v3947
      %v3950 = vlaneseq
      %vm3951 = vcmp.ge.s32.totalorder %v3950, 0
      %vm3952 = vcmp.lt.s32.totalorder %v3950, 512
      %vm3953 = vmand %vm3951, %vm3952
      %3954 = vst.msk [vmem:[#allocation5] sm:$0xf] %vm3953, %v3948
    $region45: #{dis_forward.1} parent=1 // pred_fallthru
      _
    // Predicated region
    $region46: #{dis_forward.1} parent=1 // pred_check
      _
    $region47: #{dis_forward.1} parent=1 // pred_check_branch
      %3956 = sbr.rel (0) target = $region49
    $region48: #{dis_forward.1} parent=1 // pred_region
      %s3958 = ssub.s32 64, 64
      %3959 = vsyncadd [#allocation6], %s3958
      %s3961 = sshll.u32 [#allocation5], 4
      %s3962 = int_to_ptr.vmem [resolvable:$true] %s3961
      %3964 = dma.vmem_to_hbm [thread:$0]  %s3962, 64, %s9, [#allocation6]
    $region49: #{dis_forward.1} parent=1 // pred_fallthru
      _
    // Predicated region
    $region50: #{dis_forward.1} parent=1 // pred_check
      _
    $region51: #{dis_forward.1} parent=1 // pred_check_branch
      %3966 = sbr.rel (0) target = $region53
    $region52: #{dis_forward.1} parent=1 // pred_region
      %3967 = dma.done [#allocation6], 64
    $region53: #{dis_forward.1} parent=1 // pred_fallthru
      _
    %3968 = vsyncpa [#allocation6], 1

</llo_original>
